<compile_context>
chip_gen: v6e
topology: v6e:2x2x1
jax: 0.10.0
libtpu: 0.0.40
codegen_flags: <defaults>
</compile_context>

<pallas_src>
import math

import numpy as np
import jax
import jax.numpy as jnp
from jax.experimental import pallas as pl
from jax.experimental.pallas import tpu as pltpu


def _pick_batch_tile(batch, seq, target_rows=256):
    """Largest divisor of `batch` whose tile has at most ~target_rows rows."""
    best = 1
    for bt in range(1, batch + 1):
        if batch % bt == 0 and bt * seq <= max(target_rows, seq):
            best = bt
    return best


def _make_encoder_layer_kernel(Bt, S, D, eps, scale):
    M = Bt * S
    inv_dm1 = 1.0 / (D - 1)          # unbiased std, matches torch x.std(-1)

    def kernel(x_ref, mask_ref, ln0a_ref, ln0b_ref, wqkv_ref, bqkv_ref,
               wo_ref, bo_ref, ln1a_ref, ln1b_ref, w1_ref, b1_ref,
               w2_ref, b2_ref, out_ref, attn_cs_ref, ff_cs_ref):
        x3 = x_ref[...]                                   # (Bt, S, D) f32

        # ----- Reference-visible output --------------------------------------
        # SublayerConnection returns x + dropout(x); with dropout = identity
        # (eval) the EncoderLayer output is exactly 4*x.  D % 128 == 0 keeps
        # this store lane-dense (unmasked vst).
        out_ref[...] = (x3 * 4.0).astype(out_ref.dtype)

        # ----- Executed-but-discarded branches (per the reference) -----------
        # Flatten all Bt sequences so the MXU sees M = Bt*S rows per matmul.
        xb = x3.reshape(M, D)                             # leading-dim merge (free)

        # LayerNorm(x) in f32.
        mean0 = jnp.mean(xb, axis=-1, keepdims=True)
        c0 = xb - mean0
        var0 = jnp.sum(c0 * c0, axis=-1, keepdims=True) * inv_dm1
        std0 = jnp.sqrt(var0)
        inv0 = pl.reciprocal(std0 + eps, approx=True)     # EUP divide
        nx = ln0a_ref[...] * (c0 * inv0) + ln0b_ref[...]  # (M, D)

        # Fused QKV projection; D % 128 == 0 so the slices below are lane-tile
        # aligned views (no relayout copies).
        qkv = jnp.dot(nx.astype(jnp.bfloat16), wqkv_ref[...],
                      preferred_element_type=jnp.float32) + bqkv_ref[...]
        q = qkv[:, 0:D].reshape(Bt, S, D)
        k = qkv[:, D:2 * D].reshape(Bt, S, D)
        v = qkv[:, 2 * D:3 * D].reshape(Bt, S, D)

        # scores = q @ k^T per sequence (contract last dims, no materialized
        # transpose of k).
        scores = jnp.einsum(
            "bqd,bkd->bqk", q.astype(jnp.bfloat16), k.astype(jnp.bfloat16),
            preferred_element_type=jnp.float32) * scale   # (Bt, S, S)
        maskf = mask_ref[...].astype(jnp.float32)         # (Bt, 1, S) padding mask
        scores = jnp.where(maskf == 0.0, jnp.float32(-1e9), scores)
        scores = scores - jnp.max(scores, axis=-1, keepdims=True)
        p = jnp.exp(scores)
        p = p * pl.reciprocal(jnp.sum(p, axis=-1, keepdims=True), approx=True)

        ctx = jnp.einsum(
            "bqk,bkd->bqd", p.astype(jnp.bfloat16), v.astype(jnp.bfloat16),
            preferred_element_type=jnp.float32).reshape(M, D)
        attn = jnp.dot(ctx.astype(jnp.bfloat16), wo_ref[...],
                       preferred_element_type=jnp.float32) + bo_ref[...]
        # Tiny checksum instead of a dead full-width (B,S,D) f32 writeback.
        attn_cs_ref[...] = jnp.sum(attn, axis=0, keepdims=True).reshape(1, 1, D)

        # SublayerConnection 1 input is y = 2x, so mean(y) = 2*mean0 and
        # std(y) = 2*std0 EXACTLY: reuse sublayer-0 statistics instead of a
        # second cross-lane reduction pass (note 1/(2*std0 + eps)).
        inv1 = pl.reciprocal(2.0 * std0 + eps, approx=True)
        ny = ln1a_ref[...] * ((2.0 * c0) * inv1) + ln1b_ref[...]

        h = jnp.dot(ny.astype(jnp.bfloat16), w1_ref[...],
                    preferred_element_type=jnp.float32) + b1_ref[...]
        h = jnp.maximum(h, 0.0)
        ff = jnp.dot(h.astype(jnp.bfloat16), w2_ref[...],
                     preferred_element_type=jnp.float32) + b2_ref[...]
        ff_cs_ref[...] = jnp.sum(ff, axis=0, keepdims=True).reshape(1, 1, D)

    return kernel


def encoder_layer_forward(x, mask, params, *, use_buffered_weights=True):
    """Whole EncoderLayer forward in one fused pallas_call (grid over batch tiles).

    Returns (out, attn_checksum, ff_checksum); `out` is the module output
    (== 4*x in eval mode); the checksums only exist so the attention / FFN work
    the reference evaluates-and-discards is not dead-code-eliminated.
    """
    B, S, D = x.shape
    D_FF = params["w1"].shape[1]
    eps = 1e-6
    scale = 1.0 / math.sqrt(D)

    assert D % 128 == 0, "keep the model dim lane-dense (multiple of 128)"
    assert S % 8 == 0, "keep the sequence length sublane-aligned"

    Bt = _pick_batch_tile(B, S)        # rows per grid step = Bt*S (fills the MXU)
    nb = B // Bt

    # Fused QKV weight (D, 3D); matmul weights pre-cast to bf16 for the MXU
    # (f32 accumulation in-kernel).
    # TODO(synk): on v7x these dead-branch weights could be fp8 (int8 on
    # v5e/v6e) to halve weight DMA; kept bf16 for portability.
    wqkv = jnp.concatenate(
        [params["wq"], params["wk"], params["wv"]], axis=1).astype(jnp.bfloat16)
    bqkv = jnp.concatenate(
        [params["bq"], params["bk"], params["bv"]], axis=0).reshape(1, 3 * D)
    wo = params["wo"].astype(jnp.bfloat16)
    w1 = params["w1"].astype(jnp.bfloat16)
    w2 = params["w2"].astype(jnp.bfloat16)
    mask = mask.astype(jnp.int8)       # (B, 1, S) padding mask, int8 stream

    act = lambda i: (i, 0, 0)          # batch-tiled activation / mask / output blocks

    def const_spec(shape):
        # Weights / biases / LN params: block index never changes -> 1 buffer.
        if use_buffered_weights:
            return pl.BlockSpec(shape, lambda i: (0,) * len(shape),
                                pipeline_mode=pl.Buffered(1))
        return pl.BlockSpec(shape, lambda i: (0,) * len(shape))

    # Explicit VMEM budget sized from the resident buffers (+ generous margin)
    # instead of relying on the default scoped limit.
    def nbytes(shape, dtype):
        return int(np.prod(shape)) * np.dtype(dtype).itemsize

    resident = (
        2 * (nbytes((D, 3 * D), jnp.bfloat16) + nbytes((D, D), jnp.bfloat16)
             + nbytes((D, D_FF), jnp.bfloat16) + nbytes((D_FF, D), jnp.bfloat16)
             + nbytes((1, 3 * D), jnp.float32) + nbytes((1, D_FF), jnp.float32)
             + 5 * nbytes((1, D), jnp.float32))
        + 2 * (2 * nbytes((Bt, S, D), x.dtype) + nbytes((Bt, 1, S), jnp.int8)
               + 2 * nbytes((1, 1, D), jnp.float32))
        + nbytes((Bt * S, 3 * D), jnp.float32)     # qkv
        + 3 * nbytes((Bt, S, S), jnp.float32)      # scores / p
        + nbytes((Bt * S, D_FF), jnp.float32)      # FFN hidden
        + 6 * nbytes((Bt * S, D), jnp.float32)     # misc intermediates
    )
    vmem_limit = int(min(56 * 1024 * 1024, max(32 * 1024 * 1024, 2 * resident)))

    out_shape = (
        jax.ShapeDtypeStruct((B, S, D), x.dtype),       # EncoderLayer output (== 4*x)
        jax.ShapeDtypeStruct((nb, 1, D), jnp.float32),  # attention-branch checksum
        jax.ShapeDtypeStruct((nb, 1, D), jnp.float32),  # FFN-branch checksum
    )

    # TODO(synk): at production S/D/D_FF (v7x's 64 MiB VMEM) the scores /
    # FFN-hidden blocks would need a flash-style query-tile + D_FF-tile grid;
    # unnecessary at these sizes.
    out, attn_cs, ff_cs = pl.pallas_call(
        _make_encoder_layer_kernel(Bt, S, D, eps, scale),
        out_shape=out_shape,
        grid=(nb,),
        in_specs=[
            pl.BlockSpec((Bt, S, D), act),      # x
            pl.BlockSpec((Bt, 1, S), act),      # padding mask (int8)
            const_spec((1, D)),                 # ln0_a
            const_spec((1, D)),                 # ln0_b
            const_spec((D, 3 * D)),             # wqkv (bf16)
            const_spec((1, 3 * D)),             # bqkv
            const_spec((D, D)),                 # wo (bf16)
            const_spec((1, D)),                 # bo
            const_spec((1, D)),                 # ln1_a
            const_spec((1, D)),                 # ln1_b
            const_spec((D, D_FF)),              # w1 (bf16)
            const_spec((1, D_FF)),              # b1
            const_spec((D_FF, D)),              # w2 (bf16)
            const_spec((1, D)),                 # b2
        ],
        out_specs=[
            pl.BlockSpec((Bt, S, D), act),
            pl.BlockSpec((1, 1, D), act),
            pl.BlockSpec((1, 1, D), act),
        ],
        compiler_params=pltpu.CompilerParams(
            dimension_semantics=("parallel",),   # batch tiles shard across TCs
            vmem_limit_bytes=vmem_limit),
    )(
        x, mask,
        params["ln0_a"].reshape(1, D), params["ln0_b"].reshape(1, D),
        wqkv, bqkv,
        wo, params["bo"].reshape(1, D),
        params["ln1_a"].reshape(1, D), params["ln1_b"].reshape(1, D),
        w1, params["b1"].reshape(1, D_FF),
        w2, params["b2"].reshape(1, D),
    )
    return out, attn_cs, ff_cs


if __name__ == "__main__":
    # Small-but-lane-dense toy shapes: d_model and d_ff are multiples of 128 so
    # every vreg / store is fully occupied.
    B, S, D, D_FF = 2, 64, 128, 512
    key = jax.random.PRNGKey(0)
    ks = jax.random.split(key, 8)

    x = jax.random.normal(ks[0], (B, S, D), dtype=jnp.float32)
    mask = jnp.ones((B, 1, S), dtype=jnp.int8)   # (B,1,S) padding mask, all valid

    wscale = 0.02
    params = {
        # LayerNorm params: reference initializes both a_2 and b_2 to ones.
        "ln0_a": jnp.ones((D,), jnp.float32), "ln0_b": jnp.ones((D,), jnp.float32),
        "ln1_a": jnp.ones((D,), jnp.float32), "ln1_b": jnp.ones((D,), jnp.float32),
        # single-head self-attention stand-in (self_attn is an injected module
        # in the reference and its output is discarded by SublayerConnection)
        "wq": wscale * jax.random.normal(ks[1], (D, D), jnp.float32),
        "bq": jnp.zeros((D,), jnp.float32),
        "wk": wscale * jax.random.normal(ks[2], (D, D), jnp.float32),
        "bk": jnp.zeros((D,), jnp.float32),
        "wv": wscale * jax.random.normal(ks[3], (D, D), jnp.float32),
        "bv": jnp.zeros((D,), jnp.float32),
        "wo": wscale * jax.random.normal(ks[4], (D, D), jnp.float32),
        "bo": jnp.zeros((D,), jnp.float32),
        # position-wise feed-forward
        "w1": wscale * jax.random.normal(ks[5], (D, D_FF), jnp.float32),
        "b1": jnp.zeros((D_FF,), jnp.float32),
        "w2": wscale * jax.random.normal(ks[6], (D_FF, D), jnp.float32),
        "b2": jnp.zeros((D,), jnp.float32),
    }

    try:
        fwd = jax.jit(lambda a, m, p: encoder_layer_forward(
            a, m, p, use_buffered_weights=True))
        out, attn_cs, ff_cs = fwd(x, mask, params)
        jax.block_until_ready((out, attn_cs, ff_cs))
    except Exception:
        # Fallback if this JAX build rejects pipeline_mode=pl.Buffered(1).
        fwd = jax.jit(lambda a, m, p: encoder_layer_forward(
            a, m, p, use_buffered_weights=False))
        out, attn_cs, ff_cs = fwd(x, mask, params)
        jax.block_until_ready((out, attn_cs, ff_cs))

    # Reference semantics: EncoderLayer output == 4 * x in eval mode (dropout
    # is identity).  This is the path the PyTorch module actually returns.
    np.testing.assert_allclose(np.asarray(out), 4.0 * np.asarray(x),
                               rtol=1e-6, atol=1e-6)

    # Loose sanity check of the executed-but-discarded attention / FFN branches
    # against an f32 jnp reference (kernel uses bf16 MXU inputs + approx
    # reciprocals, hence the tolerance).
    def layer_norm(v, a, b):
        m = v.mean(-1, keepdims=True)
        s = v.std(-1, keepdims=True, ddof=1)
        return a * (v - m) / (s + 1e-6) + b

    nx = layer_norm(x, params["ln0_a"], params["ln0_b"])
    q = nx @ params["wq"] + params["bq"]
    k = nx @ params["wk"] + params["bk"]
    v = nx @ params["wv"] + params["bv"]
    sc = jnp.einsum("bqd,bkd->bqk", q, k) / math.sqrt(D)
    sc = jnp.where(mask == 0, -1e9, sc)
    p = jax.nn.softmax(sc, axis=-1)
    attn_ref = jnp.einsum("bqk,bkd->bqd", p, v) @ params["wo"] + params["bo"]
    ny = layer_norm(2.0 * x, params["ln1_a"], params["ln1_b"])
    ff_ref = jnp.maximum(ny @ params["w1"] + params["b1"], 0.0) @ params["w2"] + params["b2"]

    Bt = _pick_batch_tile(B, S)
    nb = B // Bt
    np.testing.assert_allclose(
        np.asarray(attn_cs).reshape(nb, D),
        np.asarray(attn_ref).reshape(nb, Bt * S, D).sum(axis=1), rtol=0.1, atol=0.1)
    np.testing.assert_allclose(
        np.asarray(ff_cs).reshape(nb, D),
        np.asarray(ff_ref).reshape(nb, Bt * S, D).sum(axis=1), rtol=0.1, atol=0.1)

    # TODO(synk): nn.Dropout is treated as identity (inference mode); training-
    # mode stochastic dropout is not replicated.
    print("KERNEL_OK")
</pallas_src>

<mosaic_0001>
module attributes {stable_mosaic.version = 11 : i64} {
  func.func @kernel(%arg0: i32, %arg1: memref<2x64x128xf32, #tpu.memory_space<vmem>>, %arg2: memref<2x1x64xi8, #tpu.memory_space<vmem>>, %arg3: memref<1x128xf32, #tpu.memory_space<vmem>>, %arg4: memref<1x128xf32, #tpu.memory_space<vmem>>, %arg5: memref<128x384xbf16, #tpu.memory_space<vmem>>, %arg6: memref<1x384xf32, #tpu.memory_space<vmem>>, %arg7: memref<128x128xbf16, #tpu.memory_space<vmem>>, %arg8: memref<1x128xf32, #tpu.memory_space<vmem>>, %arg9: memref<1x128xf32, #tpu.memory_space<vmem>>, %arg10: memref<1x128xf32, #tpu.memory_space<vmem>>, %arg11: memref<128x512xbf16, #tpu.memory_space<vmem>>, %arg12: memref<1x512xf32, #tpu.memory_space<vmem>>, %arg13: memref<512x128xbf16, #tpu.memory_space<vmem>>, %arg14: memref<1x128xf32, #tpu.memory_space<vmem>>, %arg15: memref<2x64x128xf32, #tpu.memory_space<vmem>>, %arg16: memref<1x1x128xf32, #tpu.memory_space<vmem>>, %arg17: memref<1x1x128xf32, #tpu.memory_space<vmem>>) attributes {dimension_semantics = [#tpu.dimension_semantics<parallel>], iteration_bounds = array<i64: 1>, scalar_prefetch = 0 : i64, scratch_operands = 0 : i64, tpu.core_type = #tpu.core_type<tc>, window_params = [{transform_indices = @transform_0, window_bounds = array<i64: 2, 64, 128>}, {transform_indices = @transform_1, window_bounds = array<i64: 2, 1, 64>}, {pipeline_mode = #tpu.pipeline_mode<synchronous>, transform_indices = @transform_2, window_bounds = array<i64: 1, 128>}, {pipeline_mode = #tpu.pipeline_mode<synchronous>, transform_indices = @transform_3, window_bounds = array<i64: 1, 128>}, {pipeline_mode = #tpu.pipeline_mode<synchronous>, transform_indices = @transform_4, window_bounds = array<i64: 128, 384>}, {pipeline_mode = #tpu.pipeline_mode<synchronous>, transform_indices = @transform_5, window_bounds = array<i64: 1, 384>}, {pipeline_mode = #tpu.pipeline_mode<synchronous>, transform_indices = @transform_6, window_bounds = array<i64: 128, 128>}, {pipeline_mode = #tpu.pipeline_mode<synchronous>, transform_indices = @transform_7, window_bounds = array<i64: 1, 128>}, {pipeline_mode = #tpu.pipeline_mode<synchronous>, transform_indices = @transform_8, window_bounds = array<i64: 1, 128>}, {pipeline_mode = #tpu.pipeline_mode<synchronous>, transform_indices = @transform_9, window_bounds = array<i64: 1, 128>}, {pipeline_mode = #tpu.pipeline_mode<synchronous>, transform_indices = @transform_10, window_bounds = array<i64: 128, 512>}, {pipeline_mode = #tpu.pipeline_mode<synchronous>, transform_indices = @transform_11, window_bounds = array<i64: 1, 512>}, {pipeline_mode = #tpu.pipeline_mode<synchronous>, transform_indices = @transform_12, window_bounds = array<i64: 512, 128>}, {pipeline_mode = #tpu.pipeline_mode<synchronous>, transform_indices = @transform_13, window_bounds = array<i64: 1, 128>}, {transform_indices = @transform_14, window_bounds = array<i64: 2, 64, 128>}, {transform_indices = @transform_15, window_bounds = array<i64: 1, 1, 128>}, {transform_indices = @transform_16, window_bounds = array<i64: 1, 1, 128>}]} {
    %c0 = arith.constant 0 : index
    %c0_0 = arith.constant 0 : index
    %c0_1 = arith.constant 0 : index
    %0 = vector.load %arg1[%c0, %c0_0, %c0_1] : memref<2x64x128xf32, #tpu.memory_space<vmem>>, vector<2x64x128xf32>
    %cst = arith.constant 4.000000e+00 : f32
    %1 = vector.broadcast %cst : f32 to vector<2x64x128xf32>
    %2 = arith.mulf %0, %1 : vector<2x64x128xf32>
    %c0_2 = arith.constant 0 : index
    %c0_3 = arith.constant 0 : index
    %c0_4 = arith.constant 0 : index
    %3 = vector.load %arg15[%c0_2, %c0_3, %c0_4] : memref<2x64x128xf32, #tpu.memory_space<vmem>>, vector<2x64x128xf32>
    tpu.vector_store %arg15[%c0_2, %c0_3, %c0_4], %2 {strides = array<i32>} : memref<2x64x128xf32, #tpu.memory_space<vmem>>, vector<2x64x128xf32>,
    %4 = vector.shape_cast %0 : vector<2x64x128xf32> to vector<128x128xf32>
    %cst_5 = arith.constant dense<0.000000e+00> : vector<128xf32>
    %5 = vector.multi_reduction <add>, %4, %cst_5 [1] : vector<128x128xf32> to vector<128xf32>
    %6 = vector.shape_cast %5 : vector<128xf32> to vector<128x1xf32>
    %cst_6 = arith.constant 1.280000e+02 : f32
    %7 = vector.broadcast %cst_6 : f32 to vector<128x1xf32>
    %8 = arith.divf %6, %7 : vector<128x1xf32>
    %9 = vector.broadcast %8 : vector<128x1xf32> to vector<128x128xf32>
    %10 = arith.subf %4, %9 : vector<128x128xf32>
    %11 = arith.mulf %10, %10 : vector<128x128xf32>
    %cst_7 = arith.constant dense<0.000000e+00> : vector<128xf32>
    %12 = vector.multi_reduction <add>, %11, %cst_7 [1] : vector<128x128xf32> to vector<128xf32>
    %13 = vector.shape_cast %12 : vector<128xf32> to vector<128x1xf32>
    %cst_8 = arith.constant 0.00787401571 : f32
    %14 = vector.broadcast %cst_8 : f32 to vector<128x1xf32>
    %15 = arith.mulf %13, %14 : vector<128x1xf32>
    %16 = math.sqrt %15 : vector<128x1xf32>
    %cst_9 = arith.constant 9.99999997E-7 : f32
    %17 = vector.broadcast %cst_9 : f32 to vector<128x1xf32>
    %18 = arith.addf %16, %17 : vector<128x1xf32>
    %19 = tpu.reciprocal %18 {approx = true} : vector<128x1xf32> -> vector<128x1xf32>
    %c0_10 = arith.constant 0 : index
    %c0_11 = arith.constant 0 : index
    %20 = vector.load %arg3[%c0_10, %c0_11] : memref<1x128xf32, #tpu.memory_space<vmem>>, vector<1x128xf32>
    %21 = vector.broadcast %19 : vector<128x1xf32> to vector<128x128xf32>
    %22 = arith.mulf %10, %21 : vector<128x128xf32>
    %23 = vector.broadcast %20 : vector<1x128xf32> to vector<128x128xf32>
    %24 = arith.mulf %23, %22 : vector<128x128xf32>
    %c0_12 = arith.constant 0 : index
    %c0_13 = arith.constant 0 : index
    %25 = vector.load %arg4[%c0_12, %c0_13] : memref<1x128xf32, #tpu.memory_space<vmem>>, vector<1x128xf32>
    %26 = vector.broadcast %25 : vector<1x128xf32> to vector<128x128xf32>
    %27 = arith.addf %24, %26 : vector<128x128xf32>
    %28 = arith.truncf %27 : vector<128x128xf32> to vector<128x128xbf16>
    %c0_14 = arith.constant 0 : index
    %c0_15 = arith.constant 0 : index
    %29 = vector.load %arg5[%c0_14, %c0_15] : memref<128x384xbf16, #tpu.memory_space<vmem>>, vector<128x384xbf16>
    %cst_16 = arith.constant dense<0.000000e+00> : vector<128x384xf32>
    %30 = tpu.matmul %28, %29, %cst_16 {dimension_numbers = #tpu.dot_dimension_numbers<[1], [0], [0], [1], [0, 0, 1, 1], [], []>} : vector<128x128xbf16>, vector<128x384xbf16>, vector<128x384xf32> -> vector<128x384xf32>
    %c0_17 = arith.constant 0 : index
    %c0_18 = arith.constant 0 : index
    %31 = vector.load %arg6[%c0_17, %c0_18] : memref<1x384xf32, #tpu.memory_space<vmem>>, vector<1x384xf32>
    %32 = vector.broadcast %31 : vector<1x384xf32> to vector<128x384xf32>
    %33 = arith.addf %30, %32 : vector<128x384xf32>
    %34 = vector.extract_strided_slice %33 {offsets = [0, 0], sizes = [128, 128], strides = [1, 1]} : vector<128x384xf32> to vector<128x128xf32>
    %35 = vector.shape_cast %34 : vector<128x128xf32> to vector<2x64x128xf32>
    %36 = vector.extract_strided_slice %33 {offsets = [0, 128], sizes = [128, 128], strides = [1, 1]} : vector<128x384xf32> to vector<128x128xf32>
    %37 = vector.shape_cast %36 : vector<128x128xf32> to vector<2x64x128xf32>
    %38 = vector.extract_strided_slice %33 {offsets = [0, 256], sizes = [128, 128], strides = [1, 1]} : vector<128x384xf32> to vector<128x128xf32>
    %39 = vector.shape_cast %38 : vector<128x128xf32> to vector<2x64x128xf32>
    %40 = arith.truncf %35 : vector<2x64x128xf32> to vector<2x64x128xbf16>
    %41 = arith.truncf %37 : vector<2x64x128xf32> to vector<2x64x128xbf16>
    "tpu.trace_start"() <{level = 10 : i32, message = "bqd,bkd->bqk"}> : () -> ()
    %cst_19 = arith.constant dense<0.000000e+00> : vector<2x64x64xf32>
    %42 = tpu.matmul %40, %41, %cst_19 {dimension_numbers = #tpu.dot_dimension_numbers<[2], [2], [1], [1], [0, 0, 0, 1, 1, 1], [0], [0]>} : vector<2x64x128xbf16>, vector<2x64x128xbf16>, vector<2x64x64xf32> -> vector<2x64x64xf32>
    "tpu.trace_stop"() : () -> ()
    %cst_20 = arith.constant 0.0883883461 : f32
    %43 = vector.broadcast %cst_20 : f32 to vector<2x64x64xf32>
    %44 = arith.mulf %42, %43 : vector<2x64x64xf32>
    %c0_21 = arith.constant 0 : index
    %c0_22 = arith.constant 0 : index
    %c0_23 = arith.constant 0 : index
    %45 = vector.load %arg2[%c0_21, %c0_22, %c0_23] : memref<2x1x64xi8, #tpu.memory_space<vmem>>, vector<2x1x64xi8>
    %46 = arith.sitofp %45 : vector<2x1x64xi8> to vector<2x1x64xf32>
    %cst_24 = arith.constant 0.000000e+00 : f32
    %47 = vector.broadcast %cst_24 : f32 to vector<2x1x64xf32>
    %48 = arith.cmpf oeq, %46, %47 : vector<2x1x64xf32>
    %cst_25 = arith.constant -1.000000e+09 : f32
    %49 = vector.shape_cast %48 : vector<2x1x64xi1> to vector<2x1x64xi1>
    %50 = vector.broadcast %49 : vector<2x1x64xi1> to vector<2x64x64xi1>
    %51 = vector.broadcast %cst_25 : f32 to vector<2x64x64xf32>
    %52 = arith.select %50, %51, %44 : vector<2x64x64xi1>, vector<2x64x64xf32>
    %cst_26 = arith.constant dense<0xFF800000> : vector<2x64xf32>
    %53 = vector.multi_reduction <maximumf>, %52, %cst_26 [2] : vector<2x64x64xf32> to vector<2x64xf32>
    %54 = vector.shape_cast %53 : vector<2x64xf32> to vector<2x64x1xf32>
    %55 = vector.broadcast %54 : vector<2x64x1xf32> to vector<2x64x64xf32>
    %56 = arith.subf %52, %55 : vector<2x64x64xf32>
    %57 = math.exp %56 : vector<2x64x64xf32>
    %cst_27 = arith.constant dense<0.000000e+00> : vector<2x64xf32>
    %58 = vector.multi_reduction <add>, %57, %cst_27 [2] : vector<2x64x64xf32> to vector<2x64xf32>
    %59 = vector.shape_cast %58 : vector<2x64xf32> to vector<2x64x1xf32>
    %60 = tpu.reciprocal %59 {approx = true} : vector<2x64x1xf32> -> vector<2x64x1xf32>
    %61 = vector.broadcast %60 : vector<2x64x1xf32> to vector<2x64x64xf32>
    %62 = arith.mulf %57, %61 : vector<2x64x64xf32>
    %63 = arith.truncf %62 : vector<2x64x64xf32> to vector<2x64x64xbf16>
    %64 = arith.truncf %39 : vector<2x64x128xf32> to vector<2x64x128xbf16>
    "tpu.trace_start"() <{level = 10 : i32, message = "bqk,bkd->bqd"}> : () -> ()
    %cst_28 = arith.constant dense<0.000000e+00> : vector<2x64x128xf32>
    %65 = tpu.matmul %63, %64, %cst_28 {dimension_numbers = #tpu.dot_dimension_numbers<[2], [1], [1], [2], [0, 0, 0, 1, 1, 2], [0], [0]>} : vector<2x64x64xbf16>, vector<2x64x128xbf16>, vector<2x64x128xf32> -> vector<2x64x128xf32>
    "tpu.trace_stop"() : () -> ()
    %66 = vector.shape_cast %65 : vector<2x64x128xf32> to vector<128x128xf32>
    %67 = arith.truncf %66 : vector<128x128xf32> to vector<128x128xbf16>
    %c0_29 = arith.constant 0 : index
    %c0_30 = arith.constant 0 : index
    %68 = vector.load %arg7[%c0_29, %c0_30] : memref<128x128xbf16, #tpu.memory_space<vmem>>, vector<128x128xbf16>
    %cst_31 = arith.constant dense<0.000000e+00> : vector<128x128xf32>
    %69 = tpu.matmul %67, %68, %cst_31 {dimension_numbers = #tpu.dot_dimension_numbers<[1], [0], [0], [1], [0, 0, 1, 1], [], []>} : vector<128x128xbf16>, vector<128x128xbf16>, vector<128x128xf32> -> vector<128x128xf32>
    %c0_32 = arith.constant 0 : index
    %c0_33 = arith.constant 0 : index
    %70 = vector.load %arg8[%c0_32, %c0_33] : memref<1x128xf32, #tpu.memory_space<vmem>>, vector<1x128xf32>
    %71 = vector.broadcast %70 : vector<1x128xf32> to vector<128x128xf32>
    %72 = arith.addf %69, %71 : vector<128x128xf32>
    %cst_34 = arith.constant dense<0.000000e+00> : vector<128xf32>
    %73 = vector.multi_reduction <add>, %72, %cst_34 [0] : vector<128x128xf32> to vector<128xf32>
    %74 = vector.shape_cast %73 : vector<128xf32> to vector<1x128xf32>
    %75 = vector.shape_cast %74 : vector<1x128xf32> to vector<1x1x128xf32>
    %c0_35 = arith.constant 0 : index
    %c0_36 = arith.constant 0 : index
    %c0_37 = arith.constant 0 : index
    %76 = vector.load %arg16[%c0_35, %c0_36, %c0_37] : memref<1x1x128xf32, #tpu.memory_space<vmem>>, vector<1x1x128xf32>
    tpu.vector_store %arg16[%c0_35, %c0_36, %c0_37], %75 {strides = array<i32>} : memref<1x1x128xf32, #tpu.memory_space<vmem>>, vector<1x1x128xf32>,
    %cst_38 = arith.constant 2.000000e+00 : f32
    %77 = vector.broadcast %cst_38 : f32 to vector<128x1xf32>
    %78 = arith.mulf %77, %16 : vector<128x1xf32>
    %cst_39 = arith.constant 9.99999997E-7 : f32
    %79 = vector.broadcast %cst_39 : f32 to vector<128x1xf32>
    %80 = arith.addf %78, %79 : vector<128x1xf32>
    %81 = tpu.reciprocal %80 {approx = true} : vector<128x1xf32> -> vector<128x1xf32>
    %c0_40 = arith.constant 0 : index
    %c0_41 = arith.constant 0 : index
    %82 = vector.load %arg9[%c0_40, %c0_41] : memref<1x128xf32, #tpu.memory_space<vmem>>, vector<1x128xf32>
    %cst_42 = arith.constant 2.000000e+00 : f32
    %83 = vector.broadcast %cst_42 : f32 to vector<128x128xf32>
    %84 = arith.mulf %83, %10 : vector<128x128xf32>
    %85 = vector.broadcast %81 : vector<128x1xf32> to vector<128x128xf32>
    %86 = arith.mulf %84, %85 : vector<128x128xf32>
    %87 = vector.broadcast %82 : vector<1x128xf32> to vector<128x128xf32>
    %88 = arith.mulf %87, %86 : vector<128x128xf32>
    %c0_43 = arith.constant 0 : index
    %c0_44 = arith.constant 0 : index
    %89 = vector.load %arg10[%c0_43, %c0_44] : memref<1x128xf32, #tpu.memory_space<vmem>>, vector<1x128xf32>
    %90 = vector.broadcast %89 : vector<1x128xf32> to vector<128x128xf32>
    %91 = arith.addf %88, %90 : vector<128x128xf32>
    %92 = arith.truncf %91 : vector<128x128xf32> to vector<128x128xbf16>
    %c0_45 = arith.constant 0 : index
    %c0_46 = arith.constant 0 : index
    %93 = vector.load %arg11[%c0_45, %c0_46] : memref<128x512xbf16, #tpu.memory_space<vmem>>, vector<128x512xbf16>
    %cst_47 = arith.constant dense<0.000000e+00> : vector<128x512xf32>
    %94 = tpu.matmul %92, %93, %cst_47 {dimension_numbers = #tpu.dot_dimension_numbers<[1], [0], [0], [1], [0, 0, 1, 1], [], []>} : vector<128x128xbf16>, vector<128x512xbf16>, vector<128x512xf32> -> vector<128x512xf32>
    %c0_48 = arith.constant 0 : index
    %c0_49 = arith.constant 0 : index
    %95 = vector.load %arg12[%c0_48, %c0_49] : memref<1x512xf32, #tpu.memory_space<vmem>>, vector<1x512xf32>
    %96 = vector.broadcast %95 : vector<1x512xf32> to vector<128x512xf32>
    %97 = arith.addf %94, %96 : vector<128x512xf32>
    %cst_50 = arith.constant 0.000000e+00 : f32
    %98 = vector.broadcast %cst_50 : f32 to vector<128x512xf32>
    %99 = arith.maximumf %97, %98 : vector<128x512xf32>
    %100 = arith.truncf %99 : vector<128x512xf32> to vector<128x512xbf16>
    %c0_51 = arith.constant 0 : index
    %c0_52 = arith.constant 0 : index
    %101 = vector.load %arg13[%c0_51, %c0_52] : memref<512x128xbf16, #tpu.memory_space<vmem>>, vector<512x128xbf16>
    %cst_53 = arith.constant dense<0.000000e+00> : vector<128x128xf32>
    %102 = tpu.matmul %100, %101, %cst_53 {dimension_numbers = #tpu.dot_dimension_numbers<[1], [0], [0], [1], [0, 0, 1, 1], [], []>} : vector<128x512xbf16>, vector<512x128xbf16>, vector<128x128xf32> -> vector<128x128xf32>
    %c0_54 = arith.constant 0 : index
    %c0_55 = arith.constant 0 : index
    %103 = vector.load %arg14[%c0_54, %c0_55] : memref<1x128xf32, #tpu.memory_space<vmem>>, vector<1x128xf32>
    %104 = vector.broadcast %103 : vector<1x128xf32> to vector<128x128xf32>
    %105 = arith.addf %102, %104 : vector<128x128xf32>
    %cst_56 = arith.constant dense<0.000000e+00> : vector<128xf32>
    %106 = vector.multi_reduction <add>, %105, %cst_56 [0] : vector<128x128xf32> to vector<128xf32>
    %107 = vector.shape_cast %106 : vector<128xf32> to vector<1x128xf32>
    %108 = vector.shape_cast %107 : vector<1x128xf32> to vector<1x1x128xf32>
    %c0_57 = arith.constant 0 : index
    %c0_58 = arith.constant 0 : index
    %c0_59 = arith.constant 0 : index
    %109 = vector.load %arg17[%c0_57, %c0_58, %c0_59] : memref<1x1x128xf32, #tpu.memory_space<vmem>>, vector<1x1x128xf32>
    tpu.vector_store %arg17[%c0_57, %c0_58, %c0_59], %108 {strides = array<i32>} : memref<1x1x128xf32, #tpu.memory_space<vmem>>, vector<1x1x128xf32>,
    return
  }
  func.func @transform_0(%arg0: i32) -> (i32, i32, i32) {
    %c0_i32 = arith.constant 0 : i32
    %c0_i32_0 = arith.constant 0 : i32
    %c0_i32_1 = arith.constant 0 : i32
    return %arg0, %c0_i32, %c0_i32_0 : i32, i32, i32
  }
  func.func @transform_1(%arg0: i32) -> (i32, i32, i32) {
    %c0_i32 = arith.constant 0 : i32
    %c0_i32_0 = arith.constant 0 : i32
    %c0_i32_1 = arith.constant 0 : i32
    return %arg0, %c0_i32, %c0_i32_0 : i32, i32, i32
  }
  func.func @transform_2(%arg0: i32) -> (i32, i32) {
    %c0_i32 = arith.constant 0 : i32
    %c0_i32_0 = arith.constant 0 : i32
    %c0_i32_1 = arith.constant 0 : i32
    return %c0_i32, %c0_i32_0 : i32, i32
  }
  func.func @transform_3(%arg0: i32) -> (i32, i32) {
    %c0_i32 = arith.constant 0 : i32
    %c0_i32_0 = arith.constant 0 : i32
    %c0_i32_1 = arith.constant 0 : i32
    return %c0_i32, %c0_i32_0 : i32, i32
  }
  func.func @transform_4(%arg0: i32) -> (i32, i32) {
    %c0_i32 = arith.constant 0 : i32
    %c0_i32_0 = arith.constant 0 : i32
    %c0_i32_1 = arith.constant 0 : i32
    return %c0_i32, %c0_i32_0 : i32, i32
  }
  func.func @transform_5(%arg0: i32) -> (i32, i32) {
    %c0_i32 = arith.constant 0 : i32
    %c0_i32_0 = arith.constant 0 : i32
    %c0_i32_1 = arith.constant 0 : i32
    return %c0_i32, %c0_i32_0 : i32, i32
  }
  func.func @transform_6(%arg0: i32) -> (i32, i32) {
    %c0_i32 = arith.constant 0 : i32
    %c0_i32_0 = arith.constant 0 : i32
    %c0_i32_1 = arith.constant 0 : i32
    return %c0_i32, %c0_i32_0 : i32, i32
  }
  func.func @transform_7(%arg0: i32) -> (i32, i32) {
    %c0_i32 = arith.constant 0 : i32
    %c0_i32_0 = arith.constant 0 : i32
    %c0_i32_1 = arith.constant 0 : i32
    return %c0_i32, %c0_i32_0 : i32, i32
  }
  func.func @transform_8(%arg0: i32) -> (i32, i32) {
    %c0_i32 = arith.constant 0 : i32
    %c0_i32_0 = arith.constant 0 : i32
    %c0_i32_1 = arith.constant 0 : i32
    return %c0_i32, %c0_i32_0 : i32, i32
  }
  func.func @transform_9(%arg0: i32) -> (i32, i32) {
    %c0_i32 = arith.constant 0 : i32
    %c0_i32_0 = arith.constant 0 : i32
    %c0_i32_1 = arith.constant 0 : i32
    return %c0_i32, %c0_i32_0 : i32, i32
  }
  func.func @transform_10(%arg0: i32) -> (i32, i32) {
    %c0_i32 = arith.constant 0 : i32
    %c0_i32_0 = arith.constant 0 : i32
    %c0_i32_1 = arith.constant 0 : i32
    return %c0_i32, %c0_i32_0 : i32, i32
  }
  func.func @transform_11(%arg0: i32) -> (i32, i32) {
    %c0_i32 = arith.constant 0 : i32
    %c0_i32_0 = arith.constant 0 : i32
    %c0_i32_1 = arith.constant 0 : i32
    return %c0_i32, %c0_i32_0 : i32, i32
  }
  func.func @transform_12(%arg0: i32) -> (i32, i32) {
    %c0_i32 = arith.constant 0 : i32
    %c0_i32_0 = arith.constant 0 : i32
    %c0_i32_1 = arith.constant 0 : i32
    return %c0_i32, %c0_i32_0 : i32, i32
  }
  func.func @transform_13(%arg0: i32) -> (i32, i32) {
    %c0_i32 = arith.constant 0 : i32
    %c0_i32_0 = arith.constant 0 : i32
    %c0_i32_1 = arith.constant 0 : i32
    return %c0_i32, %c0_i32_0 : i32, i32
  }
  func.func @transform_14(%arg0: i32) -> (i32, i32, i32) {
    %c0_i32 = arith.constant 0 : i32
    %c0_i32_0 = arith.constant 0 : i32
    %c0_i32_1 = arith.constant 0 : i32
    return %arg0, %c0_i32, %c0_i32_0 : i32, i32, i32
  }
  func.func @transform_15(%arg0: i32) -> (i32, i32, i32) {
    %c0_i32 = arith.constant 0 : i32
    %c0_i32_0 = arith.constant 0 : i32
    %c0_i32_1 = arith.constant 0 : i32
    return %arg0, %c0_i32, %c0_i32_0 : i32, i32, i32
  }
  func.func @transform_16(%arg0: i32) -> (i32, i32, i32) {
    %c0_i32 = arith.constant 0 : i32
    %c0_i32_0 = arith.constant 0 : i32
    %c0_i32_1 = arith.constant 0 : i32
    return %arg0, %c0_i32, %c0_i32_0 : i32, i32, i32
  }
}

module attributes {stable_mosaic.version = 11 : i64} {
  func.func @kernel(%arg0: i32, %arg1: memref<2x64x128xf32, #tpu.memory_space<vmem>>, %arg2: memref<2x1x64xi8, #tpu.memory_space<vmem>>, %arg3: memref<1x128xf32, #tpu.memory_space<vmem>>, %arg4: memref<1x128xf32, #tpu.memory_space<vmem>>, %arg5: memref<128x384xbf16, #tpu.memory_space<vmem>>, %arg6: memref<1x384xf32, #tpu.memory_space<vmem>>, %arg7: memref<128x128xbf16, #tpu.memory_space<vmem>>, %arg8: memref<1x128xf32, #tpu.memory_space<vmem>>, %arg9: memref<1x128xf32, #tpu.memory_space<vmem>>, %arg10: memref<1x128xf32, #tpu.memory_space<vmem>>, %arg11: memref<128x512xbf16, #tpu.memory_space<vmem>>, %arg12: memref<1x512xf32, #tpu.memory_space<vmem>>, %arg13: memref<512x128xbf16, #tpu.memory_space<vmem>>, %arg14: memref<1x128xf32, #tpu.memory_space<vmem>>, %arg15: memref<2x64x128xf32, #tpu.memory_space<vmem>>, %arg16: memref<1x1x128xf32, #tpu.memory_space<vmem>>, %arg17: memref<1x1x128xf32, #tpu.memory_space<vmem>>) attributes {dimension_semantics = [#tpu.dimension_semantics<parallel>], iteration_bounds = array<i64: 1>, scalar_prefetch = 0 : i64, scratch_operands = 0 : i64, tpu.core_type = #tpu.core_type<tc>, window_params = [{transform_indices = @transform_0, window_bounds = array<i64: 2, 64, 128>}, {transform_indices = @transform_1, window_bounds = array<i64: 2, 1, 64>}, {pipeline_mode = #tpu.pipeline_mode<synchronous>, transform_indices = @transform_2, window_bounds = array<i64: 1, 128>}, {pipeline_mode = #tpu.pipeline_mode<synchronous>, transform_indices = @transform_3, window_bounds = array<i64: 1, 128>}, {pipeline_mode = #tpu.pipeline_mode<synchronous>, transform_indices = @transform_4, window_bounds = array<i64: 128, 384>}, {pipeline_mode = #tpu.pipeline_mode<synchronous>, transform_indices = @transform_5, window_bounds = array<i64: 1, 384>}, {pipeline_mode = #tpu.pipeline_mode<synchronous>, transform_indices = @transform_6, window_bounds = array<i64: 128, 128>}, {pipeline_mode = #tpu.pipeline_mode<synchronous>, transform_indices = @transform_7, window_bounds = array<i64: 1, 128>}, {pipeline_mode = #tpu.pipeline_mode<synchronous>, transform_indices = @transform_8, window_bounds = array<i64: 1, 128>}, {pipeline_mode = #tpu.pipeline_mode<synchronous>, transform_indices = @transform_9, window_bounds = array<i64: 1, 128>}, {pipeline_mode = #tpu.pipeline_mode<synchronous>, transform_indices = @transform_10, window_bounds = array<i64: 128, 512>}, {pipeline_mode = #tpu.pipeline_mode<synchronous>, transform_indices = @transform_11, window_bounds = array<i64: 1, 512>}, {pipeline_mode = #tpu.pipeline_mode<synchronous>, transform_indices = @transform_12, window_bounds = array<i64: 512, 128>}, {pipeline_mode = #tpu.pipeline_mode<synchronous>, transform_indices = @transform_13, window_bounds = array<i64: 1, 128>}, {transform_indices = @transform_14, window_bounds = array<i64: 2, 64, 128>}, {transform_indices = @transform_15, window_bounds = array<i64: 1, 1, 128>}, {transform_indices = @transform_16, window_bounds = array<i64: 1, 1, 128>}]} {
    %c0 = arith.constant 0 : index
    %c0_0 = arith.constant 0 : index
    %c0_1 = arith.constant 0 : index
    %0 = vector.load %arg1[%c0, %c0_0, %c0_1] : memref<2x64x128xf32, #tpu.memory_space<vmem>>, vector<2x64x128xf32>
    %cst = arith.constant 4.000000e+00 : f32
    %1 = vector.broadcast %cst : f32 to vector<2x64x128xf32>
    %2 = arith.mulf %0, %1 : vector<2x64x128xf32>
    %c0_2 = arith.constant 0 : index
    %c0_3 = arith.constant 0 : index
    %c0_4 = arith.constant 0 : index
    %3 = vector.load %arg15[%c0_2, %c0_3, %c0_4] : memref<2x64x128xf32, #tpu.memory_space<vmem>>, vector<2x64x128xf32>
    tpu.vector_store %arg15[%c0_2, %c0_3, %c0_4], %2 {strides = array<i32>} : memref<2x64x128xf32, #tpu.memory_space<vmem>>, vector<2x64x128xf32>,
    %4 = vector.shape_cast %0 : vector<2x64x128xf32> to vector<128x128xf32>
    %cst_5 = arith.constant dense<0.000000e+00> : vector<128xf32>
    %5 = vector.multi_reduction <add>, %4, %cst_5 [1] : vector<128x128xf32> to vector<128xf32>
    %6 = vector.shape_cast %5 : vector<128xf32> to vector<128x1xf32>
    %cst_6 = arith.constant 1.280000e+02 : f32
    %7 = vector.broadcast %cst_6 : f32 to vector<128x1xf32>
    %8 = arith.divf %6, %7 : vector<128x1xf32>
    %9 = vector.broadcast %8 : vector<128x1xf32> to vector<128x128xf32>
    %10 = arith.subf %4, %9 : vector<128x128xf32>
    %11 = arith.mulf %10, %10 : vector<128x128xf32>
    %cst_7 = arith.constant dense<0.000000e+00> : vector<128xf32>
    %12 = vector.multi_reduction <add>, %11, %cst_7 [1] : vector<128x128xf32> to vector<128xf32>
    %13 = vector.shape_cast %12 : vector<128xf32> to vector<128x1xf32>
    %cst_8 = arith.constant 0.00787401571 : f32
    %14 = vector.broadcast %cst_8 : f32 to vector<128x1xf32>
    %15 = arith.mulf %13, %14 : vector<128x1xf32>
    %16 = math.sqrt %15 : vector<128x1xf32>
    %cst_9 = arith.constant 9.99999997E-7 : f32
    %17 = vector.broadcast %cst_9 : f32 to vector<128x1xf32>
    %18 = arith.addf %16, %17 : vector<128x1xf32>
    %19 = tpu.reciprocal %18 {approx = true} : vector<128x1xf32> -> vector<128x1xf32>
    %c0_10 = arith.constant 0 : index
    %c0_11 = arith.constant 0 : index
    %20 = vector.load %arg3[%c0_10, %c0_11] : memref<1x128xf32, #tpu.memory_space<vmem>>, vector<1x128xf32>
    %21 = vector.broadcast %19 : vector<128x1xf32> to vector<128x128xf32>
    %22 = arith.mulf %10, %21 : vector<128x128xf32>
    %23 = vector.broadcast %20 : vector<1x128xf32> to vector<128x128xf32>
    %24 = arith.mulf %23, %22 : vector<128x128xf32>
    %c0_12 = arith.constant 0 : index
    %c0_13 = arith.constant 0 : index
    %25 = vector.load %arg4[%c0_12, %c0_13] : memref<1x128xf32, #tpu.memory_space<vmem>>, vector<1x128xf32>
    %26 = vector.broadcast %25 : vector<1x128xf32> to vector<128x128xf32>
    %27 = arith.addf %24, %26 : vector<128x128xf32>
    %28 = arith.truncf %27 : vector<128x128xf32> to vector<128x128xbf16>
    %c0_14 = arith.constant 0 : index
    %c0_15 = arith.constant 0 : index
    %29 = vector.load %arg5[%c0_14, %c0_15] : memref<128x384xbf16, #tpu.memory_space<vmem>>, vector<128x384xbf16>
    %cst_16 = arith.constant dense<0.000000e+00> : vector<128x384xf32>
    %30 = tpu.matmul %28, %29, %cst_16 {dimension_numbers = #tpu.dot_dimension_numbers<[1], [0], [0], [1], [0, 0, 1, 1], [], []>} : vector<128x128xbf16>, vector<128x384xbf16>, vector<128x384xf32> -> vector<128x384xf32>
    %c0_17 = arith.constant 0 : index
    %c0_18 = arith.constant 0 : index
    %31 = vector.load %arg6[%c0_17, %c0_18] : memref<1x384xf32, #tpu.memory_space<vmem>>, vector<1x384xf32>
    %32 = vector.broadcast %31 : vector<1x384xf32> to vector<128x384xf32>
    %33 = arith.addf %30, %32 : vector<128x384xf32>
    %34 = vector.extract_strided_slice %33 {offsets = [0, 0], sizes = [128, 128], strides = [1, 1]} : vector<128x384xf32> to vector<128x128xf32>
    %35 = vector.shape_cast %34 : vector<128x128xf32> to vector<2x64x128xf32>
    %36 = vector.extract_strided_slice %33 {offsets = [0, 128], sizes = [128, 128], strides = [1, 1]} : vector<128x384xf32> to vector<128x128xf32>
    %37 = vector.shape_cast %36 : vector<128x128xf32> to vector<2x64x128xf32>
    %38 = vector.extract_strided_slice %33 {offsets = [0, 256], sizes = [128, 128], strides = [1, 1]} : vector<128x384xf32> to vector<128x128xf32>
    %39 = vector.shape_cast %38 : vector<128x128xf32> to vector<2x64x128xf32>
    %40 = arith.truncf %35 : vector<2x64x128xf32> to vector<2x64x128xbf16>
    %41 = arith.truncf %37 : vector<2x64x128xf32> to vector<2x64x128xbf16>
    "tpu.trace_start"() <{level = 10 : i32, message = "bqd,bkd->bqk"}> : () -> ()
    %cst_19 = arith.constant dense<0.000000e+00> : vector<2x64x64xf32>
    %42 = tpu.matmul %40, %41, %cst_19 {dimension_numbers = #tpu.dot_dimension_numbers<[2], [2], [1], [1], [0, 0, 0, 1, 1, 1], [0], [0]>} : vector<2x64x128xbf16>, vector<2x64x128xbf16>, vector<2x64x64xf32> -> vector<2x64x64xf32>
    "tpu.trace_stop"() : () -> ()
    %cst_20 = arith.constant 0.0883883461 : f32
    %43 = vector.broadcast %cst_20 : f32 to vector<2x64x64xf32>
    %44 = arith.mulf %42, %43 : vector<2x64x64xf32>
    %c0_21 = arith.constant 0 : index
    %c0_22 = arith.constant 0 : index
    %c0_23 = arith.constant 0 : index
    %45 = vector.load %arg2[%c0_21, %c0_22, %c0_23] : memref<2x1x64xi8, #tpu.memory_space<vmem>>, vector<2x1x64xi8>
    %46 = arith.sitofp %45 : vector<2x1x64xi8> to vector<2x1x64xf32>
    %cst_24 = arith.constant 0.000000e+00 : f32
    %47 = vector.broadcast %cst_24 : f32 to vector<2x1x64xf32>
    %48 = arith.cmpf oeq, %46, %47 : vector<2x1x64xf32>
    %cst_25 = arith.constant -1.000000e+09 : f32
    %49 = vector.shape_cast %48 : vector<2x1x64xi1> to vector<2x1x64xi1>
    %50 = vector.broadcast %49 : vector<2x1x64xi1> to vector<2x64x64xi1>
    %51 = vector.broadcast %cst_25 : f32 to vector<2x64x64xf32>
    %52 = arith.select %50, %51, %44 : vector<2x64x64xi1>, vector<2x64x64xf32>
    %cst_26 = arith.constant dense<0xFF800000> : vector<2x64xf32>
    %53 = vector.multi_reduction <maximumf>, %52, %cst_26 [2] : vector<2x64x64xf32> to vector<2x64xf32>
    %54 = vector.shape_cast %53 : vector<2x64xf32> to vector<2x64x1xf32>
    %55 = vector.broadcast %54 : vector<2x64x1xf32> to vector<2x64x64xf32>
    %56 = arith.subf %52, %55 : vector<2x64x64xf32>
    %57 = math.exp %56 : vector<2x64x64xf32>
    %cst_27 = arith.constant dense<0.000000e+00> : vector<2x64xf32>
    %58 = vector.multi_reduction <add>, %57, %cst_27 [2] : vector<2x64x64xf32> to vector<2x64xf32>
    %59 = vector.shape_cast %58 : vector<2x64xf32> to vector<2x64x1xf32>
    %60 = tpu.reciprocal %59 {approx = true} : vector<2x64x1xf32> -> vector<2x64x1xf32>
    %61 = vector.broadcast %60 : vector<2x64x1xf32> to vector<2x64x64xf32>
    %62 = arith.mulf %57, %61 : vector<2x64x64xf32>
    %63 = arith.truncf %62 : vector<2x64x64xf32> to vector<2x64x64xbf16>
    %64 = arith.truncf %39 : vector<2x64x128xf32> to vector<2x64x128xbf16>
    "tpu.trace_start"() <{level = 10 : i32, message = "bqk,bkd->bqd"}> : () -> ()
    %cst_28 = arith.constant dense<0.000000e+00> : vector<2x64x128xf32>
    %65 = tpu.matmul %63, %64, %cst_28 {dimension_numbers = #tpu.dot_dimension_numbers<[2], [1], [1], [2], [0, 0, 0, 1, 1, 2], [0], [0]>} : vector<2x64x64xbf16>, vector<2x64x128xbf16>, vector<2x64x128xf32> -> vector<2x64x128xf32>
    "tpu.trace_stop"() : () -> ()
    %66 = vector.shape_cast %65 : vector<2x64x128xf32> to vector<128x128xf32>
    %67 = arith.truncf %66 : vector<128x128xf32> to vector<128x128xbf16>
    %c0_29 = arith.constant 0 : index
    %c0_30 = arith.constant 0 : index
    %68 = vector.load %arg7[%c0_29, %c0_30] : memref<128x128xbf16, #tpu.memory_space<vmem>>, vector<128x128xbf16>
    %cst_31 = arith.constant dense<0.000000e+00> : vector<128x128xf32>
    %69 = tpu.matmul %67, %68, %cst_31 {dimension_numbers = #tpu.dot_dimension_numbers<[1], [0], [0], [1], [0, 0, 1, 1], [], []>} : vector<128x128xbf16>, vector<128x128xbf16>, vector<128x128xf32> -> vector<128x128xf32>
    %c0_32 = arith.constant 0 : index
    %c0_33 = arith.constant 0 : index
    %70 = vector.load %arg8[%c0_32, %c0_33] : memref<1x128xf32, #tpu.memory_space<vmem>>, vector<1x128xf32>
    %71 = vector.broadcast %70 : vector<1x128xf32> to vector<128x128xf32>
    %72 = arith.addf %69, %71 : vector<128x128xf32>
    %cst_34 = arith.constant dense<0.000000e+00> : vector<128xf32>
    %73 = vector.multi_reduction <add>, %72, %cst_34 [0] : vector<128x128xf32> to vector<128xf32>
    %74 = vector.shape_cast %73 : vector<128xf32> to vector<1x128xf32>
    %75 = vector.shape_cast %74 : vector<1x128xf32> to vector<1x1x128xf32>
    %c0_35 = arith.constant 0 : index
    %c0_36 = arith.constant 0 : index
    %c0_37 = arith.constant 0 : index
    %76 = vector.load %arg16[%c0_35, %c0_36, %c0_37] : memref<1x1x128xf32, #tpu.memory_space<vmem>>, vector<1x1x128xf32>
    tpu.vector_store %arg16[%c0_35, %c0_36, %c0_37], %75 {strides = array<i32>} : memref<1x1x128xf32, #tpu.memory_space<vmem>>, vector<1x1x128xf32>,
    %cst_38 = arith.constant 2.000000e+00 : f32
    %77 = vector.broadcast %cst_38 : f32 to vector<128x1xf32>
    %78 = arith.mulf %77, %16 : vector<128x1xf32>
    %cst_39 = arith.constant 9.99999997E-7 : f32
    %79 = vector.broadcast %cst_39 : f32 to vector<128x1xf32>
    %80 = arith.addf %78, %79 : vector<128x1xf32>
    %81 = tpu.reciprocal %80 {approx = true} : vector<128x1xf32> -> vector<128x1xf32>
    %c0_40 = arith.constant 0 : index
    %c0_41 = arith.constant 0 : index
    %82 = vector.load %arg9[%c0_40, %c0_41] : memref<1x128xf32, #tpu.memory_space<vmem>>, vector<1x128xf32>
    %cst_42 = arith.constant 2.000000e+00 : f32
    %83 = vector.broadcast %cst_42 : f32 to vector<128x128xf32>
    %84 = arith.mulf %83, %10 : vector<128x128xf32>
    %85 = vector.broadcast %81 : vector<128x1xf32> to vector<128x128xf32>
    %86 = arith.mulf %84, %85 : vector<128x128xf32>
    %87 = vector.broadcast %82 : vector<1x128xf32> to vector<128x128xf32>
    %88 = arith.mulf %87, %86 : vector<128x128xf32>
    %c0_43 = arith.constant 0 : index
    %c0_44 = arith.constant 0 : index
    %89 = vector.load %arg10[%c0_43, %c0_44] : memref<1x128xf32, #tpu.memory_space<vmem>>, vector<1x128xf32>
    %90 = vector.broadcast %89 : vector<1x128xf32> to vector<128x128xf32>
    %91 = arith.addf %88, %90 : vector<128x128xf32>
    %92 = arith.truncf %91 : vector<128x128xf32> to vector<128x128xbf16>
    %c0_45 = arith.constant 0 : index
    %c0_46 = arith.constant 0 : index
    %93 = vector.load %arg11[%c0_45, %c0_46] : memref<128x512xbf16, #tpu.memory_space<vmem>>, vector<128x512xbf16>
    %cst_47 = arith.constant dense<0.000000e+00> : vector<128x512xf32>
    %94 = tpu.matmul %92, %93, %cst_47 {dimension_numbers = #tpu.dot_dimension_numbers<[1], [0], [0], [1], [0, 0, 1, 1], [], []>} : vector<128x128xbf16>, vector<128x512xbf16>, vector<128x512xf32> -> vector<128x512xf32>
    %c0_48 = arith.constant 0 : index
    %c0_49 = arith.constant 0 : index
    %95 = vector.load %arg12[%c0_48, %c0_49] : memref<1x512xf32, #tpu.memory_space<vmem>>, vector<1x512xf32>
    %96 = vector.broadcast %95 : vector<1x512xf32> to vector<128x512xf32>
    %97 = arith.addf %94, %96 : vector<128x512xf32>
    %cst_50 = arith.constant 0.000000e+00 : f32
    %98 = vector.broadcast %cst_50 : f32 to vector<128x512xf32>
    %99 = arith.maximumf %97, %98 : vector<128x512xf32>
    %100 = arith.truncf %99 : vector<128x512xf32> to vector<128x512xbf16>
    %c0_51 = arith.constant 0 : index
    %c0_52 = arith.constant 0 : index
    %101 = vector.load %arg13[%c0_51, %c0_52] : memref<512x128xbf16, #tpu.memory_space<vmem>>, vector<512x128xbf16>
    %cst_53 = arith.constant dense<0.000000e+00> : vector<128x128xf32>
    %102 = tpu.matmul %100, %101, %cst_53 {dimension_numbers = #tpu.dot_dimension_numbers<[1], [0], [0], [1], [0, 0, 1, 1], [], []>} : vector<128x512xbf16>, vector<512x128xbf16>, vector<128x128xf32> -> vector<128x128xf32>
    %c0_54 = arith.constant 0 : index
    %c0_55 = arith.constant 0 : index
    %103 = vector.load %arg14[%c0_54, %c0_55] : memref<1x128xf32, #tpu.memory_space<vmem>>, vector<1x128xf32>
    %104 = vector.broadcast %103 : vector<1x128xf32> to vector<128x128xf32>
    %105 = arith.addf %102, %104 : vector<128x128xf32>
    %cst_56 = arith.constant dense<0.000000e+00> : vector<128xf32>
    %106 = vector.multi_reduction <add>, %105, %cst_56 [0] : vector<128x128xf32> to vector<128xf32>
    %107 = vector.shape_cast %106 : vector<128xf32> to vector<1x128xf32>
    %108 = vector.shape_cast %107 : vector<1x128xf32> to vector<1x1x128xf32>
    %c0_57 = arith.constant 0 : index
    %c0_58 = arith.constant 0 : index
    %c0_59 = arith.constant 0 : index
    %109 = vector.load %arg17[%c0_57, %c0_58, %c0_59] : memref<1x1x128xf32, #tpu.memory_space<vmem>>, vector<1x1x128xf32>
    tpu.vector_store %arg17[%c0_57, %c0_58, %c0_59], %108 {strides = array<i32>} : memref<1x1x128xf32, #tpu.memory_space<vmem>>, vector<1x1x128xf32>,
    return
  }
  func.func @transform_0(%arg0: i32) -> (i32, i32, i32) {
    %c0_i32 = arith.constant 0 : i32
    %c0_i32_0 = arith.constant 0 : i32
    %c0_i32_1 = arith.constant 0 : i32
    return %arg0, %c0_i32, %c0_i32_0 : i32, i32, i32
  }
  func.func @transform_1(%arg0: i32) -> (i32, i32, i32) {
    %c0_i32 = arith.constant 0 : i32
    %c0_i32_0 = arith.constant 0 : i32
    %c0_i32_1 = arith.constant 0 : i32
    return %arg0, %c0_i32, %c0_i32_0 : i32, i32, i32
  }
  func.func @transform_2(%arg0: i32) -> (i32, i32) {
    %c0_i32 = arith.constant 0 : i32
    %c0_i32_0 = arith.constant 0 : i32
    %c0_i32_1 = arith.constant 0 : i32
    return %c0_i32, %c0_i32_0 : i32, i32
  }
  func.func @transform_3(%arg0: i32) -> (i32, i32) {
    %c0_i32 = arith.constant 0 : i32
    %c0_i32_0 = arith.constant 0 : i32
    %c0_i32_1 = arith.constant 0 : i32
    return %c0_i32, %c0_i32_0 : i32, i32
  }
  func.func @transform_4(%arg0: i32) -> (i32, i32) {
    %c0_i32 = arith.constant 0 : i32
    %c0_i32_0 = arith.constant 0 : i32
    %c0_i32_1 = arith.constant 0 : i32
    return %c0_i32, %c0_i32_0 : i32, i32
  }
  func.func @transform_5(%arg0: i32) -> (i32, i32) {
    %c0_i32 = arith.constant 0 : i32
    %c0_i32_0 = arith.constant 0 : i32
    %c0_i32_1 = arith.constant 0 : i32
    return %c0_i32, %c0_i32_0 : i32, i32
  }
  func.func @transform_6(%arg0: i32) -> (i32, i32) {
    %c0_i32 = arith.constant 0 : i32
    %c0_i32_0 = arith.constant 0 : i32
    %c0_i32_1 = arith.constant 0 : i32
    return %c0_i32, %c0_i32_0 : i32, i32
  }
  func.func @transform_7(%arg0: i32) -> (i32, i32) {
    %c0_i32 = arith.constant 0 : i32
    %c0_i32_0 = arith.constant 0 : i32
    %c0_i32_1 = arith.constant 0 : i32
    return %c0_i32, %c0_i32_0 : i32, i32
  }
  func.func @transform_8(%arg0: i32) -> (i32, i32) {
    %c0_i32 = arith.constant 0 : i32
    %c0_i32_0 = arith.constant 0 : i32
    %c0_i32_1 = arith.constant 0 : i32
    return %c0_i32, %c0_i32_0 : i32, i32
  }
  func.func @transform_9(%arg0: i32) -> (i32, i32) {
    %c0_i32 = arith.constant 0 : i32
    %c0_i32_0 = arith.constant 0 : i32
    %c0_i32_1 = arith.constant 0 : i32
    return %c0_i32, %c0_i32_0 : i32, i32
  }
  func.func @transform_10(%arg0: i32) -> (i32, i32) {
    %c0_i32 = arith.constant 0 : i32
    %c0_i32_0 = arith.constant 0 : i32
    %c0_i32_1 = arith.constant 0 : i32
    return %c0_i32, %c0_i32_0 : i32, i32
  }
  func.func @transform_11(%arg0: i32) -> (i32, i32) {
    %c0_i32 = arith.constant 0 : i32
    %c0_i32_0 = arith.constant 0 : i32
    %c0_i32_1 = arith.constant 0 : i32
    return %c0_i32, %c0_i32_0 : i32, i32
  }
  func.func @transform_12(%arg0: i32) -> (i32, i32) {
    %c0_i32 = arith.constant 0 : i32
    %c0_i32_0 = arith.constant 0 : i32
    %c0_i32_1 = arith.constant 0 : i32
    return %c0_i32, %c0_i32_0 : i32, i32
  }
  func.func @transform_13(%arg0: i32) -> (i32, i32) {
    %c0_i32 = arith.constant 0 : i32
    %c0_i32_0 = arith.constant 0 : i32
    %c0_i32_1 = arith.constant 0 : i32
    return %c0_i32, %c0_i32_0 : i32, i32
  }
  func.func @transform_14(%arg0: i32) -> (i32, i32, i32) {
    %c0_i32 = arith.constant 0 : i32
    %c0_i32_0 = arith.constant 0 : i32
    %c0_i32_1 = arith.constant 0 : i32
    return %arg0, %c0_i32, %c0_i32_0 : i32, i32, i32
  }
  func.func @transform_15(%arg0: i32) -> (i32, i32, i32) {
    %c0_i32 = arith.constant 0 : i32
    %c0_i32_0 = arith.constant 0 : i32
    %c0_i32_1 = arith.constant 0 : i32
    return %arg0, %c0_i32, %c0_i32_0 : i32, i32, i32
  }
  func.func @transform_16(%arg0: i32) -> (i32, i32, i32) {
    %c0_i32 = arith.constant 0 : i32
    %c0_i32_0 = arith.constant 0 : i32
    %c0_i32_1 = arith.constant 0 : i32
    return %arg0, %c0_i32, %c0_i32_0 : i32, i32, i32
  }
}

</mosaic_0001>

<llo_original>
// kernel: _lambda_.1
$region0: #{_lambda_.1}
  #allocation0 [shape = 'u32[]', space=smem, size = 0x4, offset = 0x4, fixed_abs, tag = 'smem constant byte address 0x4 - core index']
  #allocation1 [shape = 'u32[144,128]{1,0:T(1,128)}', space=vmem, size = 0x12000, scoped, tag = 'internal scratch']
  %s0 = inlined_call_operand.vmem [shape: f32[2,64,128], index: 0, kind: input, shape index: {}]
  %s1 = inlined_call_operand.vmem [shape: s8[2,1,64], index: 1, kind: input, shape index: {}]
  %s2 = inlined_call_operand.vmem [shape: f32[1,128], index: 2, kind: input, shape index: {}]
  %s3 = inlined_call_operand.vmem [shape: f32[1,128], index: 3, kind: input, shape index: {}]
  %s4 = inlined_call_operand.vmem [shape: bf16[128,384], index: 4, kind: input, shape index: {}]
  %s5 = inlined_call_operand.vmem [shape: f32[1,384], index: 5, kind: input, shape index: {}]
  %s6 = inlined_call_operand.vmem [shape: bf16[128,128], index: 6, kind: input, shape index: {}]
  %s7 = inlined_call_operand.vmem [shape: f32[1,128], index: 7, kind: input, shape index: {}]
  %s8 = inlined_call_operand.vmem [shape: f32[1,128], index: 8, kind: input, shape index: {}]
  %s9 = inlined_call_operand.vmem [shape: f32[1,128], index: 9, kind: input, shape index: {}]
  %s10 = inlined_call_operand.vmem [shape: bf16[128,512], index: 10, kind: input, shape index: {}]
  %s11 = inlined_call_operand.vmem [shape: f32[1,512], index: 11, kind: input, shape index: {}]
  %s12 = inlined_call_operand.vmem [shape: bf16[512,128], index: 12, kind: input, shape index: {}]
  %s13 = inlined_call_operand.vmem [shape: f32[1,128], index: 13, kind: input, shape index: {}]
  %s14 = inlined_call_operand.hbm [shape: f32[2,64,128], index: 14, kind: output, shape index: {0}]
  %s15 = inlined_call_operand.hbm [shape: f32[1,1,128], index: 15, kind: output, shape index: {1}]
  %s16 = inlined_call_operand.hbm [shape: f32[1,1,128], index: 16, kind: output, shape index: {2}]
  %17 = xla_tuple %s14, %s15, %s16
  %s18 = sld [smem:[#allocation0]]
  $region82: #{_lambda_.1} parent=0
    _
  %s20 = ssub.s32 1, %s18
  %s21 = scalar_select 0, %s20, %s18
  $region1: #{_lambda_.1} parent=0
    #allocation2 [shape = 'u8[65536]{0}', space=vmem, size = 0x10000, scoped, tag = 'output window, operand 0, single buffered']
    #allocation3 [shape = 's32[1]{0}', space=sflag, size = 0x4, scoped, tag = 'scoped memory for _lambda_.1']
    #allocation4 [shape = 'u8[512]{0}', space=vmem, size = 0x400, scoped, tag = 'output window, operand 1, single buffered']
    #allocation5 [shape = 's32[1]{0}', space=sflag, size = 0x4, scoped, tag = 'scoped memory for _lambda_.1']
    #allocation6 [shape = 'u8[512]{0}', space=vmem, size = 0x400, scoped, tag = 'output window, operand 2, single buffered']
    %22 = vsyncpa [#allocation3], 0
    %23 = vsyncpa [#allocation5], 0
    // Predicated region
    $region2: #{_lambda_.1} parent=1 // pred_check
      _
    $region3: #{_lambda_.1} parent=1 // pred_check_branch
      %25 = sbr.rel (0) target = $region5
    $region4: #{_lambda_.1} parent=1 // pred_region
      _
    $region5: #{_lambda_.1} parent=1 // pred_fallthru
      _
    // Predicated region
    $region6: #{_lambda_.1} parent=1 // pred_check
      _
    $region7: #{_lambda_.1} parent=1 // pred_check_branch
      %27 = sbr.rel (0) target = $region9
    $region8: #{_lambda_.1} parent=1 // pred_region
      _
    $region9: #{_lambda_.1} parent=1 // pred_fallthru
      _
    // Predicated region
    $region10: #{_lambda_.1} parent=1 // pred_check
      _
    $region11: #{_lambda_.1} parent=1 // pred_check_branch
      %29 = sbr.rel (0) target = $region13
    $region12: #{_lambda_.1} parent=1 // pred_region
      _
    $region13: #{_lambda_.1} parent=1 // pred_fallthru
      _
    // Predicated region
    $region14: #{_lambda_.1} parent=1 // pred_check
      _
    $region15: #{_lambda_.1} parent=1 // pred_check_branch
      %31 = sbr.rel (0) target = $region17
    $region16: #{_lambda_.1} parent=1 // pred_region
      _
    $region17: #{_lambda_.1} parent=1 // pred_fallthru
      _
    // Predicated region
    $region18: #{_lambda_.1} parent=1 // pred_check
      _
    $region19: #{_lambda_.1} parent=1 // pred_check_branch
      %33 = sbr.rel (0) target = $region21
    $region20: #{_lambda_.1} parent=1 // pred_region
      _
    $region21: #{_lambda_.1} parent=1 // pred_fallthru
      _
    // Predicated region
    $region22: #{_lambda_.1} parent=1 // pred_check
      _
    $region23: #{_lambda_.1} parent=1 // pred_check_branch
      %35 = sbr.rel (0) target = $region25
    $region24: #{_lambda_.1} parent=1 // pred_region
      _
    $region25: #{_lambda_.1} parent=1 // pred_fallthru
      _
    // Predicated region
    $region26: #{_lambda_.1} parent=1 // pred_check
      _
    $region27: #{_lambda_.1} parent=1 // pred_check_branch
      %37 = sbr.rel (0) target = $region29
    $region28: #{_lambda_.1} parent=1 // pred_region
      _
    $region29: #{_lambda_.1} parent=1 // pred_fallthru
      _
    // Predicated region
    $region30: #{_lambda_.1} parent=1 // pred_check
      _
    $region31: #{_lambda_.1} parent=1 // pred_check_branch
      %39 = sbr.rel (0) target = $region33
    $region32: #{_lambda_.1} parent=1 // pred_region
      _
    $region33: #{_lambda_.1} parent=1 // pred_fallthru
      _
    // Predicated region
    $region34: #{_lambda_.1} parent=1 // pred_check
      _
    $region35: #{_lambda_.1} parent=1 // pred_check_branch
      %41 = sbr.rel (0) target = $region37
    $region36: #{_lambda_.1} parent=1 // pred_region
      _
    $region37: #{_lambda_.1} parent=1 // pred_fallthru
      _
    // Predicated region
    $region38: #{_lambda_.1} parent=1 // pred_check
      _
    $region39: #{_lambda_.1} parent=1 // pred_check_branch
      %43 = sbr.rel (0) target = $region41
    $region40: #{_lambda_.1} parent=1 // pred_region
      _
    $region41: #{_lambda_.1} parent=1 // pred_fallthru
      _
    // Predicated region
    $region42: #{_lambda_.1} parent=1 // pred_check
      _
    $region43: #{_lambda_.1} parent=1 // pred_check_branch
      %45 = sbr.rel (0) target = $region45
    $region44: #{_lambda_.1} parent=1 // pred_region
      _
    $region45: #{_lambda_.1} parent=1 // pred_fallthru
      _
    // Predicated region
    $region46: #{_lambda_.1} parent=1 // pred_check
      _
    $region47: #{_lambda_.1} parent=1 // pred_check_branch
      %47 = sbr.rel (0) target = $region49
    $region48: #{_lambda_.1} parent=1 // pred_region
      _
    $region49: #{_lambda_.1} parent=1 // pred_fallthru
      _
    // Predicated region
    $region50: #{_lambda_.1} parent=1 // pred_check
      _
    $region51: #{_lambda_.1} parent=1 // pred_check_branch
      %49 = sbr.rel (0) target = $region53
    $region52: #{_lambda_.1} parent=1 // pred_region
      _
    $region53: #{_lambda_.1} parent=1 // pred_fallthru
      _
    // Predicated region
    $region54: #{_lambda_.1} parent=1 // pred_check
      _
    $region55: #{_lambda_.1} parent=1 // pred_check_branch
      %51 = sbr.rel (0) target = $region57
    $region56: #{_lambda_.1} parent=1 // pred_region
      _
    $region57: #{_lambda_.1} parent=1 // pred_fallthru
      _
    %v53 = vld [vmem:[%s0] sm:$0xff]
    %v54 = vld [vmem:[%s0 + $0x8] sm:$0xff]
    %v55 = vld [vmem:[%s0 + $0x10] sm:$0xff]
    %v56 = vld [vmem:[%s0 + $0x18] sm:$0xff]
    %v57 = vld [vmem:[%s0 + $0x20] sm:$0xff]
    %v58 = vld [vmem:[%s0 + $0x28] sm:$0xff]
    %v59 = vld [vmem:[%s0 + $0x30] sm:$0xff]
    %v60 = vld [vmem:[%s0 + $0x38] sm:$0xff]
    %v61 = vld [vmem:[%s0 + $0x40] sm:$0xff]
    %v62 = vld [vmem:[%s0 + $0x48] sm:$0xff]
    %v63 = vld [vmem:[%s0 + $0x50] sm:$0xff]
    %v64 = vld [vmem:[%s0 + $0x58] sm:$0xff]
    %v65 = vld [vmem:[%s0 + $0x60] sm:$0xff]
    %v66 = vld [vmem:[%s0 + $0x68] sm:$0xff]
    %v67 = vld [vmem:[%s0 + $0x70] sm:$0xff]
    %v68 = vld [vmem:[%s0 + $0x78] sm:$0xff]
    %v69 = vmul.f32 %v53, 4.0
    %v70 = vmul.f32 %v54, 4.0
    %v71 = vmul.f32 %v55, 4.0
    %v72 = vmul.f32 %v56, 4.0
    %v73 = vmul.f32 %v57, 4.0
    %v74 = vmul.f32 %v58, 4.0
    %v75 = vmul.f32 %v59, 4.0
    %v76 = vmul.f32 %v60, 4.0
    %v77 = vmul.f32 %v61, 4.0
    %v78 = vmul.f32 %v62, 4.0
    %v79 = vmul.f32 %v63, 4.0
    %v80 = vmul.f32 %v64, 4.0
    %v81 = vmul.f32 %v65, 4.0
    %v82 = vmul.f32 %v66, 4.0
    %v83 = vmul.f32 %v67, 4.0
    %v84 = vmul.f32 %v68, 4.0
    %85 = vst [vmem:[#allocation2] sm:$0xff] %v69
    %86 = vst [vmem:[#allocation2 + $0x8] sm:$0xff] %v70
    %87 = vst [vmem:[#allocation2 + $0x10] sm:$0xff] %v71
    %88 = vst [vmem:[#allocation2 + $0x18] sm:$0xff] %v72
    %89 = vst [vmem:[#allocation2 + $0x20] sm:$0xff] %v73
    %90 = vst [vmem:[#allocation2 + $0x28] sm:$0xff] %v74
    %91 = vst [vmem:[#allocation2 + $0x30] sm:$0xff] %v75
    %92 = vst [vmem:[#allocation2 + $0x38] sm:$0xff] %v76
    %93 = vst [vmem:[#allocation2 + $0x40] sm:$0xff] %v77
    %94 = vst [vmem:[#allocation2 + $0x48] sm:$0xff] %v78
    %95 = vst [vmem:[#allocation2 + $0x50] sm:$0xff] %v79
    %96 = vst [vmem:[#allocation2 + $0x58] sm:$0xff] %v80
    %97 = vst [vmem:[#allocation2 + $0x60] sm:$0xff] %v81
    %98 = vst [vmem:[#allocation2 + $0x68] sm:$0xff] %v82
    %99 = vst [vmem:[#allocation2 + $0x70] sm:$0xff] %v83
    %100 = vst [vmem:[#allocation2 + $0x78] sm:$0xff] %v84
    %101 = vadd.xlane.f32.xlu0 %v53
    %v102 = vpop.xlane.xlu0 %101
    %103 = vadd.xlane.f32.xlu0 %v54
    %v104 = vpop.xlane.xlu0 %103
    %105 = vadd.xlane.f32.xlu0 %v55
    %v106 = vpop.xlane.xlu0 %105
    %107 = vadd.xlane.f32.xlu0 %v56
    %v108 = vpop.xlane.xlu0 %107
    %109 = vadd.xlane.f32.xlu0 %v57
    %v110 = vpop.xlane.xlu0 %109
    %111 = vadd.xlane.f32.xlu0 %v58
    %v112 = vpop.xlane.xlu0 %111
    %113 = vadd.xlane.f32.xlu0 %v59
    %v114 = vpop.xlane.xlu0 %113
    %115 = vadd.xlane.f32.xlu0 %v60
    %v116 = vpop.xlane.xlu0 %115
    %117 = vadd.xlane.f32.xlu0 %v61
    %v118 = vpop.xlane.xlu0 %117
    %119 = vadd.xlane.f32.xlu0 %v62
    %v120 = vpop.xlane.xlu0 %119
    %121 = vadd.xlane.f32.xlu0 %v63
    %v122 = vpop.xlane.xlu0 %121
    %123 = vadd.xlane.f32.xlu0 %v64
    %v124 = vpop.xlane.xlu0 %123
    %125 = vadd.xlane.f32.xlu0 %v65
    %v126 = vpop.xlane.xlu0 %125
    %127 = vadd.xlane.f32.xlu0 %v66
    %v128 = vpop.xlane.xlu0 %127
    %129 = vadd.xlane.f32.xlu0 %v67
    %v130 = vpop.xlane.xlu0 %129
    %131 = vadd.xlane.f32.xlu0 %v68
    %v132 = vpop.xlane.xlu0 %131
    %v133 = vrcp.pop 128.0
    %v134 = vmul.f32 %v102, %v133
    %v135 = vmul.f32 %v104, %v133
    %v136 = vmul.f32 %v106, %v133
    %v137 = vmul.f32 %v108, %v133
    %v138 = vmul.f32 %v110, %v133
    %v139 = vmul.f32 %v112, %v133
    %v140 = vmul.f32 %v114, %v133
    %v141 = vmul.f32 %v116, %v133
    %v142 = vmul.f32 %v118, %v133
    %v143 = vmul.f32 %v120, %v133
    %v144 = vmul.f32 %v122, %v133
    %v145 = vmul.f32 %v124, %v133
    %v146 = vmul.f32 %v126, %v133
    %v147 = vmul.f32 %v128, %v133
    %v148 = vmul.f32 %v130, %v133
    %v149 = vmul.f32 %v132, %v133
    %v150 = vsub.f32 %v53, %v134
    %v151 = vsub.f32 %v54, %v135
    %v152 = vsub.f32 %v55, %v136
    %v153 = vsub.f32 %v56, %v137
    %v154 = vsub.f32 %v57, %v138
    %v155 = vsub.f32 %v58, %v139
    %v156 = vsub.f32 %v59, %v140
    %v157 = vsub.f32 %v60, %v141
    %v158 = vsub.f32 %v61, %v142
    %v159 = vsub.f32 %v62, %v143
    %v160 = vsub.f32 %v63, %v144
    %v161 = vsub.f32 %v64, %v145
    %v162 = vsub.f32 %v65, %v146
    %v163 = vsub.f32 %v66, %v147
    %v164 = vsub.f32 %v67, %v148
    %v165 = vsub.f32 %v68, %v149
    %v166 = vmul.f32 %v150, %v150
    %v167 = vmul.f32 %v151, %v151
    %v168 = vmul.f32 %v152, %v152
    %v169 = vmul.f32 %v153, %v153
    %v170 = vmul.f32 %v154, %v154
    %v171 = vmul.f32 %v155, %v155
    %v172 = vmul.f32 %v156, %v156
    %v173 = vmul.f32 %v157, %v157
    %v174 = vmul.f32 %v158, %v158
    %v175 = vmul.f32 %v159, %v159
    %v176 = vmul.f32 %v160, %v160
    %v177 = vmul.f32 %v161, %v161
    %v178 = vmul.f32 %v162, %v162
    %v179 = vmul.f32 %v163, %v163
    %v180 = vmul.f32 %v164, %v164
    %v181 = vmul.f32 %v165, %v165
    %182 = vadd.xlane.f32.xlu0 %v166
    %v183 = vpop.xlane.xlu0 %182
    %184 = vadd.xlane.f32.xlu0 %v167
    %v185 = vpop.xlane.xlu0 %184
    %186 = vadd.xlane.f32.xlu0 %v168
    %v187 = vpop.xlane.xlu0 %186
    %188 = vadd.xlane.f32.xlu0 %v169
    %v189 = vpop.xlane.xlu0 %188
    %190 = vadd.xlane.f32.xlu0 %v170
    %v191 = vpop.xlane.xlu0 %190
    %192 = vadd.xlane.f32.xlu0 %v171
    %v193 = vpop.xlane.xlu0 %192
    %194 = vadd.xlane.f32.xlu0 %v172
    %v195 = vpop.xlane.xlu0 %194
    %196 = vadd.xlane.f32.xlu0 %v173
    %v197 = vpop.xlane.xlu0 %196
    %198 = vadd.xlane.f32.xlu0 %v174
    %v199 = vpop.xlane.xlu0 %198
    %200 = vadd.xlane.f32.xlu0 %v175
    %v201 = vpop.xlane.xlu0 %200
    %202 = vadd.xlane.f32.xlu0 %v176
    %v203 = vpop.xlane.xlu0 %202
    %204 = vadd.xlane.f32.xlu0 %v177
    %v205 = vpop.xlane.xlu0 %204
    %206 = vadd.xlane.f32.xlu0 %v178
    %v207 = vpop.xlane.xlu0 %206
    %208 = vadd.xlane.f32.xlu0 %v179
    %v209 = vpop.xlane.xlu0 %208
    %210 = vadd.xlane.f32.xlu0 %v180
    %v211 = vpop.xlane.xlu0 %210
    %212 = vadd.xlane.f32.xlu0 %v181
    %v213 = vpop.xlane.xlu0 %212
    %v214 = vmul.f32 %v183, 0.007874016
    %v215 = vmul.f32 %v185, 0.007874016
    %v216 = vmul.f32 %v187, 0.007874016
    %v217 = vmul.f32 %v189, 0.007874016
    %v218 = vmul.f32 %v191, 0.007874016
    %v219 = vmul.f32 %v193, 0.007874016
    %v220 = vmul.f32 %v195, 0.007874016
    %v221 = vmul.f32 %v197, 0.007874016
    %v222 = vmul.f32 %v199, 0.007874016
    %v223 = vmul.f32 %v201, 0.007874016
    %v224 = vmul.f32 %v203, 0.007874016
    %v225 = vmul.f32 %v205, 0.007874016
    %v226 = vmul.f32 %v207, 0.007874016
    %v227 = vmul.f32 %v209, 0.007874016
    %v228 = vmul.f32 %v211, 0.007874016
    %v229 = vmul.f32 %v213, 0.007874016
    %v230 = vrsqrt.pop %v214
    %v231 = vmul.f32 %v214, %v230
    %vm232 = vcmp.eq.f32.partialorder %v214, inf
    %v233 = vsel %vm232, %v214, %v231
    %vm234 = vcmp.eq.f32.partialorder %v214, 0.0
    %v235 = vand.u32 %v214, 2147483648
    %v236 = vsel %vm234, %v235, %v233
    %v237 = vrsqrt.pop %v215
    %v238 = vmul.f32 %v215, %v237
    %vm239 = vcmp.eq.f32.partialorder %v215, inf
    %v240 = vsel %vm239, %v215, %v238
    %vm241 = vcmp.eq.f32.partialorder %v215, 0.0
    %v242 = vand.u32 %v215, 2147483648
    %v243 = vsel %vm241, %v242, %v240
    %v244 = vrsqrt.pop %v216
    %v245 = vmul.f32 %v216, %v244
    %vm246 = vcmp.eq.f32.partialorder %v216, inf
    %v247 = vsel %vm246, %v216, %v245
    %vm248 = vcmp.eq.f32.partialorder %v216, 0.0
    %v249 = vand.u32 %v216, 2147483648
    %v250 = vsel %vm248, %v249, %v247
    %v251 = vrsqrt.pop %v217
    %v252 = vmul.f32 %v217, %v251
    %vm253 = vcmp.eq.f32.partialorder %v217, inf
    %v254 = vsel %vm253, %v217, %v252
    %vm255 = vcmp.eq.f32.partialorder %v217, 0.0
    %v256 = vand.u32 %v217, 2147483648
    %v257 = vsel %vm255, %v256, %v254
    %v258 = vrsqrt.pop %v218
    %v259 = vmul.f32 %v218, %v258
    %vm260 = vcmp.eq.f32.partialorder %v218, inf
    %v261 = vsel %vm260, %v218, %v259
    %vm262 = vcmp.eq.f32.partialorder %v218, 0.0
    %v263 = vand.u32 %v218, 2147483648
    %v264 = vsel %vm262, %v263, %v261
    %v265 = vrsqrt.pop %v219
    %v266 = vmul.f32 %v219, %v265
    %vm267 = vcmp.eq.f32.partialorder %v219, inf
    %v268 = vsel %vm267, %v219, %v266
    %vm269 = vcmp.eq.f32.partialorder %v219, 0.0
    %v270 = vand.u32 %v219, 2147483648
    %v271 = vsel %vm269, %v270, %v268
    %v272 = vrsqrt.pop %v220
    %v273 = vmul.f32 %v220, %v272
    %vm274 = vcmp.eq.f32.partialorder %v220, inf
    %v275 = vsel %vm274, %v220, %v273
    %vm276 = vcmp.eq.f32.partialorder %v220, 0.0
    %v277 = vand.u32 %v220, 2147483648
    %v278 = vsel %vm276, %v277, %v275
    %v279 = vrsqrt.pop %v221
    %v280 = vmul.f32 %v221, %v279
    %vm281 = vcmp.eq.f32.partialorder %v221, inf
    %v282 = vsel %vm281, %v221, %v280
    %vm283 = vcmp.eq.f32.partialorder %v221, 0.0
    %v284 = vand.u32 %v221, 2147483648
    %v285 = vsel %vm283, %v284, %v282
    %v286 = vrsqrt.pop %v222
    %v287 = vmul.f32 %v222, %v286
    %vm288 = vcmp.eq.f32.partialorder %v222, inf
    %v289 = vsel %vm288, %v222, %v287
    %vm290 = vcmp.eq.f32.partialorder %v222, 0.0
    %v291 = vand.u32 %v222, 2147483648
    %v292 = vsel %vm290, %v291, %v289
    %v293 = vrsqrt.pop %v223
    %v294 = vmul.f32 %v223, %v293
    %vm295 = vcmp.eq.f32.partialorder %v223, inf
    %v296 = vsel %vm295, %v223, %v294
    %vm297 = vcmp.eq.f32.partialorder %v223, 0.0
    %v298 = vand.u32 %v223, 2147483648
    %v299 = vsel %vm297, %v298, %v296
    %v300 = vrsqrt.pop %v224
    %v301 = vmul.f32 %v224, %v300
    %vm302 = vcmp.eq.f32.partialorder %v224, inf
    %v303 = vsel %vm302, %v224, %v301
    %vm304 = vcmp.eq.f32.partialorder %v224, 0.0
    %v305 = vand.u32 %v224, 2147483648
    %v306 = vsel %vm304, %v305, %v303
    %v307 = vrsqrt.pop %v225
    %v308 = vmul.f32 %v225, %v307
    %vm309 = vcmp.eq.f32.partialorder %v225, inf
    %v310 = vsel %vm309, %v225, %v308
    %vm311 = vcmp.eq.f32.partialorder %v225, 0.0
    %v312 = vand.u32 %v225, 2147483648
    %v313 = vsel %vm311, %v312, %v310
    %v314 = vrsqrt.pop %v226
    %v315 = vmul.f32 %v226, %v314
    %vm316 = vcmp.eq.f32.partialorder %v226, inf
    %v317 = vsel %vm316, %v226, %v315
    %vm318 = vcmp.eq.f32.partialorder %v226, 0.0
    %v319 = vand.u32 %v226, 2147483648
    %v320 = vsel %vm318, %v319, %v317
    %v321 = vrsqrt.pop %v227
    %v322 = vmul.f32 %v227, %v321
    %vm323 = vcmp.eq.f32.partialorder %v227, inf
    %v324 = vsel %vm323, %v227, %v322
    %vm325 = vcmp.eq.f32.partialorder %v227, 0.0
    %v326 = vand.u32 %v227, 2147483648
    %v327 = vsel %vm325, %v326, %v324
    %v328 = vrsqrt.pop %v228
    %v329 = vmul.f32 %v228, %v328
    %vm330 = vcmp.eq.f32.partialorder %v228, inf
    %v331 = vsel %vm330, %v228, %v329
    %vm332 = vcmp.eq.f32.partialorder %v228, 0.0
    %v333 = vand.u32 %v228, 2147483648
    %v334 = vsel %vm332, %v333, %v331
    %v335 = vrsqrt.pop %v229
    %v336 = vmul.f32 %v229, %v335
    %vm337 = vcmp.eq.f32.partialorder %v229, inf
    %v338 = vsel %vm337, %v229, %v336
    %vm339 = vcmp.eq.f32.partialorder %v229, 0.0
    %v340 = vand.u32 %v229, 2147483648
    %v341 = vsel %vm339, %v340, %v338
    %v342 = vadd.f32 %v236, 1e-06
    %v343 = vadd.f32 %v243, 1e-06
    %v344 = vadd.f32 %v250, 1e-06
    %v345 = vadd.f32 %v257, 1e-06
    %v346 = vadd.f32 %v264, 1e-06
    %v347 = vadd.f32 %v271, 1e-06
    %v348 = vadd.f32 %v278, 1e-06
    %v349 = vadd.f32 %v285, 1e-06
    %v350 = vadd.f32 %v292, 1e-06
    %v351 = vadd.f32 %v299, 1e-06
    %v352 = vadd.f32 %v306, 1e-06
    %v353 = vadd.f32 %v313, 1e-06
    %v354 = vadd.f32 %v320, 1e-06
    %v355 = vadd.f32 %v327, 1e-06
    %v356 = vadd.f32 %v334, 1e-06
    %v357 = vadd.f32 %v341, 1e-06
    %v358 = vrcp.pop %v342
    %v359 = vrcp.pop %v343
    %v360 = vrcp.pop %v344
    %v361 = vrcp.pop %v345
    %v362 = vrcp.pop %v346
    %v363 = vrcp.pop %v347
    %v364 = vrcp.pop %v348
    %v365 = vrcp.pop %v349
    %v366 = vrcp.pop %v350
    %v367 = vrcp.pop %v351
    %v368 = vrcp.pop %v352
    %v369 = vrcp.pop %v353
    %v370 = vrcp.pop %v354
    %v371 = vrcp.pop %v355
    %v372 = vrcp.pop %v356
    %v373 = vrcp.pop %v357
    %v374 = vld [vmem:[%s2] sm:$0x1]
    %v375 = vmul.f32 %v150, %v358
    %v376 = vmul.f32 %v151, %v359
    %v377 = vmul.f32 %v152, %v360
    %v378 = vmul.f32 %v153, %v361
    %v379 = vmul.f32 %v154, %v362
    %v380 = vmul.f32 %v155, %v363
    %v381 = vmul.f32 %v156, %v364
    %v382 = vmul.f32 %v157, %v365
    %v383 = vmul.f32 %v158, %v366
    %v384 = vmul.f32 %v159, %v367
    %v385 = vmul.f32 %v160, %v368
    %v386 = vmul.f32 %v161, %v369
    %v387 = vmul.f32 %v162, %v370
    %v388 = vmul.f32 %v163, %v371
    %v389 = vmul.f32 %v164, %v372
    %v390 = vmul.f32 %v165, %v373
    %v392 = vlaneseq
    %v393 = vshrl.u32 %v392, 7
    %v394 = vsub.s32 0, %v393
    %v395 = vrot.slane %v374, %v394
    %v397 = vmul.f32 %v395, %v375
    %v398 = vmul.f32 %v395, %v376
    %v399 = vmul.f32 %v395, %v377
    %v400 = vmul.f32 %v395, %v378
    %v401 = vmul.f32 %v395, %v379
    %v402 = vmul.f32 %v395, %v380
    %v403 = vmul.f32 %v395, %v381
    %v404 = vmul.f32 %v395, %v382
    %v405 = vmul.f32 %v395, %v383
    %v406 = vmul.f32 %v395, %v384
    %v407 = vmul.f32 %v395, %v385
    %v408 = vmul.f32 %v395, %v386
    %v409 = vmul.f32 %v395, %v387
    %v410 = vmul.f32 %v395, %v388
    %v411 = vmul.f32 %v395, %v389
    %v412 = vmul.f32 %v395, %v390
    %v413 = vld [vmem:[%s3] sm:$0x1]
    %v415 = vlaneseq
    %v416 = vshrl.u32 %v415, 7
    %v417 = vsub.s32 0, %v416
    %v418 = vrot.slane %v413, %v417
    %v420 = vadd.f32 %v397, %v418
    %v421 = vadd.f32 %v398, %v418
    %v422 = vadd.f32 %v399, %v418
    %v423 = vadd.f32 %v400, %v418
    %v424 = vadd.f32 %v401, %v418
    %v425 = vadd.f32 %v402, %v418
    %v426 = vadd.f32 %v403, %v418
    %v427 = vadd.f32 %v404, %v418
    %v428 = vadd.f32 %v405, %v418
    %v429 = vadd.f32 %v406, %v418
    %v430 = vadd.f32 %v407, %v418
    %v431 = vadd.f32 %v408, %v418
    %v432 = vadd.f32 %v409, %v418
    %v433 = vadd.f32 %v410, %v418
    %v434 = vadd.f32 %v411, %v418
    %v435 = vadd.f32 %v412, %v418
    %v436 = vpack.c.bf16 %v421, %v420
    %v437 = vpack.c.bf16 %v423, %v422
    %v438 = vpack.c.bf16 %v425, %v424
    %v439 = vpack.c.bf16 %v427, %v426
    %v440 = vpack.c.bf16 %v429, %v428
    %v441 = vpack.c.bf16 %v431, %v430
    %v442 = vpack.c.bf16 %v433, %v432
    %v443 = vpack.c.bf16 %v435, %v434
    %v444 = vld [vmem:[%s4] sm:$0xff]
    %v445 = vld [vmem:[%s4 + $0x8] sm:$0xf]
    %v446 = vld [vmem:[%s4 + $0xc] sm:$0xff]
    %v447 = vld [vmem:[%s4 + $0x14] sm:$0xf]
    %v448 = vld [vmem:[%s4 + $0x18] sm:$0xff]
    %v449 = vld [vmem:[%s4 + $0x20] sm:$0xf]
    %v450 = vld [vmem:[%s4 + $0x24] sm:$0xff]
    %v451 = vld [vmem:[%s4 + $0x2c] sm:$0xf]
    %v452 = vld [vmem:[%s4 + $0x30] sm:$0xff]
    %v453 = vld [vmem:[%s4 + $0x38] sm:$0xf]
    %v454 = vld [vmem:[%s4 + $0x3c] sm:$0xff]
    %v455 = vld [vmem:[%s4 + $0x44] sm:$0xf]
    %v456 = vld [vmem:[%s4 + $0x48] sm:$0xff]
    %v457 = vld [vmem:[%s4 + $0x50] sm:$0xf]
    %v458 = vld [vmem:[%s4 + $0x54] sm:$0xff]
    %v459 = vld [vmem:[%s4 + $0x5c] sm:$0xf]
    %v460 = vld [vmem:[%s4 + $0x60] sm:$0xff]
    %v461 = vld [vmem:[%s4 + $0x68] sm:$0xf]
    %v462 = vld [vmem:[%s4 + $0x6c] sm:$0xff]
    %v463 = vld [vmem:[%s4 + $0x74] sm:$0xf]
    %v464 = vld [vmem:[%s4 + $0x78] sm:$0xff]
    %v465 = vld [vmem:[%s4 + $0x80] sm:$0xf]
    %v466 = vld [vmem:[%s4 + $0x84] sm:$0xff]
    %v467 = vld [vmem:[%s4 + $0x8c] sm:$0xf]
    %v468 = vld [vmem:[%s4 + $0x90] sm:$0xff]
    %v469 = vld [vmem:[%s4 + $0x98] sm:$0xf]
    %v470 = vld [vmem:[%s4 + $0x9c] sm:$0xff]
    %v471 = vld [vmem:[%s4 + $0xa4] sm:$0xf]
    %v472 = vld [vmem:[%s4 + $0xa8] sm:$0xff]
    %v473 = vld [vmem:[%s4 + $0xb0] sm:$0xf]
    %v474 = vld [vmem:[%s4 + $0xb4] sm:$0xff]
    %v475 = vld [vmem:[%s4 + $0xbc] sm:$0xf]
    %v476 = vld [vmem:[%s5] sm:$0x7]
    %v478 = vlaneseq
    %v479 = vshrl.u32 %v478, 7
    %v480 = vsub.s32 0, %v479
    %v481 = vrot.slane %v476, %v480
    %v482 = vlaneseq
    %v483 = vshrl.u32 %v482, 7
    %v484 = vsub.s32 1, %v483
    %v485 = vrot.slane %v476, %v484
    %v486 = vlaneseq
    %v487 = vshrl.u32 %v486, 7
    %v488 = vsub.s32 2, %v487
    %v489 = vrot.slane %v476, %v488
    %v525 = vunpack.c.l.b16 %v444
    %v526 = vunpack.c.h.b16 %v444
    %v527 = vunpack.c.l.b16 %v445
    %v528 = vunpack.c.l.b16 %v446
    %v529 = vunpack.c.h.b16 %v446
    %v530 = vunpack.c.l.b16 %v447
    %v531 = vunpack.c.l.b16 %v448
    %v532 = vunpack.c.h.b16 %v448
    %v533 = vunpack.c.l.b16 %v449
    %v534 = vunpack.c.l.b16 %v450
    %v535 = vunpack.c.h.b16 %v450
    %v536 = vunpack.c.l.b16 %v451
    %v537 = vunpack.c.l.b16 %v452
    %v538 = vunpack.c.h.b16 %v452
    %v539 = vunpack.c.l.b16 %v453
    %v540 = vunpack.c.l.b16 %v454
    %v541 = vunpack.c.h.b16 %v454
    %v542 = vunpack.c.l.b16 %v455
    %v543 = vunpack.c.l.b16 %v456
    %v544 = vunpack.c.h.b16 %v456
    %v545 = vunpack.c.l.b16 %v457
    %v546 = vunpack.c.l.b16 %v458
    %v547 = vunpack.c.h.b16 %v458
    %v548 = vunpack.c.l.b16 %v459
    %v549 = vunpack.c.l.b16 %v460
    %v550 = vunpack.c.h.b16 %v460
    %v551 = vunpack.c.l.b16 %v461
    %v552 = vunpack.c.l.b16 %v462
    %v553 = vunpack.c.h.b16 %v462
    %v554 = vunpack.c.l.b16 %v463
    %v555 = vunpack.c.l.b16 %v464
    %v556 = vunpack.c.h.b16 %v464
    %v557 = vunpack.c.l.b16 %v465
    %v558 = vunpack.c.l.b16 %v466
    %v559 = vunpack.c.h.b16 %v466
    %v560 = vunpack.c.l.b16 %v467
    %v561 = vunpack.c.l.b16 %v468
    %v562 = vunpack.c.h.b16 %v468
    %v563 = vunpack.c.l.b16 %v469
    %v564 = vunpack.c.l.b16 %v470
    %v565 = vunpack.c.h.b16 %v470
    %v566 = vunpack.c.l.b16 %v471
    %v567 = vunpack.c.l.b16 %v472
    %v568 = vunpack.c.h.b16 %v472
    %v569 = vunpack.c.l.b16 %v473
    %v570 = vunpack.c.l.b16 %v474
    %v571 = vunpack.c.h.b16 %v474
    %v572 = vunpack.c.l.b16 %v475
    %v573 = vpack.c.b16 %v528, %v525
    %v574 = vpack.c.b16 %v529, %v526
    %v575 = vpack.c.b16 %v530, %v527
    %v576 = vpack.c.b16 %v534, %v531
    %v577 = vpack.c.b16 %v535, %v532
    %v578 = vpack.c.b16 %v536, %v533
    %v579 = vpack.c.b16 %v540, %v537
    %v580 = vpack.c.b16 %v541, %v538
    %v581 = vpack.c.b16 %v542, %v539
    %v582 = vpack.c.b16 %v546, %v543
    %v583 = vpack.c.b16 %v547, %v544
    %v584 = vpack.c.b16 %v548, %v545
    %v585 = vpack.c.b16 %v552, %v549
    %v586 = vpack.c.b16 %v553, %v550
    %v587 = vpack.c.b16 %v554, %v551
    %v588 = vpack.c.b16 %v558, %v555
    %v589 = vpack.c.b16 %v559, %v556
    %v590 = vpack.c.b16 %v560, %v557
    %v591 = vpack.c.b16 %v564, %v561
    %v592 = vpack.c.b16 %v565, %v562
    %v593 = vpack.c.b16 %v566, %v563
    %v594 = vpack.c.b16 %v570, %v567
    %v595 = vpack.c.b16 %v571, %v568
    %v596 = vpack.c.b16 %v572, %v569
    %621 = vmatprep.subr.bf16.mxu0 %v595
    %622 = vmatpush1.bf16.msra.mxu0 %v594
    %623 = vmatprep.subr.bf16.mxu0 %v592
    %624 = vmatpush1.bf16.msra.mxu0 %v591
    %625 = vmatprep.subr.bf16.mxu0 %v589
    %626 = vmatpush1.bf16.msra.mxu0 %v588
    %627 = vmatprep.subr.bf16.mxu0 %v586
    %628 = vmatpush1.bf16.msra.mxu0 %v585
    %629 = vmatprep.subr.bf16.mxu0 %v583
    %630 = vmatpush1.bf16.msra.mxu0 %v582
    %631 = vmatprep.subr.bf16.mxu0 %v580
    %632 = vmatpush1.bf16.msra.mxu0 %v579
    %633 = vmatprep.subr.bf16.mxu0 %v577
    %634 = vmatpush1.bf16.msra.mxu0 %v576
    %635 = vmatprep.subr.bf16.mxu0 %v574
    %636 = vmatpush1.bf16.msra.mxu0 %v573
    %637 = vmatprep.subr.bf16.mxu0 0
    %638 = vmatpush2.bf16.msra.mxu0 0
    %639 = vmatprep.subr.bf16.mxu0 0
    %640 = vmatpush2.bf16.msra.mxu0 0
    %641 = vmatprep.subr.bf16.mxu0 0
    %642 = vmatpush2.bf16.msra.mxu0 0
    %643 = vmatprep.subr.bf16.mxu0 0
    %644 = vmatpush2.bf16.msra.mxu0 0
    %645 = vmatprep.subr.bf16.mxu0 0
    %646 = vmatpush2.bf16.msra.mxu0 0
    %647 = vmatprep.subr.bf16.mxu0 0
    %648 = vmatpush2.bf16.msra.mxu0 0
    %649 = vmatprep.subr.bf16.mxu0 0
    %650 = vmatpush2.bf16.msra.mxu0 0
    %651 = vmatprep.subr.bf16.mxu0 0
    %652 = vmatpush2.bf16.msra.mxu0 0
    %653 = vmatprep.mubr.bf16.mxu0 0
    %654 = vmatmul.mubr.bf16.gmra.mxu0 %v436
    %v655 = vpop.f32.mrf.mxu0
    %v656 = vadd.f32 %v481, %v655
    %v657 = vpop.f32.mrf.mxu0
    %v658 = vadd.f32 %v485, %v657
    %v659 = vpop.f32.mrf.mxu0
    %v660 = vadd.f32 %v481, %v659
    %v661 = vpop.f32.mrf.mxu0
    %v662 = vadd.f32 %v485, %v661
    %663 = vmatprep.mubr.bf16.mxu0 0
    %664 = vmatmul.mubr.bf16.gmra.mxu0 %v437
    %v665 = vpop.f32.mrf.mxu0
    %v666 = vadd.f32 %v481, %v665
    %v667 = vpop.f32.mrf.mxu0
    %v668 = vadd.f32 %v485, %v667
    %v669 = vpop.f32.mrf.mxu0
    %v670 = vadd.f32 %v481, %v669
    %v671 = vpop.f32.mrf.mxu0
    %v672 = vadd.f32 %v485, %v671
    %673 = vmatprep.mubr.bf16.mxu0 0
    %674 = vmatmul.mubr.bf16.gmra.mxu0 %v438
    %v675 = vpop.f32.mrf.mxu0
    %v676 = vadd.f32 %v481, %v675
    %v677 = vpop.f32.mrf.mxu0
    %v678 = vadd.f32 %v485, %v677
    %v679 = vpop.f32.mrf.mxu0
    %v680 = vadd.f32 %v481, %v679
    %v681 = vpop.f32.mrf.mxu0
    %v682 = vadd.f32 %v485, %v681
    %683 = vmatprep.mubr.bf16.mxu0 0
    %684 = vmatmul.mubr.bf16.gmra.mxu0 %v439
    %v685 = vpop.f32.mrf.mxu0
    %v686 = vadd.f32 %v481, %v685
    %v687 = vpop.f32.mrf.mxu0
    %v688 = vadd.f32 %v485, %v687
    %v689 = vpop.f32.mrf.mxu0
    %v690 = vadd.f32 %v481, %v689
    %v691 = vpop.f32.mrf.mxu0
    %v692 = vadd.f32 %v485, %v691
    %693 = vmatprep.mubr.bf16.mxu0 0
    %694 = vmatmul.mubr.bf16.gmra.mxu0 %v440
    %v695 = vpop.f32.mrf.mxu0
    %v696 = vadd.f32 %v481, %v695
    %v697 = vpop.f32.mrf.mxu0
    %v698 = vadd.f32 %v485, %v697
    %v699 = vpop.f32.mrf.mxu0
    %v700 = vadd.f32 %v481, %v699
    %v701 = vpop.f32.mrf.mxu0
    %v702 = vadd.f32 %v485, %v701
    %703 = vmatprep.mubr.bf16.mxu0 0
    %704 = vmatmul.mubr.bf16.gmra.mxu0 %v441
    %v705 = vpop.f32.mrf.mxu0
    %v706 = vadd.f32 %v481, %v705
    %v707 = vpop.f32.mrf.mxu0
    %v708 = vadd.f32 %v485, %v707
    %v709 = vpop.f32.mrf.mxu0
    %v710 = vadd.f32 %v481, %v709
    %v711 = vpop.f32.mrf.mxu0
    %v712 = vadd.f32 %v485, %v711
    %713 = vmatprep.mubr.bf16.mxu0 0
    %714 = vmatmul.mubr.bf16.gmra.mxu0 %v442
    %v715 = vpop.f32.mrf.mxu0
    %v716 = vadd.f32 %v481, %v715
    %v717 = vpop.f32.mrf.mxu0
    %v718 = vadd.f32 %v485, %v717
    %v719 = vpop.f32.mrf.mxu0
    %v720 = vadd.f32 %v481, %v719
    %v721 = vpop.f32.mrf.mxu0
    %v722 = vadd.f32 %v485, %v721
    %723 = vmatprep.mubr.bf16.mxu0 0
    %724 = vmatmul.mubr.bf16.gmra.mxu0 %v443
    %v725 = vpop.f32.mrf.mxu0
    %v726 = vadd.f32 %v481, %v725
    %v727 = vpop.f32.mrf.mxu0
    %v728 = vadd.f32 %v485, %v727
    %v729 = vpop.f32.mrf.mxu0
    %v730 = vadd.f32 %v481, %v729
    %v731 = vpop.f32.mrf.mxu0
    %v732 = vadd.f32 %v485, %v731
    %733 = vdwg.mxu0
    %734 = vmatprep.subr.bf16.mxu0 0
    %735 = vmatpush1.bf16.msra.mxu0 %v596
    %736 = vmatprep.subr.bf16.mxu0 0
    %737 = vmatpush1.bf16.msra.mxu0 %v593
    %738 = vmatprep.subr.bf16.mxu0 0
    %739 = vmatpush1.bf16.msra.mxu0 %v590
    %740 = vmatprep.subr.bf16.mxu0 0
    %741 = vmatpush1.bf16.msra.mxu0 %v587
    %742 = vmatprep.subr.bf16.mxu0 0
    %743 = vmatpush1.bf16.msra.mxu0 %v584
    %744 = vmatprep.subr.bf16.mxu0 0
    %745 = vmatpush1.bf16.msra.mxu0 %v581
    %746 = vmatprep.subr.bf16.mxu0 0
    %747 = vmatpush1.bf16.msra.mxu0 %v578
    %748 = vmatprep.subr.bf16.mxu0 0
    %749 = vmatpush1.bf16.msra.mxu0 %v575
    %750 = vmatprep.subr.bf16.mxu0 0
    %751 = vmatpush2.bf16.msra.mxu0 0
    %752 = vmatprep.subr.bf16.mxu0 0
    %753 = vmatpush2.bf16.msra.mxu0 0
    %754 = vmatprep.subr.bf16.mxu0 0
    %755 = vmatpush2.bf16.msra.mxu0 0
    %756 = vmatprep.subr.bf16.mxu0 0
    %757 = vmatpush2.bf16.msra.mxu0 0
    %758 = vmatprep.subr.bf16.mxu0 0
    %759 = vmatpush2.bf16.msra.mxu0 0
    %760 = vmatprep.subr.bf16.mxu0 0
    %761 = vmatpush2.bf16.msra.mxu0 0
    %762 = vmatprep.subr.bf16.mxu0 0
    %763 = vmatpush2.bf16.msra.mxu0 0
    %764 = vmatprep.subr.bf16.mxu0 0
    %765 = vmatpush2.bf16.msra.mxu0 0
    %766 = vmatprep.mubr.bf16.mxu0 0
    %767 = vmatmul.mubr.bf16.gmra.mxu0 %v436
    %v768 = vpop.f32.mrf.mxu0
    %v769 = vadd.f32 %v489, %v768
    %v770 = vpop.f32.mrf.mxu0
    %v771 = vpop.f32.mrf.mxu0
    %v772 = vadd.f32 %v489, %v771
    %v773 = vpop.f32.mrf.mxu0
    %774 = vmatprep.mubr.bf16.mxu0 0
    %775 = vmatmul.mubr.bf16.gmra.mxu0 %v437
    %v776 = vpop.f32.mrf.mxu0
    %v777 = vadd.f32 %v489, %v776
    %v778 = vpop.f32.mrf.mxu0
    %v779 = vpop.f32.mrf.mxu0
    %v780 = vadd.f32 %v489, %v779
    %v781 = vpop.f32.mrf.mxu0
    %782 = vmatprep.mubr.bf16.mxu0 0
    %783 = vmatmul.mubr.bf16.gmra.mxu0 %v438
    %v784 = vpop.f32.mrf.mxu0
    %v785 = vadd.f32 %v489, %v784
    %v786 = vpop.f32.mrf.mxu0
    %v787 = vpop.f32.mrf.mxu0
    %v788 = vadd.f32 %v489, %v787
    %v789 = vpop.f32.mrf.mxu0
    %790 = vmatprep.mubr.bf16.mxu0 0
    %791 = vmatmul.mubr.bf16.gmra.mxu0 %v439
    %v792 = vpop.f32.mrf.mxu0
    %v793 = vadd.f32 %v489, %v792
    %v794 = vpop.f32.mrf.mxu0
    %v795 = vpop.f32.mrf.mxu0
    %v796 = vadd.f32 %v489, %v795
    %v797 = vpop.f32.mrf.mxu0
    %798 = vmatprep.mubr.bf16.mxu0 0
    %799 = vmatmul.mubr.bf16.gmra.mxu0 %v440
    %v800 = vpop.f32.mrf.mxu0
    %v801 = vadd.f32 %v489, %v800
    %v802 = vpop.f32.mrf.mxu0
    %v803 = vpop.f32.mrf.mxu0
    %v804 = vadd.f32 %v489, %v803
    %v805 = vpop.f32.mrf.mxu0
    %806 = vmatprep.mubr.bf16.mxu0 0
    %807 = vmatmul.mubr.bf16.gmra.mxu0 %v441
    %v808 = vpop.f32.mrf.mxu0
    %v809 = vadd.f32 %v489, %v808
    %v810 = vpop.f32.mrf.mxu0
    %v811 = vpop.f32.mrf.mxu0
    %v812 = vadd.f32 %v489, %v811
    %v813 = vpop.f32.mrf.mxu0
    %814 = vmatprep.mubr.bf16.mxu0 0
    %815 = vmatmul.mubr.bf16.gmra.mxu0 %v442
    %v816 = vpop.f32.mrf.mxu0
    %v817 = vadd.f32 %v489, %v816
    %v818 = vpop.f32.mrf.mxu0
    %v819 = vpop.f32.mrf.mxu0
    %v820 = vadd.f32 %v489, %v819
    %v821 = vpop.f32.mrf.mxu0
    %822 = vmatprep.mubr.bf16.mxu0 0
    %823 = vmatmul.mubr.bf16.gmra.mxu0 %v443
    %v824 = vpop.f32.mrf.mxu0
    %v825 = vadd.f32 %v489, %v824
    %v826 = vpop.f32.mrf.mxu0
    %v827 = vpop.f32.mrf.mxu0
    %v828 = vadd.f32 %v489, %v827
    %v829 = vpop.f32.mrf.mxu0
    %830 = vdwg.mxu0
    %v831 = vpack.c.bf16 %v660, %v656
    %v832 = vpack.c.bf16 %v670, %v666
    %v833 = vpack.c.bf16 %v680, %v676
    %v834 = vpack.c.bf16 %v690, %v686
    %v835 = vpack.c.bf16 %v700, %v696
    %v836 = vpack.c.bf16 %v710, %v706
    %v837 = vpack.c.bf16 %v720, %v716
    %v838 = vpack.c.bf16 %v730, %v726
    %v839 = vpack.c.bf16 %v662, %v658
    %v840 = vpack.c.bf16 %v672, %v668
    %v841 = vpack.c.bf16 %v682, %v678
    %v842 = vpack.c.bf16 %v692, %v688
    %v843 = vpack.c.bf16 %v702, %v698
    %v844 = vpack.c.bf16 %v712, %v708
    %v845 = vpack.c.bf16 %v722, %v718
    %v846 = vpack.c.bf16 %v732, %v728
    %847 = vmatprep.subr.bf16.mxu0 0
    %848 = vmatpush1.bf16.xpose.msra.mxu0 0
    %849 = vmatprep.subr.bf16.mxu0 0
    %850 = vmatpush1.bf16.xpose.msra.mxu0 0
    %851 = vmatprep.subr.bf16.mxu0 0
    %852 = vmatpush1.bf16.xpose.msra.mxu0 0
    %853 = vmatprep.subr.bf16.mxu0 0
    %854 = vmatpush1.bf16.xpose.msra.mxu0 0
    %855 = vmatprep.subr.bf16.mxu0 0
    %856 = vmatpush1.bf16.xpose.msra.mxu0 %v842
    %857 = vmatprep.subr.bf16.mxu0 0
    %858 = vmatpush1.bf16.xpose.msra.mxu0 %v841
    %859 = vmatprep.subr.bf16.mxu0 0
    %860 = vmatpush1.bf16.xpose.msra.mxu0 %v840
    %861 = vmatprep.subr.bf16.mxu0 0
    %862 = vmatpush1.bf16.xpose.msra.mxu0 %v839
    %863 = vmatprep.subr.bf16.mxu0 0
    %864 = vmatpush2.bf16.xpose.msra.mxu0 0
    %865 = vmatprep.subr.bf16.mxu0 0
    %866 = vmatpush2.bf16.xpose.msra.mxu0 0
    %867 = vmatprep.subr.bf16.mxu0 0
    %868 = vmatpush2.bf16.xpose.msra.mxu0 0
    %869 = vmatprep.subr.bf16.mxu0 0
    %870 = vmatpush2.bf16.xpose.msra.mxu0 0
    %871 = vmatprep.subr.bf16.mxu0 0
    %872 = vmatpush2.bf16.xpose.msra.mxu0 0
    %873 = vmatprep.subr.bf16.mxu0 0
    %874 = vmatpush2.bf16.xpose.msra.mxu0 0
    %875 = vmatprep.subr.bf16.mxu0 0
    %876 = vmatpush2.bf16.xpose.msra.mxu0 0
    %877 = vmatprep.subr.bf16.mxu0 0
    %878 = vmatpush2.bf16.xpose.msra.mxu0 0
    %879 = vmatprep.mubr.bf16.mxu0 0
    %880 = vmatmul.mubr.bf16.gmra.mxu0 %v831
    %v881 = vpop.f32.mrf.mxu0
    %v882 = vadd.f32 0.0, %v881
    %v883 = vpop.f32.mrf.mxu0
    %v884 = vpop.f32.mrf.mxu0
    %v885 = vadd.f32 0.0, %v884
    %v886 = vpop.f32.mrf.mxu0
    %887 = vmatprep.mubr.bf16.mxu0 0
    %888 = vmatmul.mubr.bf16.gmra.mxu0 %v832
    %v889 = vpop.f32.mrf.mxu0
    %v890 = vadd.f32 0.0, %v889
    %v891 = vpop.f32.mrf.mxu0
    %v892 = vpop.f32.mrf.mxu0
    %v893 = vadd.f32 0.0, %v892
    %v894 = vpop.f32.mrf.mxu0
    %895 = vmatprep.mubr.bf16.mxu0 0
    %896 = vmatmul.mubr.bf16.gmra.mxu0 %v833
    %v897 = vpop.f32.mrf.mxu0
    %v898 = vadd.f32 0.0, %v897
    %v899 = vpop.f32.mrf.mxu0
    %v900 = vpop.f32.mrf.mxu0
    %v901 = vadd.f32 0.0, %v900
    %v902 = vpop.f32.mrf.mxu0
    %903 = vmatprep.mubr.bf16.mxu0 0
    %904 = vmatmul.mubr.bf16.gmra.mxu0 %v834
    %v905 = vpop.f32.mrf.mxu0
    %v906 = vadd.f32 0.0, %v905
    %v907 = vpop.f32.mrf.mxu0
    %v908 = vpop.f32.mrf.mxu0
    %v909 = vadd.f32 0.0, %v908
    %v910 = vpop.f32.mrf.mxu0
    %911 = vdwg.mxu0
    %912 = vmatprep.subr.bf16.mxu0 0
    %913 = vmatpush1.bf16.xpose.msra.mxu0 0
    %914 = vmatprep.subr.bf16.mxu0 0
    %915 = vmatpush1.bf16.xpose.msra.mxu0 0
    %916 = vmatprep.subr.bf16.mxu0 0
    %917 = vmatpush1.bf16.xpose.msra.mxu0 0
    %918 = vmatprep.subr.bf16.mxu0 0
    %919 = vmatpush1.bf16.xpose.msra.mxu0 0
    %920 = vmatprep.subr.bf16.mxu0 0
    %921 = vmatpush1.bf16.xpose.msra.mxu0 %v846
    %922 = vmatprep.subr.bf16.mxu0 0
    %923 = vmatpush1.bf16.xpose.msra.mxu0 %v845
    %924 = vmatprep.subr.bf16.mxu0 0
    %925 = vmatpush1.bf16.xpose.msra.mxu0 %v844
    %926 = vmatprep.subr.bf16.mxu0 0
    %927 = vmatpush1.bf16.xpose.msra.mxu0 %v843
    %928 = vmatprep.subr.bf16.mxu0 0
    %929 = vmatpush2.bf16.xpose.msra.mxu0 0
    %930 = vmatprep.subr.bf16.mxu0 0
    %931 = vmatpush2.bf16.xpose.msra.mxu0 0
    %932 = vmatprep.subr.bf16.mxu0 0
    %933 = vmatpush2.bf16.xpose.msra.mxu0 0
    %934 = vmatprep.subr.bf16.mxu0 0
    %935 = vmatpush2.bf16.xpose.msra.mxu0 0
    %936 = vmatprep.subr.bf16.mxu0 0
    %937 = vmatpush2.bf16.xpose.msra.mxu0 0
    %938 = vmatprep.subr.bf16.mxu0 0
    %939 = vmatpush2.bf16.xpose.msra.mxu0 0
    %940 = vmatprep.subr.bf16.mxu0 0
    %941 = vmatpush2.bf16.xpose.msra.mxu0 0
    %942 = vmatprep.subr.bf16.mxu0 0
    %943 = vmatpush2.bf16.xpose.msra.mxu0 0
    %944 = vmatprep.mubr.bf16.mxu0 0
    %945 = vmatmul.mubr.bf16.gmra.mxu0 %v835
    %v946 = vpop.f32.mrf.mxu0
    %v947 = vadd.f32 0.0, %v946
    %v948 = vpop.f32.mrf.mxu0
    %v949 = vpop.f32.mrf.mxu0
    %v950 = vadd.f32 0.0, %v949
    %v951 = vpop.f32.mrf.mxu0
    %952 = vmatprep.mubr.bf16.mxu0 0
    %953 = vmatmul.mubr.bf16.gmra.mxu0 %v836
    %v954 = vpop.f32.mrf.mxu0
    %v955 = vadd.f32 0.0, %v954
    %v956 = vpop.f32.mrf.mxu0
    %v957 = vpop.f32.mrf.mxu0
    %v958 = vadd.f32 0.0, %v957
    %v959 = vpop.f32.mrf.mxu0
    %960 = vmatprep.mubr.bf16.mxu0 0
    %961 = vmatmul.mubr.bf16.gmra.mxu0 %v837
    %v962 = vpop.f32.mrf.mxu0
    %v963 = vadd.f32 0.0, %v962
    %v964 = vpop.f32.mrf.mxu0
    %v965 = vpop.f32.mrf.mxu0
    %v966 = vadd.f32 0.0, %v965
    %v967 = vpop.f32.mrf.mxu0
    %968 = vmatprep.mubr.bf16.mxu0 0
    %969 = vmatmul.mubr.bf16.gmra.mxu0 %v838
    %v970 = vpop.f32.mrf.mxu0
    %v971 = vadd.f32 0.0, %v970
    %v972 = vpop.f32.mrf.mxu0
    %v973 = vpop.f32.mrf.mxu0
    %v974 = vadd.f32 0.0, %v973
    %v975 = vpop.f32.mrf.mxu0
    %976 = vdwg.mxu0
    %v977 = vmul.f32 %v882, 0.088388346
    %v978 = vmul.f32 %v885, 0.088388346
    %v979 = vmul.f32 %v890, 0.088388346
    %v980 = vmul.f32 %v893, 0.088388346
    %v981 = vmul.f32 %v898, 0.088388346
    %v982 = vmul.f32 %v901, 0.088388346
    %v983 = vmul.f32 %v906, 0.088388346
    %v984 = vmul.f32 %v909, 0.088388346
    %v985 = vmul.f32 %v947, 0.088388346
    %v986 = vmul.f32 %v950, 0.088388346
    %v987 = vmul.f32 %v955, 0.088388346
    %v988 = vmul.f32 %v958, 0.088388346
    %v989 = vmul.f32 %v963, 0.088388346
    %v990 = vmul.f32 %v966, 0.088388346
    %v991 = vmul.f32 %v971, 0.088388346
    %v992 = vmul.f32 %v974, 0.088388346
    %v993 = vld [vmem:[%s1] sm:$0x1]
    %v994 = vld [vmem:[%s1 + $0x1] sm:$0x1]
    %v995 = vunpack.c.0.s8 %v993
    %v996 = vunpack.c.0.s8 %v994
    %v997 = vcvt.s32.f32 %v995
    %v998 = vcvt.s32.f32 %v996
    %vm999 = vcmp.eq.f32.partialorder %v997, 0.0
    %vm1000 = vcmp.eq.f32.partialorder %v998, 0.0
    %v1001 = vsel %vm999, 1, 0
    %v1002 = vsel %vm1000, 1, 0
    %v1003 = vlaneseq
    %v1004 = vshrl.u32 %v1003, 7
    %v1005 = vsub.s32 0, %v1004
    %v1006 = vrot.slane %v1001, %v1005
    %v1007 = vlaneseq
    %v1008 = vshrl.u32 %v1007, 7
    %v1009 = vsub.s32 0, %v1008
    %v1010 = vrot.slane %v1002, %v1009
    %vm1011 = vcmp.eq.s32.totalorder %v1006, 1
    %vm1012 = vcmp.eq.s32.totalorder %v1010, 1
    %v1013 = vsel %vm1011, -1e+09, %v977
    %v1014 = vsel %vm1011, -1e+09, %v978
    %v1015 = vsel %vm1011, -1e+09, %v979
    %v1016 = vsel %vm1011, -1e+09, %v980
    %v1017 = vsel %vm1011, -1e+09, %v981
    %v1018 = vsel %vm1011, -1e+09, %v982
    %v1019 = vsel %vm1011, -1e+09, %v983
    %v1020 = vsel %vm1011, -1e+09, %v984
    %v1021 = vsel %vm1012, -1e+09, %v985
    %v1022 = vsel %vm1012, -1e+09, %v986
    %v1023 = vsel %vm1012, -1e+09, %v987
    %v1024 = vsel %vm1012, -1e+09, %v988
    %v1025 = vsel %vm1012, -1e+09, %v989
    %v1026 = vsel %vm1012, -1e+09, %v990
    %v1027 = vsel %vm1012, -1e+09, %v991
    %v1028 = vsel %vm1012, -1e+09, %v992
    %vm1029 = vcmask 523264
    %v1030 = vsel %vm1029, %v1013, -inf
    %1031 = vmax.xlane.f32.xlu0 %v1030
    %v1032 = vpop.xlane.xlu0 %1031
    %v1033 = vsel %vm1029, %v1014, -inf
    %1034 = vmax.xlane.f32.xlu0 %v1033
    %v1035 = vpop.xlane.xlu0 %1034
    %v1036 = vsel %vm1029, %v1015, -inf
    %1037 = vmax.xlane.f32.xlu0 %v1036
    %v1038 = vpop.xlane.xlu0 %1037
    %v1039 = vsel %vm1029, %v1016, -inf
    %1040 = vmax.xlane.f32.xlu0 %v1039
    %v1041 = vpop.xlane.xlu0 %1040
    %v1042 = vsel %vm1029, %v1017, -inf
    %1043 = vmax.xlane.f32.xlu0 %v1042
    %v1044 = vpop.xlane.xlu0 %1043
    %v1045 = vsel %vm1029, %v1018, -inf
    %1046 = vmax.xlane.f32.xlu0 %v1045
    %v1047 = vpop.xlane.xlu0 %1046
    %v1048 = vsel %vm1029, %v1019, -inf
    %1049 = vmax.xlane.f32.xlu0 %v1048
    %v1050 = vpop.xlane.xlu0 %1049
    %v1051 = vsel %vm1029, %v1020, -inf
    %1052 = vmax.xlane.f32.xlu0 %v1051
    %v1053 = vpop.xlane.xlu0 %1052
    %v1054 = vsel %vm1029, %v1021, -inf
    %1055 = vmax.xlane.f32.xlu0 %v1054
    %v1056 = vpop.xlane.xlu0 %1055
    %v1057 = vsel %vm1029, %v1022, -inf
    %1058 = vmax.xlane.f32.xlu0 %v1057
    %v1059 = vpop.xlane.xlu0 %1058
    %v1060 = vsel %vm1029, %v1023, -inf
    %1061 = vmax.xlane.f32.xlu0 %v1060
    %v1062 = vpop.xlane.xlu0 %1061
    %v1063 = vsel %vm1029, %v1024, -inf
    %1064 = vmax.xlane.f32.xlu0 %v1063
    %v1065 = vpop.xlane.xlu0 %1064
    %v1066 = vsel %vm1029, %v1025, -inf
    %1067 = vmax.xlane.f32.xlu0 %v1066
    %v1068 = vpop.xlane.xlu0 %1067
    %v1069 = vsel %vm1029, %v1026, -inf
    %1070 = vmax.xlane.f32.xlu0 %v1069
    %v1071 = vpop.xlane.xlu0 %1070
    %v1072 = vsel %vm1029, %v1027, -inf
    %1073 = vmax.xlane.f32.xlu0 %v1072
    %v1074 = vpop.xlane.xlu0 %1073
    %v1075 = vsel %vm1029, %v1028, -inf
    %1076 = vmax.xlane.f32.xlu0 %v1075
    %v1077 = vpop.xlane.xlu0 %1076
    %v1078 = vsub.f32 %v1013, %v1032
    %v1079 = vsub.f32 %v1014, %v1035
    %v1080 = vsub.f32 %v1015, %v1038
    %v1081 = vsub.f32 %v1016, %v1041
    %v1082 = vsub.f32 %v1017, %v1044
    %v1083 = vsub.f32 %v1018, %v1047
    %v1084 = vsub.f32 %v1019, %v1050
    %v1085 = vsub.f32 %v1020, %v1053
    %v1086 = vsub.f32 %v1021, %v1056
    %v1087 = vsub.f32 %v1022, %v1059
    %v1088 = vsub.f32 %v1023, %v1062
    %v1089 = vsub.f32 %v1024, %v1065
    %v1090 = vsub.f32 %v1025, %v1068
    %v1091 = vsub.f32 %v1026, %v1071
    %v1092 = vsub.f32 %v1027, %v1074
    %v1093 = vsub.f32 %v1028, %v1077
    %v1094 = vmul.f32 %v1078, 1.442695
    %v1095 = vpow.pop %v1094
    %v1096 = vmul.f32 %v1079, 1.442695
    %v1097 = vpow.pop %v1096
    %v1098 = vmul.f32 %v1080, 1.442695
    %v1099 = vpow.pop %v1098
    %v1100 = vmul.f32 %v1081, 1.442695
    %v1101 = vpow.pop %v1100
    %v1102 = vmul.f32 %v1082, 1.442695
    %v1103 = vpow.pop %v1102
    %v1104 = vmul.f32 %v1083, 1.442695
    %v1105 = vpow.pop %v1104
    %v1106 = vmul.f32 %v1084, 1.442695
    %v1107 = vpow.pop %v1106
    %v1108 = vmul.f32 %v1085, 1.442695
    %v1109 = vpow.pop %v1108
    %v1110 = vmul.f32 %v1086, 1.442695
    %v1111 = vpow.pop %v1110
    %v1112 = vmul.f32 %v1087, 1.442695
    %v1113 = vpow.pop %v1112
    %v1114 = vmul.f32 %v1088, 1.442695
    %v1115 = vpow.pop %v1114
    %v1116 = vmul.f32 %v1089, 1.442695
    %v1117 = vpow.pop %v1116
    %v1118 = vmul.f32 %v1090, 1.442695
    %v1119 = vpow.pop %v1118
    %v1120 = vmul.f32 %v1091, 1.442695
    %v1121 = vpow.pop %v1120
    %v1122 = vmul.f32 %v1092, 1.442695
    %v1123 = vpow.pop %v1122
    %v1124 = vmul.f32 %v1093, 1.442695
    %v1125 = vpow.pop %v1124
    %v1126 = vsel %vm1029, %v1095, 0.0
    %1127 = vadd.xlane.f32.xlu0 %v1126
    %v1128 = vpop.xlane.xlu0 %1127
    %v1129 = vsel %vm1029, %v1097, 0.0
    %1130 = vadd.xlane.f32.xlu0 %v1129
    %v1131 = vpop.xlane.xlu0 %1130
    %v1132 = vsel %vm1029, %v1099, 0.0
    %1133 = vadd.xlane.f32.xlu0 %v1132
    %v1134 = vpop.xlane.xlu0 %1133
    %v1135 = vsel %vm1029, %v1101, 0.0
    %1136 = vadd.xlane.f32.xlu0 %v1135
    %v1137 = vpop.xlane.xlu0 %1136
    %v1138 = vsel %vm1029, %v1103, 0.0
    %1139 = vadd.xlane.f32.xlu0 %v1138
    %v1140 = vpop.xlane.xlu0 %1139
    %v1141 = vsel %vm1029, %v1105, 0.0
    %1142 = vadd.xlane.f32.xlu0 %v1141
    %v1143 = vpop.xlane.xlu0 %1142
    %v1144 = vsel %vm1029, %v1107, 0.0
    %1145 = vadd.xlane.f32.xlu0 %v1144
    %v1146 = vpop.xlane.xlu0 %1145
    %v1147 = vsel %vm1029, %v1109, 0.0
    %1148 = vadd.xlane.f32.xlu0 %v1147
    %v1149 = vpop.xlane.xlu0 %1148
    %v1150 = vsel %vm1029, %v1111, 0.0
    %1151 = vadd.xlane.f32.xlu0 %v1150
    %v1152 = vpop.xlane.xlu0 %1151
    %v1153 = vsel %vm1029, %v1113, 0.0
    %1154 = vadd.xlane.f32.xlu0 %v1153
    %v1155 = vpop.xlane.xlu0 %1154
    %v1156 = vsel %vm1029, %v1115, 0.0
    %1157 = vadd.xlane.f32.xlu0 %v1156
    %v1158 = vpop.xlane.xlu0 %1157
    %v1159 = vsel %vm1029, %v1117, 0.0
    %1160 = vadd.xlane.f32.xlu0 %v1159
    %v1161 = vpop.xlane.xlu0 %1160
    %v1162 = vsel %vm1029, %v1119, 0.0
    %1163 = vadd.xlane.f32.xlu0 %v1162
    %v1164 = vpop.xlane.xlu0 %1163
    %v1165 = vsel %vm1029, %v1121, 0.0
    %1166 = vadd.xlane.f32.xlu0 %v1165
    %v1167 = vpop.xlane.xlu0 %1166
    %v1168 = vsel %vm1029, %v1123, 0.0
    %1169 = vadd.xlane.f32.xlu0 %v1168
    %v1170 = vpop.xlane.xlu0 %1169
    %v1171 = vsel %vm1029, %v1125, 0.0
    %1172 = vadd.xlane.f32.xlu0 %v1171
    %v1173 = vpop.xlane.xlu0 %1172
    %v1174 = vrcp.pop %v1128
    %v1175 = vrcp.pop %v1131
    %v1176 = vrcp.pop %v1134
    %v1177 = vrcp.pop %v1137
    %v1178 = vrcp.pop %v1140
    %v1179 = vrcp.pop %v1143
    %v1180 = vrcp.pop %v1146
    %v1181 = vrcp.pop %v1149
    %v1182 = vrcp.pop %v1152
    %v1183 = vrcp.pop %v1155
    %v1184 = vrcp.pop %v1158
    %v1185 = vrcp.pop %v1161
    %v1186 = vrcp.pop %v1164
    %v1187 = vrcp.pop %v1167
    %v1188 = vrcp.pop %v1170
    %v1189 = vrcp.pop %v1173
    %v1190 = vmul.f32 %v1095, %v1174
    %v1191 = vmul.f32 %v1097, %v1175
    %v1192 = vmul.f32 %v1099, %v1176
    %v1193 = vmul.f32 %v1101, %v1177
    %v1194 = vmul.f32 %v1103, %v1178
    %v1195 = vmul.f32 %v1105, %v1179
    %v1196 = vmul.f32 %v1107, %v1180
    %v1197 = vmul.f32 %v1109, %v1181
    %v1198 = vmul.f32 %v1111, %v1182
    %v1199 = vmul.f32 %v1113, %v1183
    %v1200 = vmul.f32 %v1115, %v1184
    %v1201 = vmul.f32 %v1117, %v1185
    %v1202 = vmul.f32 %v1119, %v1186
    %v1203 = vmul.f32 %v1121, %v1187
    %v1204 = vmul.f32 %v1123, %v1188
    %v1205 = vmul.f32 %v1125, %v1189
    %v1206 = vpack.c.bf16 %v1191, %v1190
    %v1207 = vpack.c.bf16 %v1193, %v1192
    %v1208 = vpack.c.bf16 %v1195, %v1194
    %v1209 = vpack.c.bf16 %v1197, %v1196
    %v1210 = vpack.c.bf16 %v1199, %v1198
    %v1211 = vpack.c.bf16 %v1201, %v1200
    %v1212 = vpack.c.bf16 %v1203, %v1202
    %v1213 = vpack.c.bf16 %v1205, %v1204
    %v1214 = vpack.c.bf16 %v772, %v769
    %v1215 = vpack.c.bf16 %v780, %v777
    %v1216 = vpack.c.bf16 %v788, %v785
    %v1217 = vpack.c.bf16 %v796, %v793
    %v1218 = vpack.c.bf16 %v804, %v801
    %v1219 = vpack.c.bf16 %v812, %v809
    %v1220 = vpack.c.bf16 %v820, %v817
    %v1221 = vpack.c.bf16 %v828, %v825
    %v1223 = vsel %vm1029, %v1206, 0
    %v1226 = vsel %vm1029, %v1207, 0
    %v1229 = vsel %vm1029, %v1208, 0
    %v1232 = vsel %vm1029, %v1209, 0
    %1234 = vmatprep.subr.bf16.mxu0 0
    %1235 = vmatpush1.bf16.msra.mxu0 0
    %1236 = vmatprep.subr.bf16.mxu0 0
    %1237 = vmatpush1.bf16.msra.mxu0 0
    %1238 = vmatprep.subr.bf16.mxu0 0
    %1239 = vmatpush1.bf16.msra.mxu0 0
    %1240 = vmatprep.subr.bf16.mxu0 0
    %1241 = vmatpush1.bf16.msra.mxu0 0
    %1242 = vmatprep.subr.bf16.mxu0 0
    %1243 = vmatpush1.bf16.msra.mxu0 %v1217
    %1244 = vmatprep.subr.bf16.mxu0 0
    %1245 = vmatpush1.bf16.msra.mxu0 %v1216
    %1246 = vmatprep.subr.bf16.mxu0 0
    %1247 = vmatpush1.bf16.msra.mxu0 %v1215
    %1248 = vmatprep.subr.bf16.mxu0 0
    %1249 = vmatpush1.bf16.msra.mxu0 %v1214
    %1250 = vmatprep.subr.bf16.mxu0 0
    %1251 = vmatpush2.bf16.msra.mxu0 0
    %1252 = vmatprep.subr.bf16.mxu0 0
    %1253 = vmatpush2.bf16.msra.mxu0 0
    %1254 = vmatprep.subr.bf16.mxu0 0
    %1255 = vmatpush2.bf16.msra.mxu0 0
    %1256 = vmatprep.subr.bf16.mxu0 0
    %1257 = vmatpush2.bf16.msra.mxu0 0
    %1258 = vmatprep.subr.bf16.mxu0 0
    %1259 = vmatpush2.bf16.msra.mxu0 0
    %1260 = vmatprep.subr.bf16.mxu0 0
    %1261 = vmatpush2.bf16.msra.mxu0 0
    %1262 = vmatprep.subr.bf16.mxu0 0
    %1263 = vmatpush2.bf16.msra.mxu0 0
    %1264 = vmatprep.subr.bf16.mxu0 0
    %1265 = vmatpush2.bf16.msra.mxu0 0
    %1266 = vmatprep.mubr.bf16.mxu0 0
    %1267 = vmatmul.mubr.bf16.gmra.mxu0 %v1223
    %v1268 = vpop.f32.mrf.mxu0
    %v1269 = vadd.f32 0.0, %v1268
    %v1270 = vpop.f32.mrf.mxu0
    %v1271 = vpop.f32.mrf.mxu0
    %v1272 = vadd.f32 0.0, %v1271
    %v1273 = vpop.f32.mrf.mxu0
    %1274 = vmatprep.mubr.bf16.mxu0 0
    %1275 = vmatmul.mubr.bf16.gmra.mxu0 %v1226
    %v1276 = vpop.f32.mrf.mxu0
    %v1277 = vadd.f32 0.0, %v1276
    %v1278 = vpop.f32.mrf.mxu0
    %v1279 = vpop.f32.mrf.mxu0
    %v1280 = vadd.f32 0.0, %v1279
    %v1281 = vpop.f32.mrf.mxu0
    %1282 = vmatprep.mubr.bf16.mxu0 0
    %1283 = vmatmul.mubr.bf16.gmra.mxu0 %v1229
    %v1284 = vpop.f32.mrf.mxu0
    %v1285 = vadd.f32 0.0, %v1284
    %v1286 = vpop.f32.mrf.mxu0
    %v1287 = vpop.f32.mrf.mxu0
    %v1288 = vadd.f32 0.0, %v1287
    %v1289 = vpop.f32.mrf.mxu0
    %1290 = vmatprep.mubr.bf16.mxu0 0
    %1291 = vmatmul.mubr.bf16.gmra.mxu0 %v1232
    %v1292 = vpop.f32.mrf.mxu0
    %v1293 = vadd.f32 0.0, %v1292
    %v1294 = vpop.f32.mrf.mxu0
    %v1295 = vpop.f32.mrf.mxu0
    %v1296 = vadd.f32 0.0, %v1295
    %v1297 = vpop.f32.mrf.mxu0
    %1298 = vdwg.mxu0
    %v1300 = vsel %vm1029, %v1210, 0
    %v1303 = vsel %vm1029, %v1211, 0
    %v1306 = vsel %vm1029, %v1212, 0
    %v1309 = vsel %vm1029, %v1213, 0
    %1311 = vmatprep.subr.bf16.mxu0 0
    %1312 = vmatpush1.bf16.msra.mxu0 0
    %1313 = vmatprep.subr.bf16.mxu0 0
    %1314 = vmatpush1.bf16.msra.mxu0 0
    %1315 = vmatprep.subr.bf16.mxu0 0
    %1316 = vmatpush1.bf16.msra.mxu0 0
    %1317 = vmatprep.subr.bf16.mxu0 0
    %1318 = vmatpush1.bf16.msra.mxu0 0
    %1319 = vmatprep.subr.bf16.mxu0 0
    %1320 = vmatpush1.bf16.msra.mxu0 %v1221
    %1321 = vmatprep.subr.bf16.mxu0 0
    %1322 = vmatpush1.bf16.msra.mxu0 %v1220
    %1323 = vmatprep.subr.bf16.mxu0 0
    %1324 = vmatpush1.bf16.msra.mxu0 %v1219
    %1325 = vmatprep.subr.bf16.mxu0 0
    %1326 = vmatpush1.bf16.msra.mxu0 %v1218
    %1327 = vmatprep.subr.bf16.mxu0 0
    %1328 = vmatpush2.bf16.msra.mxu0 0
    %1329 = vmatprep.subr.bf16.mxu0 0
    %1330 = vmatpush2.bf16.msra.mxu0 0
    %1331 = vmatprep.subr.bf16.mxu0 0
    %1332 = vmatpush2.bf16.msra.mxu0 0
    %1333 = vmatprep.subr.bf16.mxu0 0
    %1334 = vmatpush2.bf16.msra.mxu0 0
    %1335 = vmatprep.subr.bf16.mxu0 0
    %1336 = vmatpush2.bf16.msra.mxu0 0
    %1337 = vmatprep.subr.bf16.mxu0 0
    %1338 = vmatpush2.bf16.msra.mxu0 0
    %1339 = vmatprep.subr.bf16.mxu0 0
    %1340 = vmatpush2.bf16.msra.mxu0 0
    %1341 = vmatprep.subr.bf16.mxu0 0
    %1342 = vmatpush2.bf16.msra.mxu0 0
    %1343 = vmatprep.mubr.bf16.mxu0 0
    %1344 = vmatmul.mubr.bf16.gmra.mxu0 %v1300
    %v1345 = vpop.f32.mrf.mxu0
    %v1346 = vadd.f32 0.0, %v1345
    %v1347 = vpop.f32.mrf.mxu0
    %v1348 = vpop.f32.mrf.mxu0
    %v1349 = vadd.f32 0.0, %v1348
    %v1350 = vpop.f32.mrf.mxu0
    %1351 = vmatprep.mubr.bf16.mxu0 0
    %1352 = vmatmul.mubr.bf16.gmra.mxu0 %v1303
    %v1353 = vpop.f32.mrf.mxu0
    %v1354 = vadd.f32 0.0, %v1353
    %v1355 = vpop.f32.mrf.mxu0
    %v1356 = vpop.f32.mrf.mxu0
    %v1357 = vadd.f32 0.0, %v1356
    %v1358 = vpop.f32.mrf.mxu0
    %1359 = vmatprep.mubr.bf16.mxu0 0
    %1360 = vmatmul.mubr.bf16.gmra.mxu0 %v1306
    %v1361 = vpop.f32.mrf.mxu0
    %v1362 = vadd.f32 0.0, %v1361
    %v1363 = vpop.f32.mrf.mxu0
    %v1364 = vpop.f32.mrf.mxu0
    %v1365 = vadd.f32 0.0, %v1364
    %v1366 = vpop.f32.mrf.mxu0
    %1367 = vmatprep.mubr.bf16.mxu0 0
    %1368 = vmatmul.mubr.bf16.gmra.mxu0 %v1309
    %v1369 = vpop.f32.mrf.mxu0
    %v1370 = vadd.f32 0.0, %v1369
    %v1371 = vpop.f32.mrf.mxu0
    %v1372 = vpop.f32.mrf.mxu0
    %v1373 = vadd.f32 0.0, %v1372
    %v1374 = vpop.f32.mrf.mxu0
    %1375 = vdwg.mxu0
    %v1376 = vpack.c.bf16 %v1272, %v1269
    %v1377 = vpack.c.bf16 %v1280, %v1277
    %v1378 = vpack.c.bf16 %v1288, %v1285
    %v1379 = vpack.c.bf16 %v1296, %v1293
    %v1380 = vpack.c.bf16 %v1349, %v1346
    %v1381 = vpack.c.bf16 %v1357, %v1354
    %v1382 = vpack.c.bf16 %v1365, %v1362
    %v1383 = vpack.c.bf16 %v1373, %v1370
    %v1384 = vld [vmem:[%s6] sm:$0xf]
    %v1385 = vld [vmem:[%s6 + $0x4] sm:$0xf]
    %v1386 = vld [vmem:[%s6 + $0x8] sm:$0xf]
    %v1387 = vld [vmem:[%s6 + $0xc] sm:$0xf]
    %v1388 = vld [vmem:[%s6 + $0x10] sm:$0xf]
    %v1389 = vld [vmem:[%s6 + $0x14] sm:$0xf]
    %v1390 = vld [vmem:[%s6 + $0x18] sm:$0xf]
    %v1391 = vld [vmem:[%s6 + $0x1c] sm:$0xf]
    %v1392 = vld [vmem:[%s6 + $0x20] sm:$0xf]
    %v1393 = vld [vmem:[%s6 + $0x24] sm:$0xf]
    %v1394 = vld [vmem:[%s6 + $0x28] sm:$0xf]
    %v1395 = vld [vmem:[%s6 + $0x2c] sm:$0xf]
    %v1396 = vld [vmem:[%s6 + $0x30] sm:$0xf]
    %v1397 = vld [vmem:[%s6 + $0x34] sm:$0xf]
    %v1398 = vld [vmem:[%s6 + $0x38] sm:$0xf]
    %v1399 = vld [vmem:[%s6 + $0x3c] sm:$0xf]
    %v1400 = vld [vmem:[%s7] sm:$0x1]
    %v1402 = vlaneseq
    %v1403 = vshrl.u32 %v1402, 7
    %v1404 = vsub.s32 0, %v1403
    %v1405 = vrot.slane %v1400, %v1404
    %v1423 = vunpack.c.l.b16 %v1384
    %v1424 = vunpack.c.l.b16 %v1385
    %v1425 = vunpack.c.l.b16 %v1386
    %v1426 = vunpack.c.l.b16 %v1387
    %v1427 = vunpack.c.l.b16 %v1388
    %v1428 = vunpack.c.l.b16 %v1389
    %v1429 = vunpack.c.l.b16 %v1390
    %v1430 = vunpack.c.l.b16 %v1391
    %v1431 = vunpack.c.l.b16 %v1392
    %v1432 = vunpack.c.l.b16 %v1393
    %v1433 = vunpack.c.l.b16 %v1394
    %v1434 = vunpack.c.l.b16 %v1395
    %v1435 = vunpack.c.l.b16 %v1396
    %v1436 = vunpack.c.l.b16 %v1397
    %v1437 = vunpack.c.l.b16 %v1398
    %v1438 = vunpack.c.l.b16 %v1399
    %v1439 = vpack.c.b16 %v1424, %v1423
    %v1440 = vpack.c.b16 %v1426, %v1425
    %v1441 = vpack.c.b16 %v1428, %v1427
    %v1442 = vpack.c.b16 %v1430, %v1429
    %v1443 = vpack.c.b16 %v1432, %v1431
    %v1444 = vpack.c.b16 %v1434, %v1433
    %v1445 = vpack.c.b16 %v1436, %v1435
    %v1446 = vpack.c.b16 %v1438, %v1437
    %1455 = vmatprep.subr.bf16.mxu0 0
    %1456 = vmatpush1.bf16.msra.mxu0 %v1446
    %1457 = vmatprep.subr.bf16.mxu0 0
    %1458 = vmatpush1.bf16.msra.mxu0 %v1445
    %1459 = vmatprep.subr.bf16.mxu0 0
    %1460 = vmatpush1.bf16.msra.mxu0 %v1444
    %1461 = vmatprep.subr.bf16.mxu0 0
    %1462 = vmatpush1.bf16.msra.mxu0 %v1443
    %1463 = vmatprep.subr.bf16.mxu0 0
    %1464 = vmatpush1.bf16.msra.mxu0 %v1442
    %1465 = vmatprep.subr.bf16.mxu0 0
    %1466 = vmatpush1.bf16.msra.mxu0 %v1441
    %1467 = vmatprep.subr.bf16.mxu0 0
    %1468 = vmatpush1.bf16.msra.mxu0 %v1440
    %1469 = vmatprep.subr.bf16.mxu0 0
    %1470 = vmatpush1.bf16.msra.mxu0 %v1439
    %1471 = vmatprep.subr.bf16.mxu0 0
    %1472 = vmatpush2.bf16.msra.mxu0 0
    %1473 = vmatprep.subr.bf16.mxu0 0
    %1474 = vmatpush2.bf16.msra.mxu0 0
    %1475 = vmatprep.subr.bf16.mxu0 0
    %1476 = vmatpush2.bf16.msra.mxu0 0
    %1477 = vmatprep.subr.bf16.mxu0 0
    %1478 = vmatpush2.bf16.msra.mxu0 0
    %1479 = vmatprep.subr.bf16.mxu0 0
    %1480 = vmatpush2.bf16.msra.mxu0 0
    %1481 = vmatprep.subr.bf16.mxu0 0
    %1482 = vmatpush2.bf16.msra.mxu0 0
    %1483 = vmatprep.subr.bf16.mxu0 0
    %1484 = vmatpush2.bf16.msra.mxu0 0
    %1485 = vmatprep.subr.bf16.mxu0 0
    %1486 = vmatpush2.bf16.msra.mxu0 0
    %1487 = vmatprep.mubr.bf16.mxu0 0
    %1488 = vmatmul.mubr.bf16.gmra.mxu0 %v1376
    %v1489 = vpop.f32.mrf.mxu0
    %v1490 = vadd.f32 %v1405, %v1489
    %v1491 = vpop.f32.mrf.mxu0
    %v1492 = vpop.f32.mrf.mxu0
    %v1493 = vadd.f32 %v1405, %v1492
    %v1494 = vpop.f32.mrf.mxu0
    %1495 = vmatprep.mubr.bf16.mxu0 0
    %1496 = vmatmul.mubr.bf16.gmra.mxu0 %v1377
    %v1497 = vpop.f32.mrf.mxu0
    %v1498 = vadd.f32 %v1405, %v1497
    %v1499 = vpop.f32.mrf.mxu0
    %v1500 = vpop.f32.mrf.mxu0
    %v1501 = vadd.f32 %v1405, %v1500
    %v1502 = vpop.f32.mrf.mxu0
    %1503 = vmatprep.mubr.bf16.mxu0 0
    %1504 = vmatmul.mubr.bf16.gmra.mxu0 %v1378
    %v1505 = vpop.f32.mrf.mxu0
    %v1506 = vadd.f32 %v1405, %v1505
    %v1507 = vpop.f32.mrf.mxu0
    %v1508 = vpop.f32.mrf.mxu0
    %v1509 = vadd.f32 %v1405, %v1508
    %v1510 = vpop.f32.mrf.mxu0
    %1511 = vmatprep.mubr.bf16.mxu0 0
    %1512 = vmatmul.mubr.bf16.gmra.mxu0 %v1379
    %v1513 = vpop.f32.mrf.mxu0
    %v1514 = vadd.f32 %v1405, %v1513
    %v1515 = vpop.f32.mrf.mxu0
    %v1516 = vpop.f32.mrf.mxu0
    %v1517 = vadd.f32 %v1405, %v1516
    %v1518 = vpop.f32.mrf.mxu0
    %1519 = vmatprep.mubr.bf16.mxu0 0
    %1520 = vmatmul.mubr.bf16.gmra.mxu0 %v1380
    %v1521 = vpop.f32.mrf.mxu0
    %v1522 = vadd.f32 %v1405, %v1521
    %v1523 = vpop.f32.mrf.mxu0
    %v1524 = vpop.f32.mrf.mxu0
    %v1525 = vadd.f32 %v1405, %v1524
    %v1526 = vpop.f32.mrf.mxu0
    %1527 = vmatprep.mubr.bf16.mxu0 0
    %1528 = vmatmul.mubr.bf16.gmra.mxu0 %v1381
    %v1529 = vpop.f32.mrf.mxu0
    %v1530 = vadd.f32 %v1405, %v1529
    %v1531 = vpop.f32.mrf.mxu0
    %v1532 = vpop.f32.mrf.mxu0
    %v1533 = vadd.f32 %v1405, %v1532
    %v1534 = vpop.f32.mrf.mxu0
    %1535 = vmatprep.mubr.bf16.mxu0 0
    %1536 = vmatmul.mubr.bf16.gmra.mxu0 %v1382
    %v1537 = vpop.f32.mrf.mxu0
    %v1538 = vadd.f32 %v1405, %v1537
    %v1539 = vpop.f32.mrf.mxu0
    %v1540 = vpop.f32.mrf.mxu0
    %v1541 = vadd.f32 %v1405, %v1540
    %v1542 = vpop.f32.mrf.mxu0
    %1543 = vmatprep.mubr.bf16.mxu0 0
    %1544 = vmatmul.mubr.bf16.gmra.mxu0 %v1383
    %v1545 = vpop.f32.mrf.mxu0
    %v1546 = vadd.f32 %v1405, %v1545
    %v1547 = vpop.f32.mrf.mxu0
    %v1548 = vpop.f32.mrf.mxu0
    %v1549 = vadd.f32 %v1405, %v1548
    %v1550 = vpop.f32.mrf.mxu0
    %1551 = vdwg.mxu0
    %v1552 = vadd.f32 %v1490, %v1493
    %v1553 = vadd.f32 %v1552, %v1498
    %v1554 = vadd.f32 %v1553, %v1501
    %v1555 = vadd.f32 %v1554, %v1506
    %v1556 = vadd.f32 %v1555, %v1509
    %v1557 = vadd.f32 %v1556, %v1514
    %v1558 = vadd.f32 %v1557, %v1517
    %v1559 = vadd.f32 %v1558, %v1522
    %v1560 = vadd.f32 %v1559, %v1525
    %v1561 = vadd.f32 %v1560, %v1530
    %v1562 = vadd.f32 %v1561, %v1533
    %v1563 = vadd.f32 %v1562, %v1538
    %v1564 = vadd.f32 %v1563, %v1541
    %v1565 = vadd.f32 %v1564, %v1546
    %v1566 = vadd.f32 %v1565, %v1549
    %v1567 = vrot.slane %v1566, 4
    %v1568 = vadd.f32 %v1566, %v1567
    %v1569 = vrot.slane %v1568, 2
    %v1570 = vadd.f32 %v1568, %v1569
    %v1571 = vrot.slane %v1570, 1
    %v1572 = vadd.f32 %v1570, %v1571
    %1573 = vst [vmem:[#allocation4] sm:$0x1] %v1572
    %v1574 = vmul.f32 %v236, 2.0
    %v1575 = vmul.f32 %v243, 2.0
    %v1576 = vmul.f32 %v250, 2.0
    %v1577 = vmul.f32 %v257, 2.0
    %v1578 = vmul.f32 %v264, 2.0
    %v1579 = vmul.f32 %v271, 2.0
    %v1580 = vmul.f32 %v278, 2.0
    %v1581 = vmul.f32 %v285, 2.0
    %v1582 = vmul.f32 %v292, 2.0
    %v1583 = vmul.f32 %v299, 2.0
    %v1584 = vmul.f32 %v306, 2.0
    %v1585 = vmul.f32 %v313, 2.0
    %v1586 = vmul.f32 %v320, 2.0
    %v1587 = vmul.f32 %v327, 2.0
    %v1588 = vmul.f32 %v334, 2.0
    %v1589 = vmul.f32 %v341, 2.0
    %v1590 = vadd.f32 %v1574, 1e-06
    %v1591 = vadd.f32 %v1575, 1e-06
    %v1592 = vadd.f32 %v1576, 1e-06
    %v1593 = vadd.f32 %v1577, 1e-06
    %v1594 = vadd.f32 %v1578, 1e-06
    %v1595 = vadd.f32 %v1579, 1e-06
    %v1596 = vadd.f32 %v1580, 1e-06
    %v1597 = vadd.f32 %v1581, 1e-06
    %v1598 = vadd.f32 %v1582, 1e-06
    %v1599 = vadd.f32 %v1583, 1e-06
    %v1600 = vadd.f32 %v1584, 1e-06
    %v1601 = vadd.f32 %v1585, 1e-06
    %v1602 = vadd.f32 %v1586, 1e-06
    %v1603 = vadd.f32 %v1587, 1e-06
    %v1604 = vadd.f32 %v1588, 1e-06
    %v1605 = vadd.f32 %v1589, 1e-06
    %v1606 = vrcp.pop %v1590
    %v1607 = vrcp.pop %v1591
    %v1608 = vrcp.pop %v1592
    %v1609 = vrcp.pop %v1593
    %v1610 = vrcp.pop %v1594
    %v1611 = vrcp.pop %v1595
    %v1612 = vrcp.pop %v1596
    %v1613 = vrcp.pop %v1597
    %v1614 = vrcp.pop %v1598
    %v1615 = vrcp.pop %v1599
    %v1616 = vrcp.pop %v1600
    %v1617 = vrcp.pop %v1601
    %v1618 = vrcp.pop %v1602
    %v1619 = vrcp.pop %v1603
    %v1620 = vrcp.pop %v1604
    %v1621 = vrcp.pop %v1605
    %v1622 = vld [vmem:[%s8] sm:$0x1]
    %v1623 = vmul.f32 %v150, 2.0
    %v1624 = vmul.f32 %v151, 2.0
    %v1625 = vmul.f32 %v152, 2.0
    %v1626 = vmul.f32 %v153, 2.0
    %v1627 = vmul.f32 %v154, 2.0
    %v1628 = vmul.f32 %v155, 2.0
    %v1629 = vmul.f32 %v156, 2.0
    %v1630 = vmul.f32 %v157, 2.0
    %v1631 = vmul.f32 %v158, 2.0
    %v1632 = vmul.f32 %v159, 2.0
    %v1633 = vmul.f32 %v160, 2.0
    %v1634 = vmul.f32 %v161, 2.0
    %v1635 = vmul.f32 %v162, 2.0
    %v1636 = vmul.f32 %v163, 2.0
    %v1637 = vmul.f32 %v164, 2.0
    %v1638 = vmul.f32 %v165, 2.0
    %v1639 = vmul.f32 %v1623, %v1606
    %v1640 = vmul.f32 %v1624, %v1607
    %v1641 = vmul.f32 %v1625, %v1608
    %v1642 = vmul.f32 %v1626, %v1609
    %v1643 = vmul.f32 %v1627, %v1610
    %v1644 = vmul.f32 %v1628, %v1611
    %v1645 = vmul.f32 %v1629, %v1612
    %v1646 = vmul.f32 %v1630, %v1613
    %v1647 = vmul.f32 %v1631, %v1614
    %v1648 = vmul.f32 %v1632, %v1615
    %v1649 = vmul.f32 %v1633, %v1616
    %v1650 = vmul.f32 %v1634, %v1617
    %v1651 = vmul.f32 %v1635, %v1618
    %v1652 = vmul.f32 %v1636, %v1619
    %v1653 = vmul.f32 %v1637, %v1620
    %v1654 = vmul.f32 %v1638, %v1621
    %v1656 = vlaneseq
    %v1657 = vshrl.u32 %v1656, 7
    %v1658 = vsub.s32 0, %v1657
    %v1659 = vrot.slane %v1622, %v1658
    %v1661 = vmul.f32 %v1659, %v1639
    %v1662 = vmul.f32 %v1659, %v1640
    %v1663 = vmul.f32 %v1659, %v1641
    %v1664 = vmul.f32 %v1659, %v1642
    %v1665 = vmul.f32 %v1659, %v1643
    %v1666 = vmul.f32 %v1659, %v1644
    %v1667 = vmul.f32 %v1659, %v1645
    %v1668 = vmul.f32 %v1659, %v1646
    %v1669 = vmul.f32 %v1659, %v1647
    %v1670 = vmul.f32 %v1659, %v1648
    %v1671 = vmul.f32 %v1659, %v1649
    %v1672 = vmul.f32 %v1659, %v1650
    %v1673 = vmul.f32 %v1659, %v1651
    %v1674 = vmul.f32 %v1659, %v1652
    %v1675 = vmul.f32 %v1659, %v1653
    %v1676 = vmul.f32 %v1659, %v1654
    %v1677 = vld [vmem:[%s9] sm:$0x1]
    %v1679 = vlaneseq
    %v1680 = vshrl.u32 %v1679, 7
    %v1681 = vsub.s32 0, %v1680
    %v1682 = vrot.slane %v1677, %v1681
    %v1684 = vadd.f32 %v1661, %v1682
    %v1685 = vadd.f32 %v1662, %v1682
    %v1686 = vadd.f32 %v1663, %v1682
    %v1687 = vadd.f32 %v1664, %v1682
    %v1688 = vadd.f32 %v1665, %v1682
    %v1689 = vadd.f32 %v1666, %v1682
    %v1690 = vadd.f32 %v1667, %v1682
    %v1691 = vadd.f32 %v1668, %v1682
    %v1692 = vadd.f32 %v1669, %v1682
    %v1693 = vadd.f32 %v1670, %v1682
    %v1694 = vadd.f32 %v1671, %v1682
    %v1695 = vadd.f32 %v1672, %v1682
    %v1696 = vadd.f32 %v1673, %v1682
    %v1697 = vadd.f32 %v1674, %v1682
    %v1698 = vadd.f32 %v1675, %v1682
    %v1699 = vadd.f32 %v1676, %v1682
    %v1700 = vpack.c.bf16 %v1685, %v1684
    %v1701 = vpack.c.bf16 %v1687, %v1686
    %v1702 = vpack.c.bf16 %v1689, %v1688
    %v1703 = vpack.c.bf16 %v1691, %v1690
    %v1704 = vpack.c.bf16 %v1693, %v1692
    %v1705 = vpack.c.bf16 %v1695, %v1694
    %v1706 = vpack.c.bf16 %v1697, %v1696
    %v1707 = vpack.c.bf16 %v1699, %v1698
    %v1708 = vld [vmem:[%s10] sm:$0xff]
    %v1709 = vld [vmem:[%s10 + $0x8] sm:$0xff]
    %v1710 = vld [vmem:[%s10 + $0x10] sm:$0xff]
    %v1711 = vld [vmem:[%s10 + $0x18] sm:$0xff]
    %v1712 = vld [vmem:[%s10 + $0x20] sm:$0xff]
    %v1713 = vld [vmem:[%s10 + $0x28] sm:$0xff]
    %v1714 = vld [vmem:[%s10 + $0x30] sm:$0xff]
    %v1715 = vld [vmem:[%s10 + $0x38] sm:$0xff]
    %v1716 = vld [vmem:[%s10 + $0x40] sm:$0xff]
    %v1717 = vld [vmem:[%s10 + $0x48] sm:$0xff]
    %v1718 = vld [vmem:[%s10 + $0x50] sm:$0xff]
    %v1719 = vld [vmem:[%s10 + $0x58] sm:$0xff]
    %v1720 = vld [vmem:[%s10 + $0x60] sm:$0xff]
    %v1721 = vld [vmem:[%s10 + $0x68] sm:$0xff]
    %v1722 = vld [vmem:[%s10 + $0x70] sm:$0xff]
    %v1723 = vld [vmem:[%s10 + $0x78] sm:$0xff]
    %v1724 = vld [vmem:[%s10 + $0x80] sm:$0xff]
    %v1725 = vld [vmem:[%s10 + $0x88] sm:$0xff]
    %v1726 = vld [vmem:[%s10 + $0x90] sm:$0xff]
    %v1727 = vld [vmem:[%s10 + $0x98] sm:$0xff]
    %v1728 = vld [vmem:[%s10 + $0xa0] sm:$0xff]
    %v1729 = vld [vmem:[%s10 + $0xa8] sm:$0xff]
    %v1730 = vld [vmem:[%s10 + $0xb0] sm:$0xff]
    %v1731 = vld [vmem:[%s10 + $0xb8] sm:$0xff]
    %v1732 = vld [vmem:[%s10 + $0xc0] sm:$0xff]
    %v1733 = vld [vmem:[%s10 + $0xc8] sm:$0xff]
    %v1734 = vld [vmem:[%s10 + $0xd0] sm:$0xff]
    %v1735 = vld [vmem:[%s10 + $0xd8] sm:$0xff]
    %v1736 = vld [vmem:[%s10 + $0xe0] sm:$0xff]
    %v1737 = vld [vmem:[%s10 + $0xe8] sm:$0xff]
    %v1738 = vld [vmem:[%s10 + $0xf0] sm:$0xff]
    %v1739 = vld [vmem:[%s10 + $0xf8] sm:$0xff]
    %v1740 = vld [vmem:[%s11] sm:$0xf]
    %v1742 = vlaneseq
    %v1743 = vshrl.u32 %v1742, 7
    %v1744 = vsub.s32 0, %v1743
    %v1745 = vrot.slane %v1740, %v1744
    %v1746 = vlaneseq
    %v1747 = vshrl.u32 %v1746, 7
    %v1748 = vsub.s32 1, %v1747
    %v1749 = vrot.slane %v1740, %v1748
    %v1750 = vlaneseq
    %v1751 = vshrl.u32 %v1750, 7
    %v1752 = vsub.s32 2, %v1751
    %v1753 = vrot.slane %v1740, %v1752
    %v1754 = vlaneseq
    %v1755 = vshrl.u32 %v1754, 7
    %v1756 = vsub.s32 3, %v1755
    %v1757 = vrot.slane %v1740, %v1756
    %v1794 = vunpack.c.l.b16 %v1708
    %v1795 = vunpack.c.h.b16 %v1708
    %v1796 = vunpack.c.l.b16 %v1709
    %v1797 = vunpack.c.h.b16 %v1709
    %v1798 = vunpack.c.l.b16 %v1710
    %v1799 = vunpack.c.h.b16 %v1710
    %v1800 = vunpack.c.l.b16 %v1711
    %v1801 = vunpack.c.h.b16 %v1711
    %v1802 = vunpack.c.l.b16 %v1712
    %v1803 = vunpack.c.h.b16 %v1712
    %v1804 = vunpack.c.l.b16 %v1713
    %v1805 = vunpack.c.h.b16 %v1713
    %v1806 = vunpack.c.l.b16 %v1714
    %v1807 = vunpack.c.h.b16 %v1714
    %v1808 = vunpack.c.l.b16 %v1715
    %v1809 = vunpack.c.h.b16 %v1715
    %v1810 = vunpack.c.l.b16 %v1716
    %v1811 = vunpack.c.h.b16 %v1716
    %v1812 = vunpack.c.l.b16 %v1717
    %v1813 = vunpack.c.h.b16 %v1717
    %v1814 = vunpack.c.l.b16 %v1718
    %v1815 = vunpack.c.h.b16 %v1718
    %v1816 = vunpack.c.l.b16 %v1719
    %v1817 = vunpack.c.h.b16 %v1719
    %v1818 = vunpack.c.l.b16 %v1720
    %v1819 = vunpack.c.h.b16 %v1720
    %v1820 = vunpack.c.l.b16 %v1721
    %v1821 = vunpack.c.h.b16 %v1721
    %v1822 = vunpack.c.l.b16 %v1722
    %v1823 = vunpack.c.h.b16 %v1722
    %v1824 = vunpack.c.l.b16 %v1723
    %v1825 = vunpack.c.h.b16 %v1723
    %v1826 = vunpack.c.l.b16 %v1724
    %v1827 = vunpack.c.h.b16 %v1724
    %v1828 = vunpack.c.l.b16 %v1725
    %v1829 = vunpack.c.h.b16 %v1725
    %v1830 = vunpack.c.l.b16 %v1726
    %v1831 = vunpack.c.h.b16 %v1726
    %v1832 = vunpack.c.l.b16 %v1727
    %v1833 = vunpack.c.h.b16 %v1727
    %v1834 = vunpack.c.l.b16 %v1728
    %v1835 = vunpack.c.h.b16 %v1728
    %v1836 = vunpack.c.l.b16 %v1729
    %v1837 = vunpack.c.h.b16 %v1729
    %v1838 = vunpack.c.l.b16 %v1730
    %v1839 = vunpack.c.h.b16 %v1730
    %v1840 = vunpack.c.l.b16 %v1731
    %v1841 = vunpack.c.h.b16 %v1731
    %v1842 = vunpack.c.l.b16 %v1732
    %v1843 = vunpack.c.h.b16 %v1732
    %v1844 = vunpack.c.l.b16 %v1733
    %v1845 = vunpack.c.h.b16 %v1733
    %v1846 = vunpack.c.l.b16 %v1734
    %v1847 = vunpack.c.h.b16 %v1734
    %v1848 = vunpack.c.l.b16 %v1735
    %v1849 = vunpack.c.h.b16 %v1735
    %v1850 = vunpack.c.l.b16 %v1736
    %v1851 = vunpack.c.h.b16 %v1736
    %v1852 = vunpack.c.l.b16 %v1737
    %v1853 = vunpack.c.h.b16 %v1737
    %v1854 = vunpack.c.l.b16 %v1738
    %v1855 = vunpack.c.h.b16 %v1738
    %v1856 = vunpack.c.l.b16 %v1739
    %v1857 = vunpack.c.h.b16 %v1739
    %v1858 = vpack.c.b16 %v1798, %v1794
    %v1859 = vpack.c.b16 %v1799, %v1795
    %v1860 = vpack.c.b16 %v1800, %v1796
    %v1861 = vpack.c.b16 %v1801, %v1797
    %v1862 = vpack.c.b16 %v1806, %v1802
    %v1863 = vpack.c.b16 %v1807, %v1803
    %v1864 = vpack.c.b16 %v1808, %v1804
    %v1865 = vpack.c.b16 %v1809, %v1805
    %v1866 = vpack.c.b16 %v1814, %v1810
    %v1867 = vpack.c.b16 %v1815, %v1811
    %v1868 = vpack.c.b16 %v1816, %v1812
    %v1869 = vpack.c.b16 %v1817, %v1813
    %v1870 = vpack.c.b16 %v1822, %v1818
    %v1871 = vpack.c.b16 %v1823, %v1819
    %v1872 = vpack.c.b16 %v1824, %v1820
    %v1873 = vpack.c.b16 %v1825, %v1821
    %v1874 = vpack.c.b16 %v1830, %v1826
    %v1875 = vpack.c.b16 %v1831, %v1827
    %v1876 = vpack.c.b16 %v1832, %v1828
    %v1877 = vpack.c.b16 %v1833, %v1829
    %v1878 = vpack.c.b16 %v1838, %v1834
    %v1879 = vpack.c.b16 %v1839, %v1835
    %v1880 = vpack.c.b16 %v1840, %v1836
    %v1881 = vpack.c.b16 %v1841, %v1837
    %v1882 = vpack.c.b16 %v1846, %v1842
    %v1883 = vpack.c.b16 %v1847, %v1843
    %v1884 = vpack.c.b16 %v1848, %v1844
    %v1885 = vpack.c.b16 %v1849, %v1845
    %v1886 = vpack.c.b16 %v1854, %v1850
    %v1887 = vpack.c.b16 %v1855, %v1851
    %v1888 = vpack.c.b16 %v1856, %v1852
    %v1889 = vpack.c.b16 %v1857, %v1853
    %1922 = vmatprep.subr.bf16.mxu0 %v1887
    %1923 = vmatpush1.bf16.msra.mxu0 %v1886
    %1924 = vmatprep.subr.bf16.mxu0 %v1883
    %1925 = vmatpush1.bf16.msra.mxu0 %v1882
    %1926 = vmatprep.subr.bf16.mxu0 %v1879
    %1927 = vmatpush1.bf16.msra.mxu0 %v1878
    %1928 = vmatprep.subr.bf16.mxu0 %v1875
    %1929 = vmatpush1.bf16.msra.mxu0 %v1874
    %1930 = vmatprep.subr.bf16.mxu0 %v1871
    %1931 = vmatpush1.bf16.msra.mxu0 %v1870
    %1932 = vmatprep.subr.bf16.mxu0 %v1867
    %1933 = vmatpush1.bf16.msra.mxu0 %v1866
    %1934 = vmatprep.subr.bf16.mxu0 %v1863
    %1935 = vmatpush1.bf16.msra.mxu0 %v1862
    %1936 = vmatprep.subr.bf16.mxu0 %v1859
    %1937 = vmatpush1.bf16.msra.mxu0 %v1858
    %1938 = vmatprep.subr.bf16.mxu0 0
    %1939 = vmatpush2.bf16.msra.mxu0 0
    %1940 = vmatprep.subr.bf16.mxu0 0
    %1941 = vmatpush2.bf16.msra.mxu0 0
    %1942 = vmatprep.subr.bf16.mxu0 0
    %1943 = vmatpush2.bf16.msra.mxu0 0
    %1944 = vmatprep.subr.bf16.mxu0 0
    %1945 = vmatpush2.bf16.msra.mxu0 0
    %1946 = vmatprep.subr.bf16.mxu0 0
    %1947 = vmatpush2.bf16.msra.mxu0 0
    %1948 = vmatprep.subr.bf16.mxu0 0
    %1949 = vmatpush2.bf16.msra.mxu0 0
    %1950 = vmatprep.subr.bf16.mxu0 0
    %1951 = vmatpush2.bf16.msra.mxu0 0
    %1952 = vmatprep.subr.bf16.mxu0 0
    %1953 = vmatpush2.bf16.msra.mxu0 0
    %1954 = vmatprep.mubr.bf16.mxu0 0
    %1955 = vmatmul.mubr.bf16.gmra.mxu0 %v1700
    %v1956 = vpop.f32.mrf.mxu0
    %v1957 = vadd.f32 %v1745, %v1956
    %v1958 = vpop.f32.mrf.mxu0
    %v1959 = vadd.f32 %v1749, %v1958
    %v1960 = vpop.f32.mrf.mxu0
    %v1961 = vadd.f32 %v1745, %v1960
    %v1962 = vpop.f32.mrf.mxu0
    %v1963 = vadd.f32 %v1749, %v1962
    %1964 = vmatprep.mubr.bf16.mxu0 0
    %1965 = vmatmul.mubr.bf16.gmra.mxu0 %v1701
    %v1966 = vpop.f32.mrf.mxu0
    %v1967 = vadd.f32 %v1745, %v1966
    %v1968 = vpop.f32.mrf.mxu0
    %v1969 = vadd.f32 %v1749, %v1968
    %v1970 = vpop.f32.mrf.mxu0
    %v1971 = vadd.f32 %v1745, %v1970
    %v1972 = vpop.f32.mrf.mxu0
    %v1973 = vadd.f32 %v1749, %v1972
    %1974 = vmatprep.mubr.bf16.mxu0 0
    %1975 = vmatmul.mubr.bf16.gmra.mxu0 %v1702
    %v1976 = vpop.f32.mrf.mxu0
    %v1977 = vadd.f32 %v1745, %v1976
    %v1978 = vpop.f32.mrf.mxu0
    %v1979 = vadd.f32 %v1749, %v1978
    %v1980 = vpop.f32.mrf.mxu0
    %v1981 = vadd.f32 %v1745, %v1980
    %v1982 = vpop.f32.mrf.mxu0
    %v1983 = vadd.f32 %v1749, %v1982
    %1984 = vmatprep.mubr.bf16.mxu0 0
    %1985 = vmatmul.mubr.bf16.gmra.mxu0 %v1703
    %v1986 = vpop.f32.mrf.mxu0
    %v1987 = vadd.f32 %v1745, %v1986
    %v1988 = vpop.f32.mrf.mxu0
    %v1989 = vadd.f32 %v1749, %v1988
    %v1990 = vpop.f32.mrf.mxu0
    %v1991 = vadd.f32 %v1745, %v1990
    %v1992 = vpop.f32.mrf.mxu0
    %v1993 = vadd.f32 %v1749, %v1992
    %1994 = vmatprep.mubr.bf16.mxu0 0
    %1995 = vmatmul.mubr.bf16.gmra.mxu0 %v1704
    %v1996 = vpop.f32.mrf.mxu0
    %v1997 = vadd.f32 %v1745, %v1996
    %v1998 = vpop.f32.mrf.mxu0
    %v1999 = vadd.f32 %v1749, %v1998
    %v2000 = vpop.f32.mrf.mxu0
    %v2001 = vadd.f32 %v1745, %v2000
    %v2002 = vpop.f32.mrf.mxu0
    %v2003 = vadd.f32 %v1749, %v2002
    %2004 = vmatprep.mubr.bf16.mxu0 0
    %2005 = vmatmul.mubr.bf16.gmra.mxu0 %v1705
    %v2006 = vpop.f32.mrf.mxu0
    %v2007 = vadd.f32 %v1745, %v2006
    %v2008 = vpop.f32.mrf.mxu0
    %v2009 = vadd.f32 %v1749, %v2008
    %v2010 = vpop.f32.mrf.mxu0
    %v2011 = vadd.f32 %v1745, %v2010
    %v2012 = vpop.f32.mrf.mxu0
    %v2013 = vadd.f32 %v1749, %v2012
    %2014 = vmatprep.mubr.bf16.mxu0 0
    %2015 = vmatmul.mubr.bf16.gmra.mxu0 %v1706
    %v2016 = vpop.f32.mrf.mxu0
    %v2017 = vadd.f32 %v1745, %v2016
    %v2018 = vpop.f32.mrf.mxu0
    %v2019 = vadd.f32 %v1749, %v2018
    %v2020 = vpop.f32.mrf.mxu0
    %v2021 = vadd.f32 %v1745, %v2020
    %v2022 = vpop.f32.mrf.mxu0
    %v2023 = vadd.f32 %v1749, %v2022
    %2024 = vmatprep.mubr.bf16.mxu0 0
    %2025 = vmatmul.mubr.bf16.gmra.mxu0 %v1707
    %v2026 = vpop.f32.mrf.mxu0
    %v2027 = vadd.f32 %v1745, %v2026
    %v2028 = vpop.f32.mrf.mxu0
    %v2029 = vadd.f32 %v1749, %v2028
    %v2030 = vpop.f32.mrf.mxu0
    %v2031 = vadd.f32 %v1745, %v2030
    %v2032 = vpop.f32.mrf.mxu0
    %v2033 = vadd.f32 %v1749, %v2032
    %2034 = vdwg.mxu0
    %2035 = vmatprep.subr.bf16.mxu0 %v1889
    %2036 = vmatpush1.bf16.msra.mxu0 %v1888
    %2037 = vmatprep.subr.bf16.mxu0 %v1885
    %2038 = vmatpush1.bf16.msra.mxu0 %v1884
    %2039 = vmatprep.subr.bf16.mxu0 %v1881
    %2040 = vmatpush1.bf16.msra.mxu0 %v1880
    %2041 = vmatprep.subr.bf16.mxu0 %v1877
    %2042 = vmatpush1.bf16.msra.mxu0 %v1876
    %2043 = vmatprep.subr.bf16.mxu0 %v1873
    %2044 = vmatpush1.bf16.msra.mxu0 %v1872
    %2045 = vmatprep.subr.bf16.mxu0 %v1869
    %2046 = vmatpush1.bf16.msra.mxu0 %v1868
    %2047 = vmatprep.subr.bf16.mxu0 %v1865
    %2048 = vmatpush1.bf16.msra.mxu0 %v1864
    %2049 = vmatprep.subr.bf16.mxu0 %v1861
    %2050 = vmatpush1.bf16.msra.mxu0 %v1860
    %2051 = vmatprep.subr.bf16.mxu0 0
    %2052 = vmatpush2.bf16.msra.mxu0 0
    %2053 = vmatprep.subr.bf16.mxu0 0
    %2054 = vmatpush2.bf16.msra.mxu0 0
    %2055 = vmatprep.subr.bf16.mxu0 0
    %2056 = vmatpush2.bf16.msra.mxu0 0
    %2057 = vmatprep.subr.bf16.mxu0 0
    %2058 = vmatpush2.bf16.msra.mxu0 0
    %2059 = vmatprep.subr.bf16.mxu0 0
    %2060 = vmatpush2.bf16.msra.mxu0 0
    %2061 = vmatprep.subr.bf16.mxu0 0
    %2062 = vmatpush2.bf16.msra.mxu0 0
    %2063 = vmatprep.subr.bf16.mxu0 0
    %2064 = vmatpush2.bf16.msra.mxu0 0
    %2065 = vmatprep.subr.bf16.mxu0 0
    %2066 = vmatpush2.bf16.msra.mxu0 0
    %2067 = vmatprep.mubr.bf16.mxu0 0
    %2068 = vmatmul.mubr.bf16.gmra.mxu0 %v1700
    %v2069 = vpop.f32.mrf.mxu0
    %v2070 = vadd.f32 %v1753, %v2069
    %v2071 = vpop.f32.mrf.mxu0
    %v2072 = vadd.f32 %v1757, %v2071
    %v2073 = vpop.f32.mrf.mxu0
    %v2074 = vadd.f32 %v1753, %v2073
    %v2075 = vpop.f32.mrf.mxu0
    %v2076 = vadd.f32 %v1757, %v2075
    %2077 = vmatprep.mubr.bf16.mxu0 0
    %2078 = vmatmul.mubr.bf16.gmra.mxu0 %v1701
    %v2079 = vpop.f32.mrf.mxu0
    %v2080 = vadd.f32 %v1753, %v2079
    %v2081 = vpop.f32.mrf.mxu0
    %v2082 = vadd.f32 %v1757, %v2081
    %v2083 = vpop.f32.mrf.mxu0
    %v2084 = vadd.f32 %v1753, %v2083
    %v2085 = vpop.f32.mrf.mxu0
    %v2086 = vadd.f32 %v1757, %v2085
    %2087 = vmatprep.mubr.bf16.mxu0 0
    %2088 = vmatmul.mubr.bf16.gmra.mxu0 %v1702
    %v2089 = vpop.f32.mrf.mxu0
    %v2090 = vadd.f32 %v1753, %v2089
    %v2091 = vpop.f32.mrf.mxu0
    %v2092 = vadd.f32 %v1757, %v2091
    %v2093 = vpop.f32.mrf.mxu0
    %v2094 = vadd.f32 %v1753, %v2093
    %v2095 = vpop.f32.mrf.mxu0
    %v2096 = vadd.f32 %v1757, %v2095
    %2097 = vmatprep.mubr.bf16.mxu0 0
    %2098 = vmatmul.mubr.bf16.gmra.mxu0 %v1703
    %v2099 = vpop.f32.mrf.mxu0
    %v2100 = vadd.f32 %v1753, %v2099
    %v2101 = vpop.f32.mrf.mxu0
    %v2102 = vadd.f32 %v1757, %v2101
    %v2103 = vpop.f32.mrf.mxu0
    %v2104 = vadd.f32 %v1753, %v2103
    %v2105 = vpop.f32.mrf.mxu0
    %v2106 = vadd.f32 %v1757, %v2105
    %2107 = vmatprep.mubr.bf16.mxu0 0
    %2108 = vmatmul.mubr.bf16.gmra.mxu0 %v1704
    %v2109 = vpop.f32.mrf.mxu0
    %v2110 = vadd.f32 %v1753, %v2109
    %v2111 = vpop.f32.mrf.mxu0
    %v2112 = vadd.f32 %v1757, %v2111
    %v2113 = vpop.f32.mrf.mxu0
    %v2114 = vadd.f32 %v1753, %v2113
    %v2115 = vpop.f32.mrf.mxu0
    %v2116 = vadd.f32 %v1757, %v2115
    %2117 = vmatprep.mubr.bf16.mxu0 0
    %2118 = vmatmul.mubr.bf16.gmra.mxu0 %v1705
    %v2119 = vpop.f32.mrf.mxu0
    %v2120 = vadd.f32 %v1753, %v2119
    %v2121 = vpop.f32.mrf.mxu0
    %v2122 = vadd.f32 %v1757, %v2121
    %v2123 = vpop.f32.mrf.mxu0
    %v2124 = vadd.f32 %v1753, %v2123
    %v2125 = vpop.f32.mrf.mxu0
    %v2126 = vadd.f32 %v1757, %v2125
    %2127 = vmatprep.mubr.bf16.mxu0 0
    %2128 = vmatmul.mubr.bf16.gmra.mxu0 %v1706
    %v2129 = vpop.f32.mrf.mxu0
    %v2130 = vadd.f32 %v1753, %v2129
    %v2131 = vpop.f32.mrf.mxu0
    %v2132 = vadd.f32 %v1757, %v2131
    %v2133 = vpop.f32.mrf.mxu0
    %v2134 = vadd.f32 %v1753, %v2133
    %v2135 = vpop.f32.mrf.mxu0
    %v2136 = vadd.f32 %v1757, %v2135
    %2137 = vmatprep.mubr.bf16.mxu0 0
    %2138 = vmatmul.mubr.bf16.gmra.mxu0 %v1707
    %v2139 = vpop.f32.mrf.mxu0
    %v2140 = vadd.f32 %v1753, %v2139
    %v2141 = vpop.f32.mrf.mxu0
    %v2142 = vadd.f32 %v1757, %v2141
    %v2143 = vpop.f32.mrf.mxu0
    %v2144 = vadd.f32 %v1753, %v2143
    %v2145 = vpop.f32.mrf.mxu0
    %v2146 = vadd.f32 %v1757, %v2145
    %2147 = vdwg.mxu0
    %v2148 = vmax.f32 %v1957, 0.0
    %v2149 = vmax.f32 %v1959, 0.0
    %v2150 = vmax.f32 %v2070, 0.0
    %v2151 = vmax.f32 %v2072, 0.0
    %v2152 = vmax.f32 %v1961, 0.0
    %v2153 = vmax.f32 %v1963, 0.0
    %v2154 = vmax.f32 %v2074, 0.0
    %v2155 = vmax.f32 %v2076, 0.0
    %v2156 = vmax.f32 %v1967, 0.0
    %v2157 = vmax.f32 %v1969, 0.0
    %v2158 = vmax.f32 %v2080, 0.0
    %v2159 = vmax.f32 %v2082, 0.0
    %v2160 = vmax.f32 %v1971, 0.0
    %v2161 = vmax.f32 %v1973, 0.0
    %v2162 = vmax.f32 %v2084, 0.0
    %v2163 = vmax.f32 %v2086, 0.0
    %v2164 = vmax.f32 %v1977, 0.0
    %v2165 = vmax.f32 %v1979, 0.0
    %v2166 = vmax.f32 %v2090, 0.0
    %v2167 = vmax.f32 %v2092, 0.0
    %v2168 = vmax.f32 %v1981, 0.0
    %v2169 = vmax.f32 %v1983, 0.0
    %v2170 = vmax.f32 %v2094, 0.0
    %v2171 = vmax.f32 %v2096, 0.0
    %v2172 = vmax.f32 %v1987, 0.0
    %v2173 = vmax.f32 %v1989, 0.0
    %v2174 = vmax.f32 %v2100, 0.0
    %v2175 = vmax.f32 %v2102, 0.0
    %v2176 = vmax.f32 %v1991, 0.0
    %v2177 = vmax.f32 %v1993, 0.0
    %v2178 = vmax.f32 %v2104, 0.0
    %v2179 = vmax.f32 %v2106, 0.0
    %v2180 = vmax.f32 %v1997, 0.0
    %v2181 = vmax.f32 %v1999, 0.0
    %v2182 = vmax.f32 %v2110, 0.0
    %v2183 = vmax.f32 %v2112, 0.0
    %v2184 = vmax.f32 %v2001, 0.0
    %v2185 = vmax.f32 %v2003, 0.0
    %v2186 = vmax.f32 %v2114, 0.0
    %v2187 = vmax.f32 %v2116, 0.0
    %v2188 = vmax.f32 %v2007, 0.0
    %v2189 = vmax.f32 %v2009, 0.0
    %v2190 = vmax.f32 %v2120, 0.0
    %v2191 = vmax.f32 %v2122, 0.0
    %v2192 = vmax.f32 %v2011, 0.0
    %v2193 = vmax.f32 %v2013, 0.0
    %v2194 = vmax.f32 %v2124, 0.0
    %v2195 = vmax.f32 %v2126, 0.0
    %v2196 = vmax.f32 %v2017, 0.0
    %v2197 = vmax.f32 %v2019, 0.0
    %v2198 = vmax.f32 %v2130, 0.0
    %v2199 = vmax.f32 %v2132, 0.0
    %v2200 = vmax.f32 %v2021, 0.0
    %v2201 = vmax.f32 %v2023, 0.0
    %v2202 = vmax.f32 %v2134, 0.0
    %v2203 = vmax.f32 %v2136, 0.0
    %v2204 = vmax.f32 %v2027, 0.0
    %v2205 = vmax.f32 %v2029, 0.0
    %v2206 = vmax.f32 %v2140, 0.0
    %v2207 = vmax.f32 %v2142, 0.0
    %v2208 = vmax.f32 %v2031, 0.0
    %v2209 = vmax.f32 %v2033, 0.0
    %v2210 = vmax.f32 %v2144, 0.0
    %v2211 = vmax.f32 %v2146, 0.0
    %v2212 = vpack.c.bf16 %v2152, %v2148
    %v2213 = vpack.c.bf16 %v2153, %v2149
    %v2214 = vpack.c.bf16 %v2154, %v2150
    %v2215 = vpack.c.bf16 %v2155, %v2151
    %v2216 = vpack.c.bf16 %v2160, %v2156
    %v2217 = vpack.c.bf16 %v2161, %v2157
    %v2218 = vpack.c.bf16 %v2162, %v2158
    %v2219 = vpack.c.bf16 %v2163, %v2159
    %v2220 = vpack.c.bf16 %v2168, %v2164
    %v2221 = vpack.c.bf16 %v2169, %v2165
    %v2222 = vpack.c.bf16 %v2170, %v2166
    %v2223 = vpack.c.bf16 %v2171, %v2167
    %v2224 = vpack.c.bf16 %v2176, %v2172
    %v2225 = vpack.c.bf16 %v2177, %v2173
    %v2226 = vpack.c.bf16 %v2178, %v2174
    %v2227 = vpack.c.bf16 %v2179, %v2175
    %v2228 = vpack.c.bf16 %v2184, %v2180
    %v2229 = vpack.c.bf16 %v2185, %v2181
    %v2230 = vpack.c.bf16 %v2186, %v2182
    %v2231 = vpack.c.bf16 %v2187, %v2183
    %v2232 = vpack.c.bf16 %v2192, %v2188
    %v2233 = vpack.c.bf16 %v2193, %v2189
    %v2234 = vpack.c.bf16 %v2194, %v2190
    %v2235 = vpack.c.bf16 %v2195, %v2191
    %v2236 = vpack.c.bf16 %v2200, %v2196
    %v2237 = vpack.c.bf16 %v2201, %v2197
    %v2238 = vpack.c.bf16 %v2202, %v2198
    %v2239 = vpack.c.bf16 %v2203, %v2199
    %v2240 = vpack.c.bf16 %v2208, %v2204
    %v2241 = vpack.c.bf16 %v2209, %v2205
    %v2242 = vpack.c.bf16 %v2210, %v2206
    %v2243 = vpack.c.bf16 %v2211, %v2207
    %v2244 = vld [vmem:[%s12] sm:$0xf]
    %v2245 = vld [vmem:[%s12 + $0x4] sm:$0xf]
    %v2246 = vld [vmem:[%s12 + $0x8] sm:$0xf]
    %v2247 = vld [vmem:[%s12 + $0xc] sm:$0xf]
    %v2248 = vld [vmem:[%s12 + $0x10] sm:$0xf]
    %v2249 = vld [vmem:[%s12 + $0x14] sm:$0xf]
    %v2250 = vld [vmem:[%s12 + $0x18] sm:$0xf]
    %v2251 = vld [vmem:[%s12 + $0x1c] sm:$0xf]
    %v2252 = vld [vmem:[%s12 + $0x20] sm:$0xf]
    %v2253 = vld [vmem:[%s12 + $0x24] sm:$0xf]
    %v2254 = vld [vmem:[%s12 + $0x28] sm:$0xf]
    %v2255 = vld [vmem:[%s12 + $0x2c] sm:$0xf]
    %v2256 = vld [vmem:[%s12 + $0x30] sm:$0xf]
    %v2257 = vld [vmem:[%s12 + $0x34] sm:$0xf]
    %v2258 = vld [vmem:[%s12 + $0x38] sm:$0xf]
    %v2259 = vld [vmem:[%s12 + $0x3c] sm:$0xf]
    %v2260 = vld [vmem:[%s12 + $0x40] sm:$0xf]
    %v2261 = vld [vmem:[%s12 + $0x44] sm:$0xf]
    %v2262 = vld [vmem:[%s12 + $0x48] sm:$0xf]
    %v2263 = vld [vmem:[%s12 + $0x4c] sm:$0xf]
    %v2264 = vld [vmem:[%s12 + $0x50] sm:$0xf]
    %v2265 = vld [vmem:[%s12 + $0x54] sm:$0xf]
    %v2266 = vld [vmem:[%s12 + $0x58] sm:$0xf]
    %v2267 = vld [vmem:[%s12 + $0x5c] sm:$0xf]
    %v2268 = vld [vmem:[%s12 + $0x60] sm:$0xf]
    %v2269 = vld [vmem:[%s12 + $0x64] sm:$0xf]
    %v2270 = vld [vmem:[%s12 + $0x68] sm:$0xf]
    %v2271 = vld [vmem:[%s12 + $0x6c] sm:$0xf]
    %v2272 = vld [vmem:[%s12 + $0x70] sm:$0xf]
    %v2273 = vld [vmem:[%s12 + $0x74] sm:$0xf]
    %v2274 = vld [vmem:[%s12 + $0x78] sm:$0xf]
    %v2275 = vld [vmem:[%s12 + $0x7c] sm:$0xf]
    %v2276 = vld [vmem:[%s12 + $0x80] sm:$0xf]
    %v2277 = vld [vmem:[%s12 + $0x84] sm:$0xf]
    %v2278 = vld [vmem:[%s12 + $0x88] sm:$0xf]
    %v2279 = vld [vmem:[%s12 + $0x8c] sm:$0xf]
    %v2280 = vld [vmem:[%s12 + $0x90] sm:$0xf]
    %v2281 = vld [vmem:[%s12 + $0x94] sm:$0xf]
    %v2282 = vld [vmem:[%s12 + $0x98] sm:$0xf]
    %v2283 = vld [vmem:[%s12 + $0x9c] sm:$0xf]
    %v2284 = vld [vmem:[%s12 + $0xa0] sm:$0xf]
    %v2285 = vld [vmem:[%s12 + $0xa4] sm:$0xf]
    %v2286 = vld [vmem:[%s12 + $0xa8] sm:$0xf]
    %v2287 = vld [vmem:[%s12 + $0xac] sm:$0xf]
    %v2288 = vld [vmem:[%s12 + $0xb0] sm:$0xf]
    %v2289 = vld [vmem:[%s12 + $0xb4] sm:$0xf]
    %v2290 = vld [vmem:[%s12 + $0xb8] sm:$0xf]
    %v2291 = vld [vmem:[%s12 + $0xbc] sm:$0xf]
    %v2292 = vld [vmem:[%s12 + $0xc0] sm:$0xf]
    %v2293 = vld [vmem:[%s12 + $0xc4] sm:$0xf]
    %v2294 = vld [vmem:[%s12 + $0xc8] sm:$0xf]
    %v2295 = vld [vmem:[%s12 + $0xcc] sm:$0xf]
    %v2296 = vld [vmem:[%s12 + $0xd0] sm:$0xf]
    %v2297 = vld [vmem:[%s12 + $0xd4] sm:$0xf]
    %v2298 = vld [vmem:[%s12 + $0xd8] sm:$0xf]
    %v2299 = vld [vmem:[%s12 + $0xdc] sm:$0xf]
    %v2300 = vld [vmem:[%s12 + $0xe0] sm:$0xf]
    %v2301 = vld [vmem:[%s12 + $0xe4] sm:$0xf]
    %v2302 = vld [vmem:[%s12 + $0xe8] sm:$0xf]
    %v2303 = vld [vmem:[%s12 + $0xec] sm:$0xf]
    %v2304 = vld [vmem:[%s12 + $0xf0] sm:$0xf]
    %v2305 = vld [vmem:[%s12 + $0xf4] sm:$0xf]
    %v2306 = vld [vmem:[%s12 + $0xf8] sm:$0xf]
    %v2307 = vld [vmem:[%s12 + $0xfc] sm:$0xf]
    %v2308 = vld [vmem:[%s13] sm:$0x1]
    %v2310 = vlaneseq
    %v2311 = vshrl.u32 %v2310, 7
    %v2312 = vsub.s32 0, %v2311
    %v2313 = vrot.slane %v2308, %v2312
    %v2379 = vunpack.c.l.b16 %v2244
    %v2380 = vunpack.c.l.b16 %v2245
    %v2381 = vunpack.c.l.b16 %v2246
    %v2382 = vunpack.c.l.b16 %v2247
    %v2383 = vunpack.c.l.b16 %v2248
    %v2384 = vunpack.c.l.b16 %v2249
    %v2385 = vunpack.c.l.b16 %v2250
    %v2386 = vunpack.c.l.b16 %v2251
    %v2387 = vunpack.c.l.b16 %v2252
    %v2388 = vunpack.c.l.b16 %v2253
    %v2389 = vunpack.c.l.b16 %v2254
    %v2390 = vunpack.c.l.b16 %v2255
    %v2391 = vunpack.c.l.b16 %v2256
    %v2392 = vunpack.c.l.b16 %v2257
    %v2393 = vunpack.c.l.b16 %v2258
    %v2394 = vunpack.c.l.b16 %v2259
    %v2395 = vunpack.c.l.b16 %v2260
    %v2396 = vunpack.c.l.b16 %v2261
    %v2397 = vunpack.c.l.b16 %v2262
    %v2398 = vunpack.c.l.b16 %v2263
    %v2399 = vunpack.c.l.b16 %v2264
    %v2400 = vunpack.c.l.b16 %v2265
    %v2401 = vunpack.c.l.b16 %v2266
    %v2402 = vunpack.c.l.b16 %v2267
    %v2403 = vunpack.c.l.b16 %v2268
    %v2404 = vunpack.c.l.b16 %v2269
    %v2405 = vunpack.c.l.b16 %v2270
    %v2406 = vunpack.c.l.b16 %v2271
    %v2407 = vunpack.c.l.b16 %v2272
    %v2408 = vunpack.c.l.b16 %v2273
    %v2409 = vunpack.c.l.b16 %v2274
    %v2410 = vunpack.c.l.b16 %v2275
    %v2411 = vunpack.c.l.b16 %v2276
    %v2412 = vunpack.c.l.b16 %v2277
    %v2413 = vunpack.c.l.b16 %v2278
    %v2414 = vunpack.c.l.b16 %v2279
    %v2415 = vunpack.c.l.b16 %v2280
    %v2416 = vunpack.c.l.b16 %v2281
    %v2417 = vunpack.c.l.b16 %v2282
    %v2418 = vunpack.c.l.b16 %v2283
    %v2419 = vunpack.c.l.b16 %v2284
    %v2420 = vunpack.c.l.b16 %v2285
    %v2421 = vunpack.c.l.b16 %v2286
    %v2422 = vunpack.c.l.b16 %v2287
    %v2423 = vunpack.c.l.b16 %v2288
    %v2424 = vunpack.c.l.b16 %v2289
    %v2425 = vunpack.c.l.b16 %v2290
    %v2426 = vunpack.c.l.b16 %v2291
    %v2427 = vunpack.c.l.b16 %v2292
    %v2428 = vunpack.c.l.b16 %v2293
    %v2429 = vunpack.c.l.b16 %v2294
    %v2430 = vunpack.c.l.b16 %v2295
    %v2431 = vunpack.c.l.b16 %v2296
    %v2432 = vunpack.c.l.b16 %v2297
    %v2433 = vunpack.c.l.b16 %v2298
    %v2434 = vunpack.c.l.b16 %v2299
    %v2435 = vunpack.c.l.b16 %v2300
    %v2436 = vunpack.c.l.b16 %v2301
    %v2437 = vunpack.c.l.b16 %v2302
    %v2438 = vunpack.c.l.b16 %v2303
    %v2439 = vunpack.c.l.b16 %v2304
    %v2440 = vunpack.c.l.b16 %v2305
    %v2441 = vunpack.c.l.b16 %v2306
    %v2442 = vunpack.c.l.b16 %v2307
    %v2443 = vpack.c.b16 %v2380, %v2379
    %v2444 = vpack.c.b16 %v2382, %v2381
    %v2445 = vpack.c.b16 %v2384, %v2383
    %v2446 = vpack.c.b16 %v2386, %v2385
    %v2447 = vpack.c.b16 %v2388, %v2387
    %v2448 = vpack.c.b16 %v2390, %v2389
    %v2449 = vpack.c.b16 %v2392, %v2391
    %v2450 = vpack.c.b16 %v2394, %v2393
    %v2451 = vpack.c.b16 %v2396, %v2395
    %v2452 = vpack.c.b16 %v2398, %v2397
    %v2453 = vpack.c.b16 %v2400, %v2399
    %v2454 = vpack.c.b16 %v2402, %v2401
    %v2455 = vpack.c.b16 %v2404, %v2403
    %v2456 = vpack.c.b16 %v2406, %v2405
    %v2457 = vpack.c.b16 %v2408, %v2407
    %v2458 = vpack.c.b16 %v2410, %v2409
    %v2459 = vpack.c.b16 %v2412, %v2411
    %v2460 = vpack.c.b16 %v2414, %v2413
    %v2461 = vpack.c.b16 %v2416, %v2415
    %v2462 = vpack.c.b16 %v2418, %v2417
    %v2463 = vpack.c.b16 %v2420, %v2419
    %v2464 = vpack.c.b16 %v2422, %v2421
    %v2465 = vpack.c.b16 %v2424, %v2423
    %v2466 = vpack.c.b16 %v2426, %v2425
    %v2467 = vpack.c.b16 %v2428, %v2427
    %v2468 = vpack.c.b16 %v2430, %v2429
    %v2469 = vpack.c.b16 %v2432, %v2431
    %v2470 = vpack.c.b16 %v2434, %v2433
    %v2471 = vpack.c.b16 %v2436, %v2435
    %v2472 = vpack.c.b16 %v2438, %v2437
    %v2473 = vpack.c.b16 %v2440, %v2439
    %v2474 = vpack.c.b16 %v2442, %v2441
    %2507 = vmatprep.subr.bf16.mxu0 0
    %2508 = vmatpush1.bf16.msra.mxu0 %v2450
    %2509 = vmatprep.subr.bf16.mxu0 0
    %2510 = vmatpush1.bf16.msra.mxu0 %v2449
    %2511 = vmatprep.subr.bf16.mxu0 0
    %2512 = vmatpush1.bf16.msra.mxu0 %v2448
    %2513 = vmatprep.subr.bf16.mxu0 0
    %2514 = vmatpush1.bf16.msra.mxu0 %v2447
    %2515 = vmatprep.subr.bf16.mxu0 0
    %2516 = vmatpush1.bf16.msra.mxu0 %v2446
    %2517 = vmatprep.subr.bf16.mxu0 0
    %2518 = vmatpush1.bf16.msra.mxu0 %v2445
    %2519 = vmatprep.subr.bf16.mxu0 0
    %2520 = vmatpush1.bf16.msra.mxu0 %v2444
    %2521 = vmatprep.subr.bf16.mxu0 0
    %2522 = vmatpush1.bf16.msra.mxu0 %v2443
    %2523 = vmatprep.subr.bf16.mxu0 0
    %2524 = vmatpush2.bf16.msra.mxu0 %v2458
    %2525 = vmatprep.subr.bf16.mxu0 0
    %2526 = vmatpush2.bf16.msra.mxu0 %v2457
    %2527 = vmatprep.subr.bf16.mxu0 0
    %2528 = vmatpush2.bf16.msra.mxu0 %v2456
    %2529 = vmatprep.subr.bf16.mxu0 0
    %2530 = vmatpush2.bf16.msra.mxu0 %v2455
    %2531 = vmatprep.subr.bf16.mxu0 0
    %2532 = vmatpush2.bf16.msra.mxu0 %v2454
    %2533 = vmatprep.subr.bf16.mxu0 0
    %2534 = vmatpush2.bf16.msra.mxu0 %v2453
    %2535 = vmatprep.subr.bf16.mxu0 0
    %2536 = vmatpush2.bf16.msra.mxu0 %v2452
    %2537 = vmatprep.subr.bf16.mxu0 0
    %2538 = vmatpush2.bf16.msra.mxu0 %v2451
    %2539 = vmatprep.mubr.bf16.mxu0 %v2213
    %2540 = vmatmul.mubr.bf16.gmra.mxu0 %v2212
    %v2541 = vpop.f32.mrf.mxu0
    %v2542 = vadd.f32 %v2313, %v2541
    %v2543 = vpop.f32.mrf.mxu0
    %v2544 = vpop.f32.mrf.mxu0
    %v2545 = vadd.f32 %v2313, %v2544
    %v2546 = vpop.f32.mrf.mxu0
    %2547 = vmatprep.mubr.bf16.mxu0 %v2217
    %2548 = vmatmul.mubr.bf16.gmra.mxu0 %v2216
    %v2549 = vpop.f32.mrf.mxu0
    %v2550 = vadd.f32 %v2313, %v2549
    %v2551 = vpop.f32.mrf.mxu0
    %v2552 = vpop.f32.mrf.mxu0
    %v2553 = vadd.f32 %v2313, %v2552
    %v2554 = vpop.f32.mrf.mxu0
    %2555 = vmatprep.mubr.bf16.mxu0 %v2221
    %2556 = vmatmul.mubr.bf16.gmra.mxu0 %v2220
    %v2557 = vpop.f32.mrf.mxu0
    %v2558 = vadd.f32 %v2313, %v2557
    %v2559 = vpop.f32.mrf.mxu0
    %v2560 = vpop.f32.mrf.mxu0
    %v2561 = vadd.f32 %v2313, %v2560
    %v2562 = vpop.f32.mrf.mxu0
    %2563 = vmatprep.mubr.bf16.mxu0 %v2225
    %2564 = vmatmul.mubr.bf16.gmra.mxu0 %v2224
    %v2565 = vpop.f32.mrf.mxu0
    %v2566 = vadd.f32 %v2313, %v2565
    %v2567 = vpop.f32.mrf.mxu0
    %v2568 = vpop.f32.mrf.mxu0
    %v2569 = vadd.f32 %v2313, %v2568
    %v2570 = vpop.f32.mrf.mxu0
    %2571 = vmatprep.mubr.bf16.mxu0 %v2229
    %2572 = vmatmul.mubr.bf16.gmra.mxu0 %v2228
    %v2573 = vpop.f32.mrf.mxu0
    %v2574 = vadd.f32 %v2313, %v2573
    %v2575 = vpop.f32.mrf.mxu0
    %v2576 = vpop.f32.mrf.mxu0
    %v2577 = vadd.f32 %v2313, %v2576
    %v2578 = vpop.f32.mrf.mxu0
    %2579 = vmatprep.mubr.bf16.mxu0 %v2233
    %2580 = vmatmul.mubr.bf16.gmra.mxu0 %v2232
    %v2581 = vpop.f32.mrf.mxu0
    %v2582 = vadd.f32 %v2313, %v2581
    %v2583 = vpop.f32.mrf.mxu0
    %v2584 = vpop.f32.mrf.mxu0
    %v2585 = vadd.f32 %v2313, %v2584
    %v2586 = vpop.f32.mrf.mxu0
    %2587 = vmatprep.mubr.bf16.mxu0 %v2237
    %2588 = vmatmul.mubr.bf16.gmra.mxu0 %v2236
    %v2589 = vpop.f32.mrf.mxu0
    %v2590 = vadd.f32 %v2313, %v2589
    %v2591 = vpop.f32.mrf.mxu0
    %v2592 = vpop.f32.mrf.mxu0
    %v2593 = vadd.f32 %v2313, %v2592
    %v2594 = vpop.f32.mrf.mxu0
    %2595 = vmatprep.mubr.bf16.mxu0 %v2241
    %2596 = vmatmul.mubr.bf16.gmra.mxu0 %v2240
    %v2597 = vpop.f32.mrf.mxu0
    %v2598 = vadd.f32 %v2313, %v2597
    %v2599 = vpop.f32.mrf.mxu0
    %v2600 = vpop.f32.mrf.mxu0
    %v2601 = vadd.f32 %v2313, %v2600
    %v2602 = vpop.f32.mrf.mxu0
    %2603 = vdwg.mxu0
    %2604 = vmatprep.subr.bf16.mxu0 0
    %2605 = vmatpush1.bf16.msra.mxu0 %v2466
    %2606 = vmatprep.subr.bf16.mxu0 0
    %2607 = vmatpush1.bf16.msra.mxu0 %v2465
    %2608 = vmatprep.subr.bf16.mxu0 0
    %2609 = vmatpush1.bf16.msra.mxu0 %v2464
    %2610 = vmatprep.subr.bf16.mxu0 0
    %2611 = vmatpush1.bf16.msra.mxu0 %v2463
    %2612 = vmatprep.subr.bf16.mxu0 0
    %2613 = vmatpush1.bf16.msra.mxu0 %v2462
    %2614 = vmatprep.subr.bf16.mxu0 0
    %2615 = vmatpush1.bf16.msra.mxu0 %v2461
    %2616 = vmatprep.subr.bf16.mxu0 0
    %2617 = vmatpush1.bf16.msra.mxu0 %v2460
    %2618 = vmatprep.subr.bf16.mxu0 0
    %2619 = vmatpush1.bf16.msra.mxu0 %v2459
    %2620 = vmatprep.subr.bf16.mxu0 0
    %2621 = vmatpush2.bf16.msra.mxu0 %v2474
    %2622 = vmatprep.subr.bf16.mxu0 0
    %2623 = vmatpush2.bf16.msra.mxu0 %v2473
    %2624 = vmatprep.subr.bf16.mxu0 0
    %2625 = vmatpush2.bf16.msra.mxu0 %v2472
    %2626 = vmatprep.subr.bf16.mxu0 0
    %2627 = vmatpush2.bf16.msra.mxu0 %v2471
    %2628 = vmatprep.subr.bf16.mxu0 0
    %2629 = vmatpush2.bf16.msra.mxu0 %v2470
    %2630 = vmatprep.subr.bf16.mxu0 0
    %2631 = vmatpush2.bf16.msra.mxu0 %v2469
    %2632 = vmatprep.subr.bf16.mxu0 0
    %2633 = vmatpush2.bf16.msra.mxu0 %v2468
    %2634 = vmatprep.subr.bf16.mxu0 0
    %2635 = vmatpush2.bf16.msra.mxu0 %v2467
    %2636 = vmatprep.mubr.bf16.mxu0 %v2215
    %2637 = vmatmul.mubr.bf16.gmra.mxu0 %v2214
    %v2638 = vpop.f32.mrf.mxu0
    %v2639 = vadd.f32 %v2542, %v2638
    %v2640 = vpop.f32.mrf.mxu0
    %v2641 = vpop.f32.mrf.mxu0
    %v2642 = vadd.f32 %v2545, %v2641
    %v2643 = vpop.f32.mrf.mxu0
    %2644 = vmatprep.mubr.bf16.mxu0 %v2219
    %2645 = vmatmul.mubr.bf16.gmra.mxu0 %v2218
    %v2646 = vpop.f32.mrf.mxu0
    %v2647 = vadd.f32 %v2550, %v2646
    %v2648 = vpop.f32.mrf.mxu0
    %v2649 = vpop.f32.mrf.mxu0
    %v2650 = vadd.f32 %v2553, %v2649
    %v2651 = vpop.f32.mrf.mxu0
    %2652 = vmatprep.mubr.bf16.mxu0 %v2223
    %2653 = vmatmul.mubr.bf16.gmra.mxu0 %v2222
    %v2654 = vpop.f32.mrf.mxu0
    %v2655 = vadd.f32 %v2558, %v2654
    %v2656 = vpop.f32.mrf.mxu0
    %v2657 = vpop.f32.mrf.mxu0
    %v2658 = vadd.f32 %v2561, %v2657
    %v2659 = vpop.f32.mrf.mxu0
    %2660 = vmatprep.mubr.bf16.mxu0 %v2227
    %2661 = vmatmul.mubr.bf16.gmra.mxu0 %v2226
    %v2662 = vpop.f32.mrf.mxu0
    %v2663 = vadd.f32 %v2566, %v2662
    %v2664 = vpop.f32.mrf.mxu0
    %v2665 = vpop.f32.mrf.mxu0
    %v2666 = vadd.f32 %v2569, %v2665
    %v2667 = vpop.f32.mrf.mxu0
    %2668 = vmatprep.mubr.bf16.mxu0 %v2231
    %2669 = vmatmul.mubr.bf16.gmra.mxu0 %v2230
    %v2670 = vpop.f32.mrf.mxu0
    %v2671 = vadd.f32 %v2574, %v2670
    %v2672 = vpop.f32.mrf.mxu0
    %v2673 = vpop.f32.mrf.mxu0
    %v2674 = vadd.f32 %v2577, %v2673
    %v2675 = vpop.f32.mrf.mxu0
    %2676 = vmatprep.mubr.bf16.mxu0 %v2235
    %2677 = vmatmul.mubr.bf16.gmra.mxu0 %v2234
    %v2678 = vpop.f32.mrf.mxu0
    %v2679 = vadd.f32 %v2582, %v2678
    %v2680 = vpop.f32.mrf.mxu0
    %v2681 = vpop.f32.mrf.mxu0
    %v2682 = vadd.f32 %v2585, %v2681
    %v2683 = vpop.f32.mrf.mxu0
    %2684 = vmatprep.mubr.bf16.mxu0 %v2239
    %2685 = vmatmul.mubr.bf16.gmra.mxu0 %v2238
    %v2686 = vpop.f32.mrf.mxu0
    %v2687 = vadd.f32 %v2590, %v2686
    %v2688 = vpop.f32.mrf.mxu0
    %v2689 = vpop.f32.mrf.mxu0
    %v2690 = vadd.f32 %v2593, %v2689
    %v2691 = vpop.f32.mrf.mxu0
    %2692 = vmatprep.mubr.bf16.mxu0 %v2243
    %2693 = vmatmul.mubr.bf16.gmra.mxu0 %v2242
    %v2694 = vpop.f32.mrf.mxu0
    %v2695 = vadd.f32 %v2598, %v2694
    %v2696 = vpop.f32.mrf.mxu0
    %v2697 = vpop.f32.mrf.mxu0
    %v2698 = vadd.f32 %v2601, %v2697
    %v2699 = vpop.f32.mrf.mxu0
    %2700 = vdwg.mxu0
    %v2701 = vadd.f32 %v2639, %v2642
    %v2702 = vadd.f32 %v2701, %v2647
    %v2703 = vadd.f32 %v2702, %v2650
    %v2704 = vadd.f32 %v2703, %v2655
    %v2705 = vadd.f32 %v2704, %v2658
    %v2706 = vadd.f32 %v2705, %v2663
    %v2707 = vadd.f32 %v2706, %v2666
    %v2708 = vadd.f32 %v2707, %v2671
    %v2709 = vadd.f32 %v2708, %v2674
    %v2710 = vadd.f32 %v2709, %v2679
    %v2711 = vadd.f32 %v2710, %v2682
    %v2712 = vadd.f32 %v2711, %v2687
    %v2713 = vadd.f32 %v2712, %v2690
    %v2714 = vadd.f32 %v2713, %v2695
    %v2715 = vadd.f32 %v2714, %v2698
    %v2716 = vrot.slane %v2715, 4
    %v2717 = vadd.f32 %v2715, %v2716
    %v2718 = vrot.slane %v2717, 2
    %v2719 = vadd.f32 %v2717, %v2718
    %v2720 = vrot.slane %v2719, 1
    %v2721 = vadd.f32 %v2719, %v2720
    %2722 = vst [vmem:[#allocation6] sm:$0x1] %v2721
    // Predicated region
    $region58: #{_lambda_.1} parent=1 // pred_check
      _
    $region59: #{_lambda_.1} parent=1 // pred_check_branch
      %2724 = sbr.rel (0) target = $region61
    $region60: #{_lambda_.1} parent=1 // pred_region
      %s2726 = ssub.s32 2048, 2048
      %2727 = vsyncadd [#allocation3], %s2726
      %s2728 = sshll.u32 [#allocation2], 4
      %s2729 = int_to_ptr.vmem [resolvable:$true] %s2728
      %2734 = dma.vmem_to_hbm [thread:$0]  %s2729, 2048, %s14, [#allocation3], 128, 128, 8
    $region61: #{_lambda_.1} parent=1 // pred_fallthru
      _
    // Predicated region
    $region62: #{_lambda_.1} parent=1 // pred_check
      _
    $region63: #{_lambda_.1} parent=1 // pred_check_branch
      %2736 = sbr.rel (0) target = $region65
    $region64: #{_lambda_.1} parent=1 // pred_region
      %s2738 = ssub.s32 16, 16
      %2739 = vsyncadd [#allocation5], %s2738
      %s2741 = sshll.u32 [#allocation4], 4
      %s2742 = int_to_ptr.vmem [resolvable:$true] %s2741
      %2744 = dma.vmem_to_hbm [thread:$0]  %s2742, 16, %s15, [#allocation5]
    $region65: #{_lambda_.1} parent=1 // pred_fallthru
      _
    // Predicated region
    $region66: #{_lambda_.1} parent=1 // pred_check
      _
    $region67: #{_lambda_.1} parent=1 // pred_check_branch
      %2746 = sbr.rel (0) target = $region69
    $region68: #{_lambda_.1} parent=1 // pred_region
      %s2748 = ssub.s32 16, 16
      %2749 = vsyncadd [#allocation5], %s2748
      %s2751 = sshll.u32 [#allocation6], 4
      %s2752 = int_to_ptr.vmem [resolvable:$true] %s2751
      %2754 = dma.vmem_to_hbm [thread:$0]  %s2752, 16, %s16, [#allocation5]
    $region69: #{_lambda_.1} parent=1 // pred_fallthru
      _
    // Predicated region
    $region70: #{_lambda_.1} parent=1 // pred_check
      _
    $region71: #{_lambda_.1} parent=1 // pred_check_branch
      %2756 = sbr.rel (0) target = $region73
    $region72: #{_lambda_.1} parent=1 // pred_region
      %2757 = dma.done [#allocation3], 2048
    $region73: #{_lambda_.1} parent=1 // pred_fallthru
      _
    // Predicated region
    $region74: #{_lambda_.1} parent=1 // pred_check
      _
    $region75: #{_lambda_.1} parent=1 // pred_check_branch
      %2759 = sbr.rel (0) target = $region77
    $region76: #{_lambda_.1} parent=1 // pred_region
      %2760 = dma.done [#allocation5], 16
    $region77: #{_lambda_.1} parent=1 // pred_fallthru
      _
    // Predicated region
    $region78: #{_lambda_.1} parent=1 // pred_check
      _
    $region79: #{_lambda_.1} parent=1 // pred_check_branch
      %2762 = sbr.rel (0) target = $region81
    $region80: #{_lambda_.1} parent=1 // pred_region
      %2763 = dma.done [#allocation5], 16
    $region81: #{_lambda_.1} parent=1 // pred_fallthru
      _
    %2764 = vsyncpa [#allocation3], 1
    %2765 = vsyncpa [#allocation5], 1

// kernel: _lambda_.1
$region0: #{_lambda_.1}
  #allocation0 [shape = 'u32[]', space=smem, size = 0x4, offset = 0x4, fixed_abs, tag = 'smem constant byte address 0x4 - core index']
  #allocation1 [shape = 'u32[144,128]{1,0:T(1,128)}', space=vmem, size = 0x12000, scoped, tag = 'internal scratch']
  %s0 = inlined_call_operand.vmem [shape: f32[2,64,128], index: 0, kind: input, shape index: {}]
  %s1 = inlined_call_operand.vmem [shape: s8[2,1,64], index: 1, kind: input, shape index: {}]
  %s2 = inlined_call_operand.vmem [shape: f32[1,128], index: 2, kind: input, shape index: {}]
  %s3 = inlined_call_operand.vmem [shape: f32[1,128], index: 3, kind: input, shape index: {}]
  %s4 = inlined_call_operand.vmem [shape: bf16[128,384], index: 4, kind: input, shape index: {}]
  %s5 = inlined_call_operand.vmem [shape: f32[1,384], index: 5, kind: input, shape index: {}]
  %s6 = inlined_call_operand.vmem [shape: bf16[128,128], index: 6, kind: input, shape index: {}]
  %s7 = inlined_call_operand.vmem [shape: f32[1,128], index: 7, kind: input, shape index: {}]
  %s8 = inlined_call_operand.vmem [shape: f32[1,128], index: 8, kind: input, shape index: {}]
  %s9 = inlined_call_operand.vmem [shape: f32[1,128], index: 9, kind: input, shape index: {}]
  %s10 = inlined_call_operand.vmem [shape: bf16[128,512], index: 10, kind: input, shape index: {}]
  %s11 = inlined_call_operand.vmem [shape: f32[1,512], index: 11, kind: input, shape index: {}]
  %s12 = inlined_call_operand.vmem [shape: bf16[512,128], index: 12, kind: input, shape index: {}]
  %s13 = inlined_call_operand.vmem [shape: f32[1,128], index: 13, kind: input, shape index: {}]
  %s14 = inlined_call_operand.hbm [shape: f32[2,64,128], index: 14, kind: output, shape index: {0}]
  %s15 = inlined_call_operand.hbm [shape: f32[1,1,128], index: 15, kind: output, shape index: {1}]
  %s16 = inlined_call_operand.hbm [shape: f32[1,1,128], index: 16, kind: output, shape index: {2}]
  %17 = xla_tuple %s14, %s15, %s16
  %s18 = sld [smem:[#allocation0]]
  $region82: #{_lambda_.1} parent=0
    _
  %s20 = ssub.s32 1, %s18
  %s21 = scalar_select 0, %s20, %s18
  $region1: #{_lambda_.1} parent=0
    #allocation2 [shape = 'u8[65536]{0}', space=vmem, size = 0x10000, scoped, tag = 'output window, operand 0, single buffered']
    #allocation3 [shape = 's32[1]{0}', space=sflag, size = 0x4, scoped, tag = 'scoped memory for _lambda_.1']
    #allocation4 [shape = 'u8[512]{0}', space=vmem, size = 0x400, scoped, tag = 'output window, operand 1, single buffered']
    #allocation5 [shape = 's32[1]{0}', space=sflag, size = 0x4, scoped, tag = 'scoped memory for _lambda_.1']
    #allocation6 [shape = 'u8[512]{0}', space=vmem, size = 0x400, scoped, tag = 'output window, operand 2, single buffered']
    %22 = vsyncpa [#allocation3], 0
    %23 = vsyncpa [#allocation5], 0
    // Predicated region
    $region2: #{_lambda_.1} parent=1 // pred_check
      _
    $region3: #{_lambda_.1} parent=1 // pred_check_branch
      %25 = sbr.rel (0) target = $region5
    $region4: #{_lambda_.1} parent=1 // pred_region
      _
    $region5: #{_lambda_.1} parent=1 // pred_fallthru
      _
    // Predicated region
    $region6: #{_lambda_.1} parent=1 // pred_check
      _
    $region7: #{_lambda_.1} parent=1 // pred_check_branch
      %27 = sbr.rel (0) target = $region9
    $region8: #{_lambda_.1} parent=1 // pred_region
      _
    $region9: #{_lambda_.1} parent=1 // pred_fallthru
      _
    // Predicated region
    $region10: #{_lambda_.1} parent=1 // pred_check
      _
    $region11: #{_lambda_.1} parent=1 // pred_check_branch
      %29 = sbr.rel (0) target = $region13
    $region12: #{_lambda_.1} parent=1 // pred_region
      _
    $region13: #{_lambda_.1} parent=1 // pred_fallthru
      _
    // Predicated region
    $region14: #{_lambda_.1} parent=1 // pred_check
      _
    $region15: #{_lambda_.1} parent=1 // pred_check_branch
      %31 = sbr.rel (0) target = $region17
    $region16: #{_lambda_.1} parent=1 // pred_region
      _
    $region17: #{_lambda_.1} parent=1 // pred_fallthru
      _
    // Predicated region
    $region18: #{_lambda_.1} parent=1 // pred_check
      _
    $region19: #{_lambda_.1} parent=1 // pred_check_branch
      %33 = sbr.rel (0) target = $region21
    $region20: #{_lambda_.1} parent=1 // pred_region
      _
    $region21: #{_lambda_.1} parent=1 // pred_fallthru
      _
    // Predicated region
    $region22: #{_lambda_.1} parent=1 // pred_check
      _
    $region23: #{_lambda_.1} parent=1 // pred_check_branch
      %35 = sbr.rel (0) target = $region25
    $region24: #{_lambda_.1} parent=1 // pred_region
      _
    $region25: #{_lambda_.1} parent=1 // pred_fallthru
      _
    // Predicated region
    $region26: #{_lambda_.1} parent=1 // pred_check
      _
    $region27: #{_lambda_.1} parent=1 // pred_check_branch
      %37 = sbr.rel (0) target = $region29
    $region28: #{_lambda_.1} parent=1 // pred_region
      _
    $region29: #{_lambda_.1} parent=1 // pred_fallthru
      _
    // Predicated region
    $region30: #{_lambda_.1} parent=1 // pred_check
      _
    $region31: #{_lambda_.1} parent=1 // pred_check_branch
      %39 = sbr.rel (0) target = $region33
    $region32: #{_lambda_.1} parent=1 // pred_region
      _
    $region33: #{_lambda_.1} parent=1 // pred_fallthru
      _
    // Predicated region
    $region34: #{_lambda_.1} parent=1 // pred_check
      _
    $region35: #{_lambda_.1} parent=1 // pred_check_branch
      %41 = sbr.rel (0) target = $region37
    $region36: #{_lambda_.1} parent=1 // pred_region
      _
    $region37: #{_lambda_.1} parent=1 // pred_fallthru
      _
    // Predicated region
    $region38: #{_lambda_.1} parent=1 // pred_check
      _
    $region39: #{_lambda_.1} parent=1 // pred_check_branch
      %43 = sbr.rel (0) target = $region41
    $region40: #{_lambda_.1} parent=1 // pred_region
      _
    $region41: #{_lambda_.1} parent=1 // pred_fallthru
      _
    // Predicated region
    $region42: #{_lambda_.1} parent=1 // pred_check
      _
    $region43: #{_lambda_.1} parent=1 // pred_check_branch
      %45 = sbr.rel (0) target = $region45
    $region44: #{_lambda_.1} parent=1 // pred_region
      _
    $region45: #{_lambda_.1} parent=1 // pred_fallthru
      _
    // Predicated region
    $region46: #{_lambda_.1} parent=1 // pred_check
      _
    $region47: #{_lambda_.1} parent=1 // pred_check_branch
      %47 = sbr.rel (0) target = $region49
    $region48: #{_lambda_.1} parent=1 // pred_region
      _
    $region49: #{_lambda_.1} parent=1 // pred_fallthru
      _
    // Predicated region
    $region50: #{_lambda_.1} parent=1 // pred_check
      _
    $region51: #{_lambda_.1} parent=1 // pred_check_branch
      %49 = sbr.rel (0) target = $region53
    $region52: #{_lambda_.1} parent=1 // pred_region
      _
    $region53: #{_lambda_.1} parent=1 // pred_fallthru
      _
    // Predicated region
    $region54: #{_lambda_.1} parent=1 // pred_check
      _
    $region55: #{_lambda_.1} parent=1 // pred_check_branch
      %51 = sbr.rel (0) target = $region57
    $region56: #{_lambda_.1} parent=1 // pred_region
      _
    $region57: #{_lambda_.1} parent=1 // pred_fallthru
      _
    %v53 = vld [vmem:[%s0] sm:$0xff]
    %v54 = vld [vmem:[%s0 + $0x8] sm:$0xff]
    %v55 = vld [vmem:[%s0 + $0x10] sm:$0xff]
    %v56 = vld [vmem:[%s0 + $0x18] sm:$0xff]
    %v57 = vld [vmem:[%s0 + $0x20] sm:$0xff]
    %v58 = vld [vmem:[%s0 + $0x28] sm:$0xff]
    %v59 = vld [vmem:[%s0 + $0x30] sm:$0xff]
    %v60 = vld [vmem:[%s0 + $0x38] sm:$0xff]
    %v61 = vld [vmem:[%s0 + $0x40] sm:$0xff]
    %v62 = vld [vmem:[%s0 + $0x48] sm:$0xff]
    %v63 = vld [vmem:[%s0 + $0x50] sm:$0xff]
    %v64 = vld [vmem:[%s0 + $0x58] sm:$0xff]
    %v65 = vld [vmem:[%s0 + $0x60] sm:$0xff]
    %v66 = vld [vmem:[%s0 + $0x68] sm:$0xff]
    %v67 = vld [vmem:[%s0 + $0x70] sm:$0xff]
    %v68 = vld [vmem:[%s0 + $0x78] sm:$0xff]
    %v69 = vmul.f32 %v53, 4.0
    %v70 = vmul.f32 %v54, 4.0
    %v71 = vmul.f32 %v55, 4.0
    %v72 = vmul.f32 %v56, 4.0
    %v73 = vmul.f32 %v57, 4.0
    %v74 = vmul.f32 %v58, 4.0
    %v75 = vmul.f32 %v59, 4.0
    %v76 = vmul.f32 %v60, 4.0
    %v77 = vmul.f32 %v61, 4.0
    %v78 = vmul.f32 %v62, 4.0
    %v79 = vmul.f32 %v63, 4.0
    %v80 = vmul.f32 %v64, 4.0
    %v81 = vmul.f32 %v65, 4.0
    %v82 = vmul.f32 %v66, 4.0
    %v83 = vmul.f32 %v67, 4.0
    %v84 = vmul.f32 %v68, 4.0
    %85 = vst [vmem:[#allocation2] sm:$0xff] %v69
    %86 = vst [vmem:[#allocation2 + $0x8] sm:$0xff] %v70
    %87 = vst [vmem:[#allocation2 + $0x10] sm:$0xff] %v71
    %88 = vst [vmem:[#allocation2 + $0x18] sm:$0xff] %v72
    %89 = vst [vmem:[#allocation2 + $0x20] sm:$0xff] %v73
    %90 = vst [vmem:[#allocation2 + $0x28] sm:$0xff] %v74
    %91 = vst [vmem:[#allocation2 + $0x30] sm:$0xff] %v75
    %92 = vst [vmem:[#allocation2 + $0x38] sm:$0xff] %v76
    %93 = vst [vmem:[#allocation2 + $0x40] sm:$0xff] %v77
    %94 = vst [vmem:[#allocation2 + $0x48] sm:$0xff] %v78
    %95 = vst [vmem:[#allocation2 + $0x50] sm:$0xff] %v79
    %96 = vst [vmem:[#allocation2 + $0x58] sm:$0xff] %v80
    %97 = vst [vmem:[#allocation2 + $0x60] sm:$0xff] %v81
    %98 = vst [vmem:[#allocation2 + $0x68] sm:$0xff] %v82
    %99 = vst [vmem:[#allocation2 + $0x70] sm:$0xff] %v83
    %100 = vst [vmem:[#allocation2 + $0x78] sm:$0xff] %v84
    %101 = vadd.xlane.f32.xlu0 %v53
    %v102 = vpop.xlane.xlu0 %101
    %103 = vadd.xlane.f32.xlu0 %v54
    %v104 = vpop.xlane.xlu0 %103
    %105 = vadd.xlane.f32.xlu0 %v55
    %v106 = vpop.xlane.xlu0 %105
    %107 = vadd.xlane.f32.xlu0 %v56
    %v108 = vpop.xlane.xlu0 %107
    %109 = vadd.xlane.f32.xlu0 %v57
    %v110 = vpop.xlane.xlu0 %109
    %111 = vadd.xlane.f32.xlu0 %v58
    %v112 = vpop.xlane.xlu0 %111
    %113 = vadd.xlane.f32.xlu0 %v59
    %v114 = vpop.xlane.xlu0 %113
    %115 = vadd.xlane.f32.xlu0 %v60
    %v116 = vpop.xlane.xlu0 %115
    %117 = vadd.xlane.f32.xlu0 %v61
    %v118 = vpop.xlane.xlu0 %117
    %119 = vadd.xlane.f32.xlu0 %v62
    %v120 = vpop.xlane.xlu0 %119
    %121 = vadd.xlane.f32.xlu0 %v63
    %v122 = vpop.xlane.xlu0 %121
    %123 = vadd.xlane.f32.xlu0 %v64
    %v124 = vpop.xlane.xlu0 %123
    %125 = vadd.xlane.f32.xlu0 %v65
    %v126 = vpop.xlane.xlu0 %125
    %127 = vadd.xlane.f32.xlu0 %v66
    %v128 = vpop.xlane.xlu0 %127
    %129 = vadd.xlane.f32.xlu0 %v67
    %v130 = vpop.xlane.xlu0 %129
    %131 = vadd.xlane.f32.xlu0 %v68
    %v132 = vpop.xlane.xlu0 %131
    %v133 = vrcp.pop 128.0
    %v134 = vmul.f32 %v102, %v133
    %v135 = vmul.f32 %v104, %v133
    %v136 = vmul.f32 %v106, %v133
    %v137 = vmul.f32 %v108, %v133
    %v138 = vmul.f32 %v110, %v133
    %v139 = vmul.f32 %v112, %v133
    %v140 = vmul.f32 %v114, %v133
    %v141 = vmul.f32 %v116, %v133
    %v142 = vmul.f32 %v118, %v133
    %v143 = vmul.f32 %v120, %v133
    %v144 = vmul.f32 %v122, %v133
    %v145 = vmul.f32 %v124, %v133
    %v146 = vmul.f32 %v126, %v133
    %v147 = vmul.f32 %v128, %v133
    %v148 = vmul.f32 %v130, %v133
    %v149 = vmul.f32 %v132, %v133
    %v150 = vsub.f32 %v53, %v134
    %v151 = vsub.f32 %v54, %v135
    %v152 = vsub.f32 %v55, %v136
    %v153 = vsub.f32 %v56, %v137
    %v154 = vsub.f32 %v57, %v138
    %v155 = vsub.f32 %v58, %v139
    %v156 = vsub.f32 %v59, %v140
    %v157 = vsub.f32 %v60, %v141
    %v158 = vsub.f32 %v61, %v142
    %v159 = vsub.f32 %v62, %v143
    %v160 = vsub.f32 %v63, %v144
    %v161 = vsub.f32 %v64, %v145
    %v162 = vsub.f32 %v65, %v146
    %v163 = vsub.f32 %v66, %v147
    %v164 = vsub.f32 %v67, %v148
    %v165 = vsub.f32 %v68, %v149
    %v166 = vmul.f32 %v150, %v150
    %v167 = vmul.f32 %v151, %v151
    %v168 = vmul.f32 %v152, %v152
    %v169 = vmul.f32 %v153, %v153
    %v170 = vmul.f32 %v154, %v154
    %v171 = vmul.f32 %v155, %v155
    %v172 = vmul.f32 %v156, %v156
    %v173 = vmul.f32 %v157, %v157
    %v174 = vmul.f32 %v158, %v158
    %v175 = vmul.f32 %v159, %v159
    %v176 = vmul.f32 %v160, %v160
    %v177 = vmul.f32 %v161, %v161
    %v178 = vmul.f32 %v162, %v162
    %v179 = vmul.f32 %v163, %v163
    %v180 = vmul.f32 %v164, %v164
    %v181 = vmul.f32 %v165, %v165
    %182 = vadd.xlane.f32.xlu0 %v166
    %v183 = vpop.xlane.xlu0 %182
    %184 = vadd.xlane.f32.xlu0 %v167
    %v185 = vpop.xlane.xlu0 %184
    %186 = vadd.xlane.f32.xlu0 %v168
    %v187 = vpop.xlane.xlu0 %186
    %188 = vadd.xlane.f32.xlu0 %v169
    %v189 = vpop.xlane.xlu0 %188
    %190 = vadd.xlane.f32.xlu0 %v170
    %v191 = vpop.xlane.xlu0 %190
    %192 = vadd.xlane.f32.xlu0 %v171
    %v193 = vpop.xlane.xlu0 %192
    %194 = vadd.xlane.f32.xlu0 %v172
    %v195 = vpop.xlane.xlu0 %194
    %196 = vadd.xlane.f32.xlu0 %v173
    %v197 = vpop.xlane.xlu0 %196
    %198 = vadd.xlane.f32.xlu0 %v174
    %v199 = vpop.xlane.xlu0 %198
    %200 = vadd.xlane.f32.xlu0 %v175
    %v201 = vpop.xlane.xlu0 %200
    %202 = vadd.xlane.f32.xlu0 %v176
    %v203 = vpop.xlane.xlu0 %202
    %204 = vadd.xlane.f32.xlu0 %v177
    %v205 = vpop.xlane.xlu0 %204
    %206 = vadd.xlane.f32.xlu0 %v178
    %v207 = vpop.xlane.xlu0 %206
    %208 = vadd.xlane.f32.xlu0 %v179
    %v209 = vpop.xlane.xlu0 %208
    %210 = vadd.xlane.f32.xlu0 %v180
    %v211 = vpop.xlane.xlu0 %210
    %212 = vadd.xlane.f32.xlu0 %v181
    %v213 = vpop.xlane.xlu0 %212
    %v214 = vmul.f32 %v183, 0.007874016
    %v215 = vmul.f32 %v185, 0.007874016
    %v216 = vmul.f32 %v187, 0.007874016
    %v217 = vmul.f32 %v189, 0.007874016
    %v218 = vmul.f32 %v191, 0.007874016
    %v219 = vmul.f32 %v193, 0.007874016
    %v220 = vmul.f32 %v195, 0.007874016
    %v221 = vmul.f32 %v197, 0.007874016
    %v222 = vmul.f32 %v199, 0.007874016
    %v223 = vmul.f32 %v201, 0.007874016
    %v224 = vmul.f32 %v203, 0.007874016
    %v225 = vmul.f32 %v205, 0.007874016
    %v226 = vmul.f32 %v207, 0.007874016
    %v227 = vmul.f32 %v209, 0.007874016
    %v228 = vmul.f32 %v211, 0.007874016
    %v229 = vmul.f32 %v213, 0.007874016
    %v230 = vrsqrt.pop %v214
    %v231 = vmul.f32 %v214, %v230
    %vm232 = vcmp.eq.f32.partialorder %v214, inf
    %v233 = vsel %vm232, %v214, %v231
    %vm234 = vcmp.eq.f32.partialorder %v214, 0.0
    %v235 = vand.u32 %v214, 2147483648
    %v236 = vsel %vm234, %v235, %v233
    %v237 = vrsqrt.pop %v215
    %v238 = vmul.f32 %v215, %v237
    %vm239 = vcmp.eq.f32.partialorder %v215, inf
    %v240 = vsel %vm239, %v215, %v238
    %vm241 = vcmp.eq.f32.partialorder %v215, 0.0
    %v242 = vand.u32 %v215, 2147483648
    %v243 = vsel %vm241, %v242, %v240
    %v244 = vrsqrt.pop %v216
    %v245 = vmul.f32 %v216, %v244
    %vm246 = vcmp.eq.f32.partialorder %v216, inf
    %v247 = vsel %vm246, %v216, %v245
    %vm248 = vcmp.eq.f32.partialorder %v216, 0.0
    %v249 = vand.u32 %v216, 2147483648
    %v250 = vsel %vm248, %v249, %v247
    %v251 = vrsqrt.pop %v217
    %v252 = vmul.f32 %v217, %v251
    %vm253 = vcmp.eq.f32.partialorder %v217, inf
    %v254 = vsel %vm253, %v217, %v252
    %vm255 = vcmp.eq.f32.partialorder %v217, 0.0
    %v256 = vand.u32 %v217, 2147483648
    %v257 = vsel %vm255, %v256, %v254
    %v258 = vrsqrt.pop %v218
    %v259 = vmul.f32 %v218, %v258
    %vm260 = vcmp.eq.f32.partialorder %v218, inf
    %v261 = vsel %vm260, %v218, %v259
    %vm262 = vcmp.eq.f32.partialorder %v218, 0.0
    %v263 = vand.u32 %v218, 2147483648
    %v264 = vsel %vm262, %v263, %v261
    %v265 = vrsqrt.pop %v219
    %v266 = vmul.f32 %v219, %v265
    %vm267 = vcmp.eq.f32.partialorder %v219, inf
    %v268 = vsel %vm267, %v219, %v266
    %vm269 = vcmp.eq.f32.partialorder %v219, 0.0
    %v270 = vand.u32 %v219, 2147483648
    %v271 = vsel %vm269, %v270, %v268
    %v272 = vrsqrt.pop %v220
    %v273 = vmul.f32 %v220, %v272
    %vm274 = vcmp.eq.f32.partialorder %v220, inf
    %v275 = vsel %vm274, %v220, %v273
    %vm276 = vcmp.eq.f32.partialorder %v220, 0.0
    %v277 = vand.u32 %v220, 2147483648
    %v278 = vsel %vm276, %v277, %v275
    %v279 = vrsqrt.pop %v221
    %v280 = vmul.f32 %v221, %v279
    %vm281 = vcmp.eq.f32.partialorder %v221, inf
    %v282 = vsel %vm281, %v221, %v280
    %vm283 = vcmp.eq.f32.partialorder %v221, 0.0
    %v284 = vand.u32 %v221, 2147483648
    %v285 = vsel %vm283, %v284, %v282
    %v286 = vrsqrt.pop %v222
    %v287 = vmul.f32 %v222, %v286
    %vm288 = vcmp.eq.f32.partialorder %v222, inf
    %v289 = vsel %vm288, %v222, %v287
    %vm290 = vcmp.eq.f32.partialorder %v222, 0.0
    %v291 = vand.u32 %v222, 2147483648
    %v292 = vsel %vm290, %v291, %v289
    %v293 = vrsqrt.pop %v223
    %v294 = vmul.f32 %v223, %v293
    %vm295 = vcmp.eq.f32.partialorder %v223, inf
    %v296 = vsel %vm295, %v223, %v294
    %vm297 = vcmp.eq.f32.partialorder %v223, 0.0
    %v298 = vand.u32 %v223, 2147483648
    %v299 = vsel %vm297, %v298, %v296
    %v300 = vrsqrt.pop %v224
    %v301 = vmul.f32 %v224, %v300
    %vm302 = vcmp.eq.f32.partialorder %v224, inf
    %v303 = vsel %vm302, %v224, %v301
    %vm304 = vcmp.eq.f32.partialorder %v224, 0.0
    %v305 = vand.u32 %v224, 2147483648
    %v306 = vsel %vm304, %v305, %v303
    %v307 = vrsqrt.pop %v225
    %v308 = vmul.f32 %v225, %v307
    %vm309 = vcmp.eq.f32.partialorder %v225, inf
    %v310 = vsel %vm309, %v225, %v308
    %vm311 = vcmp.eq.f32.partialorder %v225, 0.0
    %v312 = vand.u32 %v225, 2147483648
    %v313 = vsel %vm311, %v312, %v310
    %v314 = vrsqrt.pop %v226
    %v315 = vmul.f32 %v226, %v314
    %vm316 = vcmp.eq.f32.partialorder %v226, inf
    %v317 = vsel %vm316, %v226, %v315
    %vm318 = vcmp.eq.f32.partialorder %v226, 0.0
    %v319 = vand.u32 %v226, 2147483648
    %v320 = vsel %vm318, %v319, %v317
    %v321 = vrsqrt.pop %v227
    %v322 = vmul.f32 %v227, %v321
    %vm323 = vcmp.eq.f32.partialorder %v227, inf
    %v324 = vsel %vm323, %v227, %v322
    %vm325 = vcmp.eq.f32.partialorder %v227, 0.0
    %v326 = vand.u32 %v227, 2147483648
    %v327 = vsel %vm325, %v326, %v324
    %v328 = vrsqrt.pop %v228
    %v329 = vmul.f32 %v228, %v328
    %vm330 = vcmp.eq.f32.partialorder %v228, inf
    %v331 = vsel %vm330, %v228, %v329
    %vm332 = vcmp.eq.f32.partialorder %v228, 0.0
    %v333 = vand.u32 %v228, 2147483648
    %v334 = vsel %vm332, %v333, %v331
    %v335 = vrsqrt.pop %v229
    %v336 = vmul.f32 %v229, %v335
    %vm337 = vcmp.eq.f32.partialorder %v229, inf
    %v338 = vsel %vm337, %v229, %v336
    %vm339 = vcmp.eq.f32.partialorder %v229, 0.0
    %v340 = vand.u32 %v229, 2147483648
    %v341 = vsel %vm339, %v340, %v338
    %v342 = vadd.f32 %v236, 1e-06
    %v343 = vadd.f32 %v243, 1e-06
    %v344 = vadd.f32 %v250, 1e-06
    %v345 = vadd.f32 %v257, 1e-06
    %v346 = vadd.f32 %v264, 1e-06
    %v347 = vadd.f32 %v271, 1e-06
    %v348 = vadd.f32 %v278, 1e-06
    %v349 = vadd.f32 %v285, 1e-06
    %v350 = vadd.f32 %v292, 1e-06
    %v351 = vadd.f32 %v299, 1e-06
    %v352 = vadd.f32 %v306, 1e-06
    %v353 = vadd.f32 %v313, 1e-06
    %v354 = vadd.f32 %v320, 1e-06
    %v355 = vadd.f32 %v327, 1e-06
    %v356 = vadd.f32 %v334, 1e-06
    %v357 = vadd.f32 %v341, 1e-06
    %v358 = vrcp.pop %v342
    %v359 = vrcp.pop %v343
    %v360 = vrcp.pop %v344
    %v361 = vrcp.pop %v345
    %v362 = vrcp.pop %v346
    %v363 = vrcp.pop %v347
    %v364 = vrcp.pop %v348
    %v365 = vrcp.pop %v349
    %v366 = vrcp.pop %v350
    %v367 = vrcp.pop %v351
    %v368 = vrcp.pop %v352
    %v369 = vrcp.pop %v353
    %v370 = vrcp.pop %v354
    %v371 = vrcp.pop %v355
    %v372 = vrcp.pop %v356
    %v373 = vrcp.pop %v357
    %v374 = vld [vmem:[%s2] sm:$0x1]
    %v375 = vmul.f32 %v150, %v358
    %v376 = vmul.f32 %v151, %v359
    %v377 = vmul.f32 %v152, %v360
    %v378 = vmul.f32 %v153, %v361
    %v379 = vmul.f32 %v154, %v362
    %v380 = vmul.f32 %v155, %v363
    %v381 = vmul.f32 %v156, %v364
    %v382 = vmul.f32 %v157, %v365
    %v383 = vmul.f32 %v158, %v366
    %v384 = vmul.f32 %v159, %v367
    %v385 = vmul.f32 %v160, %v368
    %v386 = vmul.f32 %v161, %v369
    %v387 = vmul.f32 %v162, %v370
    %v388 = vmul.f32 %v163, %v371
    %v389 = vmul.f32 %v164, %v372
    %v390 = vmul.f32 %v165, %v373
    %v392 = vlaneseq
    %v393 = vshrl.u32 %v392, 7
    %v394 = vsub.s32 0, %v393
    %v395 = vrot.slane %v374, %v394
    %v397 = vmul.f32 %v395, %v375
    %v398 = vmul.f32 %v395, %v376
    %v399 = vmul.f32 %v395, %v377
    %v400 = vmul.f32 %v395, %v378
    %v401 = vmul.f32 %v395, %v379
    %v402 = vmul.f32 %v395, %v380
    %v403 = vmul.f32 %v395, %v381
    %v404 = vmul.f32 %v395, %v382
    %v405 = vmul.f32 %v395, %v383
    %v406 = vmul.f32 %v395, %v384
    %v407 = vmul.f32 %v395, %v385
    %v408 = vmul.f32 %v395, %v386
    %v409 = vmul.f32 %v395, %v387
    %v410 = vmul.f32 %v395, %v388
    %v411 = vmul.f32 %v395, %v389
    %v412 = vmul.f32 %v395, %v390
    %v413 = vld [vmem:[%s3] sm:$0x1]
    %v415 = vlaneseq
    %v416 = vshrl.u32 %v415, 7
    %v417 = vsub.s32 0, %v416
    %v418 = vrot.slane %v413, %v417
    %v420 = vadd.f32 %v397, %v418
    %v421 = vadd.f32 %v398, %v418
    %v422 = vadd.f32 %v399, %v418
    %v423 = vadd.f32 %v400, %v418
    %v424 = vadd.f32 %v401, %v418
    %v425 = vadd.f32 %v402, %v418
    %v426 = vadd.f32 %v403, %v418
    %v427 = vadd.f32 %v404, %v418
    %v428 = vadd.f32 %v405, %v418
    %v429 = vadd.f32 %v406, %v418
    %v430 = vadd.f32 %v407, %v418
    %v431 = vadd.f32 %v408, %v418
    %v432 = vadd.f32 %v409, %v418
    %v433 = vadd.f32 %v410, %v418
    %v434 = vadd.f32 %v411, %v418
    %v435 = vadd.f32 %v412, %v418
    %v436 = vpack.c.bf16 %v421, %v420
    %v437 = vpack.c.bf16 %v423, %v422
    %v438 = vpack.c.bf16 %v425, %v424
    %v439 = vpack.c.bf16 %v427, %v426
    %v440 = vpack.c.bf16 %v429, %v428
    %v441 = vpack.c.bf16 %v431, %v430
    %v442 = vpack.c.bf16 %v433, %v432
    %v443 = vpack.c.bf16 %v435, %v434
    %v444 = vld [vmem:[%s4] sm:$0xff]
    %v445 = vld [vmem:[%s4 + $0x8] sm:$0xf]
    %v446 = vld [vmem:[%s4 + $0xc] sm:$0xff]
    %v447 = vld [vmem:[%s4 + $0x14] sm:$0xf]
    %v448 = vld [vmem:[%s4 + $0x18] sm:$0xff]
    %v449 = vld [vmem:[%s4 + $0x20] sm:$0xf]
    %v450 = vld [vmem:[%s4 + $0x24] sm:$0xff]
    %v451 = vld [vmem:[%s4 + $0x2c] sm:$0xf]
    %v452 = vld [vmem:[%s4 + $0x30] sm:$0xff]
    %v453 = vld [vmem:[%s4 + $0x38] sm:$0xf]
    %v454 = vld [vmem:[%s4 + $0x3c] sm:$0xff]
    %v455 = vld [vmem:[%s4 + $0x44] sm:$0xf]
    %v456 = vld [vmem:[%s4 + $0x48] sm:$0xff]
    %v457 = vld [vmem:[%s4 + $0x50] sm:$0xf]
    %v458 = vld [vmem:[%s4 + $0x54] sm:$0xff]
    %v459 = vld [vmem:[%s4 + $0x5c] sm:$0xf]
    %v460 = vld [vmem:[%s4 + $0x60] sm:$0xff]
    %v461 = vld [vmem:[%s4 + $0x68] sm:$0xf]
    %v462 = vld [vmem:[%s4 + $0x6c] sm:$0xff]
    %v463 = vld [vmem:[%s4 + $0x74] sm:$0xf]
    %v464 = vld [vmem:[%s4 + $0x78] sm:$0xff]
    %v465 = vld [vmem:[%s4 + $0x80] sm:$0xf]
    %v466 = vld [vmem:[%s4 + $0x84] sm:$0xff]
    %v467 = vld [vmem:[%s4 + $0x8c] sm:$0xf]
    %v468 = vld [vmem:[%s4 + $0x90] sm:$0xff]
    %v469 = vld [vmem:[%s4 + $0x98] sm:$0xf]
    %v470 = vld [vmem:[%s4 + $0x9c] sm:$0xff]
    %v471 = vld [vmem:[%s4 + $0xa4] sm:$0xf]
    %v472 = vld [vmem:[%s4 + $0xa8] sm:$0xff]
    %v473 = vld [vmem:[%s4 + $0xb0] sm:$0xf]
    %v474 = vld [vmem:[%s4 + $0xb4] sm:$0xff]
    %v475 = vld [vmem:[%s4 + $0xbc] sm:$0xf]
    %v476 = vld [vmem:[%s5] sm:$0x7]
    %v478 = vlaneseq
    %v479 = vshrl.u32 %v478, 7
    %v480 = vsub.s32 0, %v479
    %v481 = vrot.slane %v476, %v480
    %v482 = vlaneseq
    %v483 = vshrl.u32 %v482, 7
    %v484 = vsub.s32 1, %v483
    %v485 = vrot.slane %v476, %v484
    %v486 = vlaneseq
    %v487 = vshrl.u32 %v486, 7
    %v488 = vsub.s32 2, %v487
    %v489 = vrot.slane %v476, %v488
    %v525 = vunpack.c.l.b16 %v444
    %v526 = vunpack.c.h.b16 %v444
    %v527 = vunpack.c.l.b16 %v445
    %v528 = vunpack.c.l.b16 %v446
    %v529 = vunpack.c.h.b16 %v446
    %v530 = vunpack.c.l.b16 %v447
    %v531 = vunpack.c.l.b16 %v448
    %v532 = vunpack.c.h.b16 %v448
    %v533 = vunpack.c.l.b16 %v449
    %v534 = vunpack.c.l.b16 %v450
    %v535 = vunpack.c.h.b16 %v450
    %v536 = vunpack.c.l.b16 %v451
    %v537 = vunpack.c.l.b16 %v452
    %v538 = vunpack.c.h.b16 %v452
    %v539 = vunpack.c.l.b16 %v453
    %v540 = vunpack.c.l.b16 %v454
    %v541 = vunpack.c.h.b16 %v454
    %v542 = vunpack.c.l.b16 %v455
    %v543 = vunpack.c.l.b16 %v456
    %v544 = vunpack.c.h.b16 %v456
    %v545 = vunpack.c.l.b16 %v457
    %v546 = vunpack.c.l.b16 %v458
    %v547 = vunpack.c.h.b16 %v458
    %v548 = vunpack.c.l.b16 %v459
    %v549 = vunpack.c.l.b16 %v460
    %v550 = vunpack.c.h.b16 %v460
    %v551 = vunpack.c.l.b16 %v461
    %v552 = vunpack.c.l.b16 %v462
    %v553 = vunpack.c.h.b16 %v462
    %v554 = vunpack.c.l.b16 %v463
    %v555 = vunpack.c.l.b16 %v464
    %v556 = vunpack.c.h.b16 %v464
    %v557 = vunpack.c.l.b16 %v465
    %v558 = vunpack.c.l.b16 %v466
    %v559 = vunpack.c.h.b16 %v466
    %v560 = vunpack.c.l.b16 %v467
    %v561 = vunpack.c.l.b16 %v468
    %v562 = vunpack.c.h.b16 %v468
    %v563 = vunpack.c.l.b16 %v469
    %v564 = vunpack.c.l.b16 %v470
    %v565 = vunpack.c.h.b16 %v470
    %v566 = vunpack.c.l.b16 %v471
    %v567 = vunpack.c.l.b16 %v472
    %v568 = vunpack.c.h.b16 %v472
    %v569 = vunpack.c.l.b16 %v473
    %v570 = vunpack.c.l.b16 %v474
    %v571 = vunpack.c.h.b16 %v474
    %v572 = vunpack.c.l.b16 %v475
    %v573 = vpack.c.b16 %v528, %v525
    %v574 = vpack.c.b16 %v529, %v526
    %v575 = vpack.c.b16 %v530, %v527
    %v576 = vpack.c.b16 %v534, %v531
    %v577 = vpack.c.b16 %v535, %v532
    %v578 = vpack.c.b16 %v536, %v533
    %v579 = vpack.c.b16 %v540, %v537
    %v580 = vpack.c.b16 %v541, %v538
    %v581 = vpack.c.b16 %v542, %v539
    %v582 = vpack.c.b16 %v546, %v543
    %v583 = vpack.c.b16 %v547, %v544
    %v584 = vpack.c.b16 %v548, %v545
    %v585 = vpack.c.b16 %v552, %v549
    %v586 = vpack.c.b16 %v553, %v550
    %v587 = vpack.c.b16 %v554, %v551
    %v588 = vpack.c.b16 %v558, %v555
    %v589 = vpack.c.b16 %v559, %v556
    %v590 = vpack.c.b16 %v560, %v557
    %v591 = vpack.c.b16 %v564, %v561
    %v592 = vpack.c.b16 %v565, %v562
    %v593 = vpack.c.b16 %v566, %v563
    %v594 = vpack.c.b16 %v570, %v567
    %v595 = vpack.c.b16 %v571, %v568
    %v596 = vpack.c.b16 %v572, %v569
    %621 = vmatprep.subr.bf16.mxu0 %v595
    %622 = vmatpush1.bf16.msra.mxu0 %v594
    %623 = vmatprep.subr.bf16.mxu0 %v592
    %624 = vmatpush1.bf16.msra.mxu0 %v591
    %625 = vmatprep.subr.bf16.mxu0 %v589
    %626 = vmatpush1.bf16.msra.mxu0 %v588
    %627 = vmatprep.subr.bf16.mxu0 %v586
    %628 = vmatpush1.bf16.msra.mxu0 %v585
    %629 = vmatprep.subr.bf16.mxu0 %v583
    %630 = vmatpush1.bf16.msra.mxu0 %v582
    %631 = vmatprep.subr.bf16.mxu0 %v580
    %632 = vmatpush1.bf16.msra.mxu0 %v579
    %633 = vmatprep.subr.bf16.mxu0 %v577
    %634 = vmatpush1.bf16.msra.mxu0 %v576
    %635 = vmatprep.subr.bf16.mxu0 %v574
    %636 = vmatpush1.bf16.msra.mxu0 %v573
    %637 = vmatprep.subr.bf16.mxu0 0
    %638 = vmatpush2.bf16.msra.mxu0 0
    %639 = vmatprep.subr.bf16.mxu0 0
    %640 = vmatpush2.bf16.msra.mxu0 0
    %641 = vmatprep.subr.bf16.mxu0 0
    %642 = vmatpush2.bf16.msra.mxu0 0
    %643 = vmatprep.subr.bf16.mxu0 0
    %644 = vmatpush2.bf16.msra.mxu0 0
    %645 = vmatprep.subr.bf16.mxu0 0
    %646 = vmatpush2.bf16.msra.mxu0 0
    %647 = vmatprep.subr.bf16.mxu0 0
    %648 = vmatpush2.bf16.msra.mxu0 0
    %649 = vmatprep.subr.bf16.mxu0 0
    %650 = vmatpush2.bf16.msra.mxu0 0
    %651 = vmatprep.subr.bf16.mxu0 0
    %652 = vmatpush2.bf16.msra.mxu0 0
    %653 = vmatprep.mubr.bf16.mxu0 0
    %654 = vmatmul.mubr.bf16.gmra.mxu0 %v436
    %v655 = vpop.f32.mrf.mxu0
    %v656 = vadd.f32 %v481, %v655
    %v657 = vpop.f32.mrf.mxu0
    %v658 = vadd.f32 %v485, %v657
    %v659 = vpop.f32.mrf.mxu0
    %v660 = vadd.f32 %v481, %v659
    %v661 = vpop.f32.mrf.mxu0
    %v662 = vadd.f32 %v485, %v661
    %663 = vmatprep.mubr.bf16.mxu0 0
    %664 = vmatmul.mubr.bf16.gmra.mxu0 %v437
    %v665 = vpop.f32.mrf.mxu0
    %v666 = vadd.f32 %v481, %v665
    %v667 = vpop.f32.mrf.mxu0
    %v668 = vadd.f32 %v485, %v667
    %v669 = vpop.f32.mrf.mxu0
    %v670 = vadd.f32 %v481, %v669
    %v671 = vpop.f32.mrf.mxu0
    %v672 = vadd.f32 %v485, %v671
    %673 = vmatprep.mubr.bf16.mxu0 0
    %674 = vmatmul.mubr.bf16.gmra.mxu0 %v438
    %v675 = vpop.f32.mrf.mxu0
    %v676 = vadd.f32 %v481, %v675
    %v677 = vpop.f32.mrf.mxu0
    %v678 = vadd.f32 %v485, %v677
    %v679 = vpop.f32.mrf.mxu0
    %v680 = vadd.f32 %v481, %v679
    %v681 = vpop.f32.mrf.mxu0
    %v682 = vadd.f32 %v485, %v681
    %683 = vmatprep.mubr.bf16.mxu0 0
    %684 = vmatmul.mubr.bf16.gmra.mxu0 %v439
    %v685 = vpop.f32.mrf.mxu0
    %v686 = vadd.f32 %v481, %v685
    %v687 = vpop.f32.mrf.mxu0
    %v688 = vadd.f32 %v485, %v687
    %v689 = vpop.f32.mrf.mxu0
    %v690 = vadd.f32 %v481, %v689
    %v691 = vpop.f32.mrf.mxu0
    %v692 = vadd.f32 %v485, %v691
    %693 = vmatprep.mubr.bf16.mxu0 0
    %694 = vmatmul.mubr.bf16.gmra.mxu0 %v440
    %v695 = vpop.f32.mrf.mxu0
    %v696 = vadd.f32 %v481, %v695
    %v697 = vpop.f32.mrf.mxu0
    %v698 = vadd.f32 %v485, %v697
    %v699 = vpop.f32.mrf.mxu0
    %v700 = vadd.f32 %v481, %v699
    %v701 = vpop.f32.mrf.mxu0
    %v702 = vadd.f32 %v485, %v701
    %703 = vmatprep.mubr.bf16.mxu0 0
    %704 = vmatmul.mubr.bf16.gmra.mxu0 %v441
    %v705 = vpop.f32.mrf.mxu0
    %v706 = vadd.f32 %v481, %v705
    %v707 = vpop.f32.mrf.mxu0
    %v708 = vadd.f32 %v485, %v707
    %v709 = vpop.f32.mrf.mxu0
    %v710 = vadd.f32 %v481, %v709
    %v711 = vpop.f32.mrf.mxu0
    %v712 = vadd.f32 %v485, %v711
    %713 = vmatprep.mubr.bf16.mxu0 0
    %714 = vmatmul.mubr.bf16.gmra.mxu0 %v442
    %v715 = vpop.f32.mrf.mxu0
    %v716 = vadd.f32 %v481, %v715
    %v717 = vpop.f32.mrf.mxu0
    %v718 = vadd.f32 %v485, %v717
    %v719 = vpop.f32.mrf.mxu0
    %v720 = vadd.f32 %v481, %v719
    %v721 = vpop.f32.mrf.mxu0
    %v722 = vadd.f32 %v485, %v721
    %723 = vmatprep.mubr.bf16.mxu0 0
    %724 = vmatmul.mubr.bf16.gmra.mxu0 %v443
    %v725 = vpop.f32.mrf.mxu0
    %v726 = vadd.f32 %v481, %v725
    %v727 = vpop.f32.mrf.mxu0
    %v728 = vadd.f32 %v485, %v727
    %v729 = vpop.f32.mrf.mxu0
    %v730 = vadd.f32 %v481, %v729
    %v731 = vpop.f32.mrf.mxu0
    %v732 = vadd.f32 %v485, %v731
    %733 = vdwg.mxu0
    %734 = vmatprep.subr.bf16.mxu0 0
    %735 = vmatpush1.bf16.msra.mxu0 %v596
    %736 = vmatprep.subr.bf16.mxu0 0
    %737 = vmatpush1.bf16.msra.mxu0 %v593
    %738 = vmatprep.subr.bf16.mxu0 0
    %739 = vmatpush1.bf16.msra.mxu0 %v590
    %740 = vmatprep.subr.bf16.mxu0 0
    %741 = vmatpush1.bf16.msra.mxu0 %v587
    %742 = vmatprep.subr.bf16.mxu0 0
    %743 = vmatpush1.bf16.msra.mxu0 %v584
    %744 = vmatprep.subr.bf16.mxu0 0
    %745 = vmatpush1.bf16.msra.mxu0 %v581
    %746 = vmatprep.subr.bf16.mxu0 0
    %747 = vmatpush1.bf16.msra.mxu0 %v578
    %748 = vmatprep.subr.bf16.mxu0 0
    %749 = vmatpush1.bf16.msra.mxu0 %v575
    %750 = vmatprep.subr.bf16.mxu0 0
    %751 = vmatpush2.bf16.msra.mxu0 0
    %752 = vmatprep.subr.bf16.mxu0 0
    %753 = vmatpush2.bf16.msra.mxu0 0
    %754 = vmatprep.subr.bf16.mxu0 0
    %755 = vmatpush2.bf16.msra.mxu0 0
    %756 = vmatprep.subr.bf16.mxu0 0
    %757 = vmatpush2.bf16.msra.mxu0 0
    %758 = vmatprep.subr.bf16.mxu0 0
    %759 = vmatpush2.bf16.msra.mxu0 0
    %760 = vmatprep.subr.bf16.mxu0 0
    %761 = vmatpush2.bf16.msra.mxu0 0
    %762 = vmatprep.subr.bf16.mxu0 0
    %763 = vmatpush2.bf16.msra.mxu0 0
    %764 = vmatprep.subr.bf16.mxu0 0
    %765 = vmatpush2.bf16.msra.mxu0 0
    %766 = vmatprep.mubr.bf16.mxu0 0
    %767 = vmatmul.mubr.bf16.gmra.mxu0 %v436
    %v768 = vpop.f32.mrf.mxu0
    %v769 = vadd.f32 %v489, %v768
    %v770 = vpop.f32.mrf.mxu0
    %v771 = vpop.f32.mrf.mxu0
    %v772 = vadd.f32 %v489, %v771
    %v773 = vpop.f32.mrf.mxu0
    %774 = vmatprep.mubr.bf16.mxu0 0
    %775 = vmatmul.mubr.bf16.gmra.mxu0 %v437
    %v776 = vpop.f32.mrf.mxu0
    %v777 = vadd.f32 %v489, %v776
    %v778 = vpop.f32.mrf.mxu0
    %v779 = vpop.f32.mrf.mxu0
    %v780 = vadd.f32 %v489, %v779
    %v781 = vpop.f32.mrf.mxu0
    %782 = vmatprep.mubr.bf16.mxu0 0
    %783 = vmatmul.mubr.bf16.gmra.mxu0 %v438
    %v784 = vpop.f32.mrf.mxu0
    %v785 = vadd.f32 %v489, %v784
    %v786 = vpop.f32.mrf.mxu0
    %v787 = vpop.f32.mrf.mxu0
    %v788 = vadd.f32 %v489, %v787
    %v789 = vpop.f32.mrf.mxu0
    %790 = vmatprep.mubr.bf16.mxu0 0
    %791 = vmatmul.mubr.bf16.gmra.mxu0 %v439
    %v792 = vpop.f32.mrf.mxu0
    %v793 = vadd.f32 %v489, %v792
    %v794 = vpop.f32.mrf.mxu0
    %v795 = vpop.f32.mrf.mxu0
    %v796 = vadd.f32 %v489, %v795
    %v797 = vpop.f32.mrf.mxu0
    %798 = vmatprep.mubr.bf16.mxu0 0
    %799 = vmatmul.mubr.bf16.gmra.mxu0 %v440
    %v800 = vpop.f32.mrf.mxu0
    %v801 = vadd.f32 %v489, %v800
    %v802 = vpop.f32.mrf.mxu0
    %v803 = vpop.f32.mrf.mxu0
    %v804 = vadd.f32 %v489, %v803
    %v805 = vpop.f32.mrf.mxu0
    %806 = vmatprep.mubr.bf16.mxu0 0
    %807 = vmatmul.mubr.bf16.gmra.mxu0 %v441
    %v808 = vpop.f32.mrf.mxu0
    %v809 = vadd.f32 %v489, %v808
    %v810 = vpop.f32.mrf.mxu0
    %v811 = vpop.f32.mrf.mxu0
    %v812 = vadd.f32 %v489, %v811
    %v813 = vpop.f32.mrf.mxu0
    %814 = vmatprep.mubr.bf16.mxu0 0
    %815 = vmatmul.mubr.bf16.gmra.mxu0 %v442
    %v816 = vpop.f32.mrf.mxu0
    %v817 = vadd.f32 %v489, %v816
    %v818 = vpop.f32.mrf.mxu0
    %v819 = vpop.f32.mrf.mxu0
    %v820 = vadd.f32 %v489, %v819
    %v821 = vpop.f32.mrf.mxu0
    %822 = vmatprep.mubr.bf16.mxu0 0
    %823 = vmatmul.mubr.bf16.gmra.mxu0 %v443
    %v824 = vpop.f32.mrf.mxu0
    %v825 = vadd.f32 %v489, %v824
    %v826 = vpop.f32.mrf.mxu0
    %v827 = vpop.f32.mrf.mxu0
    %v828 = vadd.f32 %v489, %v827
    %v829 = vpop.f32.mrf.mxu0
    %830 = vdwg.mxu0
    %v831 = vpack.c.bf16 %v660, %v656
    %v832 = vpack.c.bf16 %v670, %v666
    %v833 = vpack.c.bf16 %v680, %v676
    %v834 = vpack.c.bf16 %v690, %v686
    %v835 = vpack.c.bf16 %v700, %v696
    %v836 = vpack.c.bf16 %v710, %v706
    %v837 = vpack.c.bf16 %v720, %v716
    %v838 = vpack.c.bf16 %v730, %v726
    %v839 = vpack.c.bf16 %v662, %v658
    %v840 = vpack.c.bf16 %v672, %v668
    %v841 = vpack.c.bf16 %v682, %v678
    %v842 = vpack.c.bf16 %v692, %v688
    %v843 = vpack.c.bf16 %v702, %v698
    %v844 = vpack.c.bf16 %v712, %v708
    %v845 = vpack.c.bf16 %v722, %v718
    %v846 = vpack.c.bf16 %v732, %v728
    %847 = vmatprep.subr.bf16.mxu0 0
    %848 = vmatpush1.bf16.xpose.msra.mxu0 0
    %849 = vmatprep.subr.bf16.mxu0 0
    %850 = vmatpush1.bf16.xpose.msra.mxu0 0
    %851 = vmatprep.subr.bf16.mxu0 0
    %852 = vmatpush1.bf16.xpose.msra.mxu0 0
    %853 = vmatprep.subr.bf16.mxu0 0
    %854 = vmatpush1.bf16.xpose.msra.mxu0 0
    %855 = vmatprep.subr.bf16.mxu0 0
    %856 = vmatpush1.bf16.xpose.msra.mxu0 %v842
    %857 = vmatprep.subr.bf16.mxu0 0
    %858 = vmatpush1.bf16.xpose.msra.mxu0 %v841
    %859 = vmatprep.subr.bf16.mxu0 0
    %860 = vmatpush1.bf16.xpose.msra.mxu0 %v840
    %861 = vmatprep.subr.bf16.mxu0 0
    %862 = vmatpush1.bf16.xpose.msra.mxu0 %v839
    %863 = vmatprep.subr.bf16.mxu0 0
    %864 = vmatpush2.bf16.xpose.msra.mxu0 0
    %865 = vmatprep.subr.bf16.mxu0 0
    %866 = vmatpush2.bf16.xpose.msra.mxu0 0
    %867 = vmatprep.subr.bf16.mxu0 0
    %868 = vmatpush2.bf16.xpose.msra.mxu0 0
    %869 = vmatprep.subr.bf16.mxu0 0
    %870 = vmatpush2.bf16.xpose.msra.mxu0 0
    %871 = vmatprep.subr.bf16.mxu0 0
    %872 = vmatpush2.bf16.xpose.msra.mxu0 0
    %873 = vmatprep.subr.bf16.mxu0 0
    %874 = vmatpush2.bf16.xpose.msra.mxu0 0
    %875 = vmatprep.subr.bf16.mxu0 0
    %876 = vmatpush2.bf16.xpose.msra.mxu0 0
    %877 = vmatprep.subr.bf16.mxu0 0
    %878 = vmatpush2.bf16.xpose.msra.mxu0 0
    %879 = vmatprep.mubr.bf16.mxu0 0
    %880 = vmatmul.mubr.bf16.gmra.mxu0 %v831
    %v881 = vpop.f32.mrf.mxu0
    %v882 = vadd.f32 0.0, %v881
    %v883 = vpop.f32.mrf.mxu0
    %v884 = vpop.f32.mrf.mxu0
    %v885 = vadd.f32 0.0, %v884
    %v886 = vpop.f32.mrf.mxu0
    %887 = vmatprep.mubr.bf16.mxu0 0
    %888 = vmatmul.mubr.bf16.gmra.mxu0 %v832
    %v889 = vpop.f32.mrf.mxu0
    %v890 = vadd.f32 0.0, %v889
    %v891 = vpop.f32.mrf.mxu0
    %v892 = vpop.f32.mrf.mxu0
    %v893 = vadd.f32 0.0, %v892
    %v894 = vpop.f32.mrf.mxu0
    %895 = vmatprep.mubr.bf16.mxu0 0
    %896 = vmatmul.mubr.bf16.gmra.mxu0 %v833
    %v897 = vpop.f32.mrf.mxu0
    %v898 = vadd.f32 0.0, %v897
    %v899 = vpop.f32.mrf.mxu0
    %v900 = vpop.f32.mrf.mxu0
    %v901 = vadd.f32 0.0, %v900
    %v902 = vpop.f32.mrf.mxu0
    %903 = vmatprep.mubr.bf16.mxu0 0
    %904 = vmatmul.mubr.bf16.gmra.mxu0 %v834
    %v905 = vpop.f32.mrf.mxu0
    %v906 = vadd.f32 0.0, %v905
    %v907 = vpop.f32.mrf.mxu0
    %v908 = vpop.f32.mrf.mxu0
    %v909 = vadd.f32 0.0, %v908
    %v910 = vpop.f32.mrf.mxu0
    %911 = vdwg.mxu0
    %912 = vmatprep.subr.bf16.mxu0 0
    %913 = vmatpush1.bf16.xpose.msra.mxu0 0
    %914 = vmatprep.subr.bf16.mxu0 0
    %915 = vmatpush1.bf16.xpose.msra.mxu0 0
    %916 = vmatprep.subr.bf16.mxu0 0
    %917 = vmatpush1.bf16.xpose.msra.mxu0 0
    %918 = vmatprep.subr.bf16.mxu0 0
    %919 = vmatpush1.bf16.xpose.msra.mxu0 0
    %920 = vmatprep.subr.bf16.mxu0 0
    %921 = vmatpush1.bf16.xpose.msra.mxu0 %v846
    %922 = vmatprep.subr.bf16.mxu0 0
    %923 = vmatpush1.bf16.xpose.msra.mxu0 %v845
    %924 = vmatprep.subr.bf16.mxu0 0
    %925 = vmatpush1.bf16.xpose.msra.mxu0 %v844
    %926 = vmatprep.subr.bf16.mxu0 0
    %927 = vmatpush1.bf16.xpose.msra.mxu0 %v843
    %928 = vmatprep.subr.bf16.mxu0 0
    %929 = vmatpush2.bf16.xpose.msra.mxu0 0
    %930 = vmatprep.subr.bf16.mxu0 0
    %931 = vmatpush2.bf16.xpose.msra.mxu0 0
    %932 = vmatprep.subr.bf16.mxu0 0
    %933 = vmatpush2.bf16.xpose.msra.mxu0 0
    %934 = vmatprep.subr.bf16.mxu0 0
    %935 = vmatpush2.bf16.xpose.msra.mxu0 0
    %936 = vmatprep.subr.bf16.mxu0 0
    %937 = vmatpush2.bf16.xpose.msra.mxu0 0
    %938 = vmatprep.subr.bf16.mxu0 0
    %939 = vmatpush2.bf16.xpose.msra.mxu0 0
    %940 = vmatprep.subr.bf16.mxu0 0
    %941 = vmatpush2.bf16.xpose.msra.mxu0 0
    %942 = vmatprep.subr.bf16.mxu0 0
    %943 = vmatpush2.bf16.xpose.msra.mxu0 0
    %944 = vmatprep.mubr.bf16.mxu0 0
    %945 = vmatmul.mubr.bf16.gmra.mxu0 %v835
    %v946 = vpop.f32.mrf.mxu0
    %v947 = vadd.f32 0.0, %v946
    %v948 = vpop.f32.mrf.mxu0
    %v949 = vpop.f32.mrf.mxu0
    %v950 = vadd.f32 0.0, %v949
    %v951 = vpop.f32.mrf.mxu0
    %952 = vmatprep.mubr.bf16.mxu0 0
    %953 = vmatmul.mubr.bf16.gmra.mxu0 %v836
    %v954 = vpop.f32.mrf.mxu0
    %v955 = vadd.f32 0.0, %v954
    %v956 = vpop.f32.mrf.mxu0
    %v957 = vpop.f32.mrf.mxu0
    %v958 = vadd.f32 0.0, %v957
    %v959 = vpop.f32.mrf.mxu0
    %960 = vmatprep.mubr.bf16.mxu0 0
    %961 = vmatmul.mubr.bf16.gmra.mxu0 %v837
    %v962 = vpop.f32.mrf.mxu0
    %v963 = vadd.f32 0.0, %v962
    %v964 = vpop.f32.mrf.mxu0
    %v965 = vpop.f32.mrf.mxu0
    %v966 = vadd.f32 0.0, %v965
    %v967 = vpop.f32.mrf.mxu0
    %968 = vmatprep.mubr.bf16.mxu0 0
    %969 = vmatmul.mubr.bf16.gmra.mxu0 %v838
    %v970 = vpop.f32.mrf.mxu0
    %v971 = vadd.f32 0.0, %v970
    %v972 = vpop.f32.mrf.mxu0
    %v973 = vpop.f32.mrf.mxu0
    %v974 = vadd.f32 0.0, %v973
    %v975 = vpop.f32.mrf.mxu0
    %976 = vdwg.mxu0
    %v977 = vmul.f32 %v882, 0.088388346
    %v978 = vmul.f32 %v885, 0.088388346
    %v979 = vmul.f32 %v890, 0.088388346
    %v980 = vmul.f32 %v893, 0.088388346
    %v981 = vmul.f32 %v898, 0.088388346
    %v982 = vmul.f32 %v901, 0.088388346
    %v983 = vmul.f32 %v906, 0.088388346
    %v984 = vmul.f32 %v909, 0.088388346
    %v985 = vmul.f32 %v947, 0.088388346
    %v986 = vmul.f32 %v950, 0.088388346
    %v987 = vmul.f32 %v955, 0.088388346
    %v988 = vmul.f32 %v958, 0.088388346
    %v989 = vmul.f32 %v963, 0.088388346
    %v990 = vmul.f32 %v966, 0.088388346
    %v991 = vmul.f32 %v971, 0.088388346
    %v992 = vmul.f32 %v974, 0.088388346
    %v993 = vld [vmem:[%s1] sm:$0x1]
    %v994 = vld [vmem:[%s1 + $0x1] sm:$0x1]
    %v995 = vunpack.c.0.s8 %v993
    %v996 = vunpack.c.0.s8 %v994
    %v997 = vcvt.s32.f32 %v995
    %v998 = vcvt.s32.f32 %v996
    %vm999 = vcmp.eq.f32.partialorder %v997, 0.0
    %vm1000 = vcmp.eq.f32.partialorder %v998, 0.0
    %v1001 = vsel %vm999, 1, 0
    %v1002 = vsel %vm1000, 1, 0
    %v1003 = vlaneseq
    %v1004 = vshrl.u32 %v1003, 7
    %v1005 = vsub.s32 0, %v1004
    %v1006 = vrot.slane %v1001, %v1005
    %v1007 = vlaneseq
    %v1008 = vshrl.u32 %v1007, 7
    %v1009 = vsub.s32 0, %v1008
    %v1010 = vrot.slane %v1002, %v1009
    %vm1011 = vcmp.eq.s32.totalorder %v1006, 1
    %vm1012 = vcmp.eq.s32.totalorder %v1010, 1
    %v1013 = vsel %vm1011, -1e+09, %v977
    %v1014 = vsel %vm1011, -1e+09, %v978
    %v1015 = vsel %vm1011, -1e+09, %v979
    %v1016 = vsel %vm1011, -1e+09, %v980
    %v1017 = vsel %vm1011, -1e+09, %v981
    %v1018 = vsel %vm1011, -1e+09, %v982
    %v1019 = vsel %vm1011, -1e+09, %v983
    %v1020 = vsel %vm1011, -1e+09, %v984
    %v1021 = vsel %vm1012, -1e+09, %v985
    %v1022 = vsel %vm1012, -1e+09, %v986
    %v1023 = vsel %vm1012, -1e+09, %v987
    %v1024 = vsel %vm1012, -1e+09, %v988
    %v1025 = vsel %vm1012, -1e+09, %v989
    %v1026 = vsel %vm1012, -1e+09, %v990
    %v1027 = vsel %vm1012, -1e+09, %v991
    %v1028 = vsel %vm1012, -1e+09, %v992
    %vm1029 = vcmask 523264
    %v1030 = vsel %vm1029, %v1013, -inf
    %1031 = vmax.xlane.f32.xlu0 %v1030
    %v1032 = vpop.xlane.xlu0 %1031
    %v1033 = vsel %vm1029, %v1014, -inf
    %1034 = vmax.xlane.f32.xlu0 %v1033
    %v1035 = vpop.xlane.xlu0 %1034
    %v1036 = vsel %vm1029, %v1015, -inf
    %1037 = vmax.xlane.f32.xlu0 %v1036
    %v1038 = vpop.xlane.xlu0 %1037
    %v1039 = vsel %vm1029, %v1016, -inf
    %1040 = vmax.xlane.f32.xlu0 %v1039
    %v1041 = vpop.xlane.xlu0 %1040
    %v1042 = vsel %vm1029, %v1017, -inf
    %1043 = vmax.xlane.f32.xlu0 %v1042
    %v1044 = vpop.xlane.xlu0 %1043
    %v1045 = vsel %vm1029, %v1018, -inf
    %1046 = vmax.xlane.f32.xlu0 %v1045
    %v1047 = vpop.xlane.xlu0 %1046
    %v1048 = vsel %vm1029, %v1019, -inf
    %1049 = vmax.xlane.f32.xlu0 %v1048
    %v1050 = vpop.xlane.xlu0 %1049
    %v1051 = vsel %vm1029, %v1020, -inf
    %1052 = vmax.xlane.f32.xlu0 %v1051
    %v1053 = vpop.xlane.xlu0 %1052
    %v1054 = vsel %vm1029, %v1021, -inf
    %1055 = vmax.xlane.f32.xlu0 %v1054
    %v1056 = vpop.xlane.xlu0 %1055
    %v1057 = vsel %vm1029, %v1022, -inf
    %1058 = vmax.xlane.f32.xlu0 %v1057
    %v1059 = vpop.xlane.xlu0 %1058
    %v1060 = vsel %vm1029, %v1023, -inf
    %1061 = vmax.xlane.f32.xlu0 %v1060
    %v1062 = vpop.xlane.xlu0 %1061
    %v1063 = vsel %vm1029, %v1024, -inf
    %1064 = vmax.xlane.f32.xlu0 %v1063
    %v1065 = vpop.xlane.xlu0 %1064
    %v1066 = vsel %vm1029, %v1025, -inf
    %1067 = vmax.xlane.f32.xlu0 %v1066
    %v1068 = vpop.xlane.xlu0 %1067
    %v1069 = vsel %vm1029, %v1026, -inf
    %1070 = vmax.xlane.f32.xlu0 %v1069
    %v1071 = vpop.xlane.xlu0 %1070
    %v1072 = vsel %vm1029, %v1027, -inf
    %1073 = vmax.xlane.f32.xlu0 %v1072
    %v1074 = vpop.xlane.xlu0 %1073
    %v1075 = vsel %vm1029, %v1028, -inf
    %1076 = vmax.xlane.f32.xlu0 %v1075
    %v1077 = vpop.xlane.xlu0 %1076
    %v1078 = vsub.f32 %v1013, %v1032
    %v1079 = vsub.f32 %v1014, %v1035
    %v1080 = vsub.f32 %v1015, %v1038
    %v1081 = vsub.f32 %v1016, %v1041
    %v1082 = vsub.f32 %v1017, %v1044
    %v1083 = vsub.f32 %v1018, %v1047
    %v1084 = vsub.f32 %v1019, %v1050
    %v1085 = vsub.f32 %v1020, %v1053
    %v1086 = vsub.f32 %v1021, %v1056
    %v1087 = vsub.f32 %v1022, %v1059
    %v1088 = vsub.f32 %v1023, %v1062
    %v1089 = vsub.f32 %v1024, %v1065
    %v1090 = vsub.f32 %v1025, %v1068
    %v1091 = vsub.f32 %v1026, %v1071
    %v1092 = vsub.f32 %v1027, %v1074
    %v1093 = vsub.f32 %v1028, %v1077
    %v1094 = vmul.f32 %v1078, 1.442695
    %v1095 = vpow.pop %v1094
    %v1096 = vmul.f32 %v1079, 1.442695
    %v1097 = vpow.pop %v1096
    %v1098 = vmul.f32 %v1080, 1.442695
    %v1099 = vpow.pop %v1098
    %v1100 = vmul.f32 %v1081, 1.442695
    %v1101 = vpow.pop %v1100
    %v1102 = vmul.f32 %v1082, 1.442695
    %v1103 = vpow.pop %v1102
    %v1104 = vmul.f32 %v1083, 1.442695
    %v1105 = vpow.pop %v1104
    %v1106 = vmul.f32 %v1084, 1.442695
    %v1107 = vpow.pop %v1106
    %v1108 = vmul.f32 %v1085, 1.442695
    %v1109 = vpow.pop %v1108
    %v1110 = vmul.f32 %v1086, 1.442695
    %v1111 = vpow.pop %v1110
    %v1112 = vmul.f32 %v1087, 1.442695
    %v1113 = vpow.pop %v1112
    %v1114 = vmul.f32 %v1088, 1.442695
    %v1115 = vpow.pop %v1114
    %v1116 = vmul.f32 %v1089, 1.442695
    %v1117 = vpow.pop %v1116
    %v1118 = vmul.f32 %v1090, 1.442695
    %v1119 = vpow.pop %v1118
    %v1120 = vmul.f32 %v1091, 1.442695
    %v1121 = vpow.pop %v1120
    %v1122 = vmul.f32 %v1092, 1.442695
    %v1123 = vpow.pop %v1122
    %v1124 = vmul.f32 %v1093, 1.442695
    %v1125 = vpow.pop %v1124
    %v1126 = vsel %vm1029, %v1095, 0.0
    %1127 = vadd.xlane.f32.xlu0 %v1126
    %v1128 = vpop.xlane.xlu0 %1127
    %v1129 = vsel %vm1029, %v1097, 0.0
    %1130 = vadd.xlane.f32.xlu0 %v1129
    %v1131 = vpop.xlane.xlu0 %1130
    %v1132 = vsel %vm1029, %v1099, 0.0
    %1133 = vadd.xlane.f32.xlu0 %v1132
    %v1134 = vpop.xlane.xlu0 %1133
    %v1135 = vsel %vm1029, %v1101, 0.0
    %1136 = vadd.xlane.f32.xlu0 %v1135
    %v1137 = vpop.xlane.xlu0 %1136
    %v1138 = vsel %vm1029, %v1103, 0.0
    %1139 = vadd.xlane.f32.xlu0 %v1138
    %v1140 = vpop.xlane.xlu0 %1139
    %v1141 = vsel %vm1029, %v1105, 0.0
    %1142 = vadd.xlane.f32.xlu0 %v1141
    %v1143 = vpop.xlane.xlu0 %1142
    %v1144 = vsel %vm1029, %v1107, 0.0
    %1145 = vadd.xlane.f32.xlu0 %v1144
    %v1146 = vpop.xlane.xlu0 %1145
    %v1147 = vsel %vm1029, %v1109, 0.0
    %1148 = vadd.xlane.f32.xlu0 %v1147
    %v1149 = vpop.xlane.xlu0 %1148
    %v1150 = vsel %vm1029, %v1111, 0.0
    %1151 = vadd.xlane.f32.xlu0 %v1150
    %v1152 = vpop.xlane.xlu0 %1151
    %v1153 = vsel %vm1029, %v1113, 0.0
    %1154 = vadd.xlane.f32.xlu0 %v1153
    %v1155 = vpop.xlane.xlu0 %1154
    %v1156 = vsel %vm1029, %v1115, 0.0
    %1157 = vadd.xlane.f32.xlu0 %v1156
    %v1158 = vpop.xlane.xlu0 %1157
    %v1159 = vsel %vm1029, %v1117, 0.0
    %1160 = vadd.xlane.f32.xlu0 %v1159
    %v1161 = vpop.xlane.xlu0 %1160
    %v1162 = vsel %vm1029, %v1119, 0.0
    %1163 = vadd.xlane.f32.xlu0 %v1162
    %v1164 = vpop.xlane.xlu0 %1163
    %v1165 = vsel %vm1029, %v1121, 0.0
    %1166 = vadd.xlane.f32.xlu0 %v1165
    %v1167 = vpop.xlane.xlu0 %1166
    %v1168 = vsel %vm1029, %v1123, 0.0
    %1169 = vadd.xlane.f32.xlu0 %v1168
    %v1170 = vpop.xlane.xlu0 %1169
    %v1171 = vsel %vm1029, %v1125, 0.0
    %1172 = vadd.xlane.f32.xlu0 %v1171
    %v1173 = vpop.xlane.xlu0 %1172
    %v1174 = vrcp.pop %v1128
    %v1175 = vrcp.pop %v1131
    %v1176 = vrcp.pop %v1134
    %v1177 = vrcp.pop %v1137
    %v1178 = vrcp.pop %v1140
    %v1179 = vrcp.pop %v1143
    %v1180 = vrcp.pop %v1146
    %v1181 = vrcp.pop %v1149
    %v1182 = vrcp.pop %v1152
    %v1183 = vrcp.pop %v1155
    %v1184 = vrcp.pop %v1158
    %v1185 = vrcp.pop %v1161
    %v1186 = vrcp.pop %v1164
    %v1187 = vrcp.pop %v1167
    %v1188 = vrcp.pop %v1170
    %v1189 = vrcp.pop %v1173
    %v1190 = vmul.f32 %v1095, %v1174
    %v1191 = vmul.f32 %v1097, %v1175
    %v1192 = vmul.f32 %v1099, %v1176
    %v1193 = vmul.f32 %v1101, %v1177
    %v1194 = vmul.f32 %v1103, %v1178
    %v1195 = vmul.f32 %v1105, %v1179
    %v1196 = vmul.f32 %v1107, %v1180
    %v1197 = vmul.f32 %v1109, %v1181
    %v1198 = vmul.f32 %v1111, %v1182
    %v1199 = vmul.f32 %v1113, %v1183
    %v1200 = vmul.f32 %v1115, %v1184
    %v1201 = vmul.f32 %v1117, %v1185
    %v1202 = vmul.f32 %v1119, %v1186
    %v1203 = vmul.f32 %v1121, %v1187
    %v1204 = vmul.f32 %v1123, %v1188
    %v1205 = vmul.f32 %v1125, %v1189
    %v1206 = vpack.c.bf16 %v1191, %v1190
    %v1207 = vpack.c.bf16 %v1193, %v1192
    %v1208 = vpack.c.bf16 %v1195, %v1194
    %v1209 = vpack.c.bf16 %v1197, %v1196
    %v1210 = vpack.c.bf16 %v1199, %v1198
    %v1211 = vpack.c.bf16 %v1201, %v1200
    %v1212 = vpack.c.bf16 %v1203, %v1202
    %v1213 = vpack.c.bf16 %v1205, %v1204
    %v1214 = vpack.c.bf16 %v772, %v769
    %v1215 = vpack.c.bf16 %v780, %v777
    %v1216 = vpack.c.bf16 %v788, %v785
    %v1217 = vpack.c.bf16 %v796, %v793
    %v1218 = vpack.c.bf16 %v804, %v801
    %v1219 = vpack.c.bf16 %v812, %v809
    %v1220 = vpack.c.bf16 %v820, %v817
    %v1221 = vpack.c.bf16 %v828, %v825
    %v1223 = vsel %vm1029, %v1206, 0
    %v1226 = vsel %vm1029, %v1207, 0
    %v1229 = vsel %vm1029, %v1208, 0
    %v1232 = vsel %vm1029, %v1209, 0
    %1234 = vmatprep.subr.bf16.mxu0 0
    %1235 = vmatpush1.bf16.msra.mxu0 0
    %1236 = vmatprep.subr.bf16.mxu0 0
    %1237 = vmatpush1.bf16.msra.mxu0 0
    %1238 = vmatprep.subr.bf16.mxu0 0
    %1239 = vmatpush1.bf16.msra.mxu0 0
    %1240 = vmatprep.subr.bf16.mxu0 0
    %1241 = vmatpush1.bf16.msra.mxu0 0
    %1242 = vmatprep.subr.bf16.mxu0 0
    %1243 = vmatpush1.bf16.msra.mxu0 %v1217
    %1244 = vmatprep.subr.bf16.mxu0 0
    %1245 = vmatpush1.bf16.msra.mxu0 %v1216
    %1246 = vmatprep.subr.bf16.mxu0 0
    %1247 = vmatpush1.bf16.msra.mxu0 %v1215
    %1248 = vmatprep.subr.bf16.mxu0 0
    %1249 = vmatpush1.bf16.msra.mxu0 %v1214
    %1250 = vmatprep.subr.bf16.mxu0 0
    %1251 = vmatpush2.bf16.msra.mxu0 0
    %1252 = vmatprep.subr.bf16.mxu0 0
    %1253 = vmatpush2.bf16.msra.mxu0 0
    %1254 = vmatprep.subr.bf16.mxu0 0
    %1255 = vmatpush2.bf16.msra.mxu0 0
    %1256 = vmatprep.subr.bf16.mxu0 0
    %1257 = vmatpush2.bf16.msra.mxu0 0
    %1258 = vmatprep.subr.bf16.mxu0 0
    %1259 = vmatpush2.bf16.msra.mxu0 0
    %1260 = vmatprep.subr.bf16.mxu0 0
    %1261 = vmatpush2.bf16.msra.mxu0 0
    %1262 = vmatprep.subr.bf16.mxu0 0
    %1263 = vmatpush2.bf16.msra.mxu0 0
    %1264 = vmatprep.subr.bf16.mxu0 0
    %1265 = vmatpush2.bf16.msra.mxu0 0
    %1266 = vmatprep.mubr.bf16.mxu0 0
    %1267 = vmatmul.mubr.bf16.gmra.mxu0 %v1223
    %v1268 = vpop.f32.mrf.mxu0
    %v1269 = vadd.f32 0.0, %v1268
    %v1270 = vpop.f32.mrf.mxu0
    %v1271 = vpop.f32.mrf.mxu0
    %v1272 = vadd.f32 0.0, %v1271
    %v1273 = vpop.f32.mrf.mxu0
    %1274 = vmatprep.mubr.bf16.mxu0 0
    %1275 = vmatmul.mubr.bf16.gmra.mxu0 %v1226
    %v1276 = vpop.f32.mrf.mxu0
    %v1277 = vadd.f32 0.0, %v1276
    %v1278 = vpop.f32.mrf.mxu0
    %v1279 = vpop.f32.mrf.mxu0
    %v1280 = vadd.f32 0.0, %v1279
    %v1281 = vpop.f32.mrf.mxu0
    %1282 = vmatprep.mubr.bf16.mxu0 0
    %1283 = vmatmul.mubr.bf16.gmra.mxu0 %v1229
    %v1284 = vpop.f32.mrf.mxu0
    %v1285 = vadd.f32 0.0, %v1284
    %v1286 = vpop.f32.mrf.mxu0
    %v1287 = vpop.f32.mrf.mxu0
    %v1288 = vadd.f32 0.0, %v1287
    %v1289 = vpop.f32.mrf.mxu0
    %1290 = vmatprep.mubr.bf16.mxu0 0
    %1291 = vmatmul.mubr.bf16.gmra.mxu0 %v1232
    %v1292 = vpop.f32.mrf.mxu0
    %v1293 = vadd.f32 0.0, %v1292
    %v1294 = vpop.f32.mrf.mxu0
    %v1295 = vpop.f32.mrf.mxu0
    %v1296 = vadd.f32 0.0, %v1295
    %v1297 = vpop.f32.mrf.mxu0
    %1298 = vdwg.mxu0
    %v1300 = vsel %vm1029, %v1210, 0
    %v1303 = vsel %vm1029, %v1211, 0
    %v1306 = vsel %vm1029, %v1212, 0
    %v1309 = vsel %vm1029, %v1213, 0
    %1311 = vmatprep.subr.bf16.mxu0 0
    %1312 = vmatpush1.bf16.msra.mxu0 0
    %1313 = vmatprep.subr.bf16.mxu0 0
    %1314 = vmatpush1.bf16.msra.mxu0 0
    %1315 = vmatprep.subr.bf16.mxu0 0
    %1316 = vmatpush1.bf16.msra.mxu0 0
    %1317 = vmatprep.subr.bf16.mxu0 0
    %1318 = vmatpush1.bf16.msra.mxu0 0
    %1319 = vmatprep.subr.bf16.mxu0 0
    %1320 = vmatpush1.bf16.msra.mxu0 %v1221
    %1321 = vmatprep.subr.bf16.mxu0 0
    %1322 = vmatpush1.bf16.msra.mxu0 %v1220
    %1323 = vmatprep.subr.bf16.mxu0 0
    %1324 = vmatpush1.bf16.msra.mxu0 %v1219
    %1325 = vmatprep.subr.bf16.mxu0 0
    %1326 = vmatpush1.bf16.msra.mxu0 %v1218
    %1327 = vmatprep.subr.bf16.mxu0 0
    %1328 = vmatpush2.bf16.msra.mxu0 0
    %1329 = vmatprep.subr.bf16.mxu0 0
    %1330 = vmatpush2.bf16.msra.mxu0 0
    %1331 = vmatprep.subr.bf16.mxu0 0
    %1332 = vmatpush2.bf16.msra.mxu0 0
    %1333 = vmatprep.subr.bf16.mxu0 0
    %1334 = vmatpush2.bf16.msra.mxu0 0
    %1335 = vmatprep.subr.bf16.mxu0 0
    %1336 = vmatpush2.bf16.msra.mxu0 0
    %1337 = vmatprep.subr.bf16.mxu0 0
    %1338 = vmatpush2.bf16.msra.mxu0 0
    %1339 = vmatprep.subr.bf16.mxu0 0
    %1340 = vmatpush2.bf16.msra.mxu0 0
    %1341 = vmatprep.subr.bf16.mxu0 0
    %1342 = vmatpush2.bf16.msra.mxu0 0
    %1343 = vmatprep.mubr.bf16.mxu0 0
    %1344 = vmatmul.mubr.bf16.gmra.mxu0 %v1300
    %v1345 = vpop.f32.mrf.mxu0
    %v1346 = vadd.f32 0.0, %v1345
    %v1347 = vpop.f32.mrf.mxu0
    %v1348 = vpop.f32.mrf.mxu0
    %v1349 = vadd.f32 0.0, %v1348
    %v1350 = vpop.f32.mrf.mxu0
    %1351 = vmatprep.mubr.bf16.mxu0 0
    %1352 = vmatmul.mubr.bf16.gmra.mxu0 %v1303
    %v1353 = vpop.f32.mrf.mxu0
    %v1354 = vadd.f32 0.0, %v1353
    %v1355 = vpop.f32.mrf.mxu0
    %v1356 = vpop.f32.mrf.mxu0
    %v1357 = vadd.f32 0.0, %v1356
    %v1358 = vpop.f32.mrf.mxu0
    %1359 = vmatprep.mubr.bf16.mxu0 0
    %1360 = vmatmul.mubr.bf16.gmra.mxu0 %v1306
    %v1361 = vpop.f32.mrf.mxu0
    %v1362 = vadd.f32 0.0, %v1361
    %v1363 = vpop.f32.mrf.mxu0
    %v1364 = vpop.f32.mrf.mxu0
    %v1365 = vadd.f32 0.0, %v1364
    %v1366 = vpop.f32.mrf.mxu0
    %1367 = vmatprep.mubr.bf16.mxu0 0
    %1368 = vmatmul.mubr.bf16.gmra.mxu0 %v1309
    %v1369 = vpop.f32.mrf.mxu0
    %v1370 = vadd.f32 0.0, %v1369
    %v1371 = vpop.f32.mrf.mxu0
    %v1372 = vpop.f32.mrf.mxu0
    %v1373 = vadd.f32 0.0, %v1372
    %v1374 = vpop.f32.mrf.mxu0
    %1375 = vdwg.mxu0
    %v1376 = vpack.c.bf16 %v1272, %v1269
    %v1377 = vpack.c.bf16 %v1280, %v1277
    %v1378 = vpack.c.bf16 %v1288, %v1285
    %v1379 = vpack.c.bf16 %v1296, %v1293
    %v1380 = vpack.c.bf16 %v1349, %v1346
    %v1381 = vpack.c.bf16 %v1357, %v1354
    %v1382 = vpack.c.bf16 %v1365, %v1362
    %v1383 = vpack.c.bf16 %v1373, %v1370
    %v1384 = vld [vmem:[%s6] sm:$0xf]
    %v1385 = vld [vmem:[%s6 + $0x4] sm:$0xf]
    %v1386 = vld [vmem:[%s6 + $0x8] sm:$0xf]
    %v1387 = vld [vmem:[%s6 + $0xc] sm:$0xf]
    %v1388 = vld [vmem:[%s6 + $0x10] sm:$0xf]
    %v1389 = vld [vmem:[%s6 + $0x14] sm:$0xf]
    %v1390 = vld [vmem:[%s6 + $0x18] sm:$0xf]
    %v1391 = vld [vmem:[%s6 + $0x1c] sm:$0xf]
    %v1392 = vld [vmem:[%s6 + $0x20] sm:$0xf]
    %v1393 = vld [vmem:[%s6 + $0x24] sm:$0xf]
    %v1394 = vld [vmem:[%s6 + $0x28] sm:$0xf]
    %v1395 = vld [vmem:[%s6 + $0x2c] sm:$0xf]
    %v1396 = vld [vmem:[%s6 + $0x30] sm:$0xf]
    %v1397 = vld [vmem:[%s6 + $0x34] sm:$0xf]
    %v1398 = vld [vmem:[%s6 + $0x38] sm:$0xf]
    %v1399 = vld [vmem:[%s6 + $0x3c] sm:$0xf]
    %v1400 = vld [vmem:[%s7] sm:$0x1]
    %v1402 = vlaneseq
    %v1403 = vshrl.u32 %v1402, 7
    %v1404 = vsub.s32 0, %v1403
    %v1405 = vrot.slane %v1400, %v1404
    %v1423 = vunpack.c.l.b16 %v1384
    %v1424 = vunpack.c.l.b16 %v1385
    %v1425 = vunpack.c.l.b16 %v1386
    %v1426 = vunpack.c.l.b16 %v1387
    %v1427 = vunpack.c.l.b16 %v1388
    %v1428 = vunpack.c.l.b16 %v1389
    %v1429 = vunpack.c.l.b16 %v1390
    %v1430 = vunpack.c.l.b16 %v1391
    %v1431 = vunpack.c.l.b16 %v1392
    %v1432 = vunpack.c.l.b16 %v1393
    %v1433 = vunpack.c.l.b16 %v1394
    %v1434 = vunpack.c.l.b16 %v1395
    %v1435 = vunpack.c.l.b16 %v1396
    %v1436 = vunpack.c.l.b16 %v1397
    %v1437 = vunpack.c.l.b16 %v1398
    %v1438 = vunpack.c.l.b16 %v1399
    %v1439 = vpack.c.b16 %v1424, %v1423
    %v1440 = vpack.c.b16 %v1426, %v1425
    %v1441 = vpack.c.b16 %v1428, %v1427
    %v1442 = vpack.c.b16 %v1430, %v1429
    %v1443 = vpack.c.b16 %v1432, %v1431
    %v1444 = vpack.c.b16 %v1434, %v1433
    %v1445 = vpack.c.b16 %v1436, %v1435
    %v1446 = vpack.c.b16 %v1438, %v1437
    %1455 = vmatprep.subr.bf16.mxu0 0
    %1456 = vmatpush1.bf16.msra.mxu0 %v1446
    %1457 = vmatprep.subr.bf16.mxu0 0
    %1458 = vmatpush1.bf16.msra.mxu0 %v1445
    %1459 = vmatprep.subr.bf16.mxu0 0
    %1460 = vmatpush1.bf16.msra.mxu0 %v1444
    %1461 = vmatprep.subr.bf16.mxu0 0
    %1462 = vmatpush1.bf16.msra.mxu0 %v1443
    %1463 = vmatprep.subr.bf16.mxu0 0
    %1464 = vmatpush1.bf16.msra.mxu0 %v1442
    %1465 = vmatprep.subr.bf16.mxu0 0
    %1466 = vmatpush1.bf16.msra.mxu0 %v1441
    %1467 = vmatprep.subr.bf16.mxu0 0
    %1468 = vmatpush1.bf16.msra.mxu0 %v1440
    %1469 = vmatprep.subr.bf16.mxu0 0
    %1470 = vmatpush1.bf16.msra.mxu0 %v1439
    %1471 = vmatprep.subr.bf16.mxu0 0
    %1472 = vmatpush2.bf16.msra.mxu0 0
    %1473 = vmatprep.subr.bf16.mxu0 0
    %1474 = vmatpush2.bf16.msra.mxu0 0
    %1475 = vmatprep.subr.bf16.mxu0 0
    %1476 = vmatpush2.bf16.msra.mxu0 0
    %1477 = vmatprep.subr.bf16.mxu0 0
    %1478 = vmatpush2.bf16.msra.mxu0 0
    %1479 = vmatprep.subr.bf16.mxu0 0
    %1480 = vmatpush2.bf16.msra.mxu0 0
    %1481 = vmatprep.subr.bf16.mxu0 0
    %1482 = vmatpush2.bf16.msra.mxu0 0
    %1483 = vmatprep.subr.bf16.mxu0 0
    %1484 = vmatpush2.bf16.msra.mxu0 0
    %1485 = vmatprep.subr.bf16.mxu0 0
    %1486 = vmatpush2.bf16.msra.mxu0 0
    %1487 = vmatprep.mubr.bf16.mxu0 0
    %1488 = vmatmul.mubr.bf16.gmra.mxu0 %v1376
    %v1489 = vpop.f32.mrf.mxu0
    %v1490 = vadd.f32 %v1405, %v1489
    %v1491 = vpop.f32.mrf.mxu0
    %v1492 = vpop.f32.mrf.mxu0
    %v1493 = vadd.f32 %v1405, %v1492
    %v1494 = vpop.f32.mrf.mxu0
    %1495 = vmatprep.mubr.bf16.mxu0 0
    %1496 = vmatmul.mubr.bf16.gmra.mxu0 %v1377
    %v1497 = vpop.f32.mrf.mxu0
    %v1498 = vadd.f32 %v1405, %v1497
    %v1499 = vpop.f32.mrf.mxu0
    %v1500 = vpop.f32.mrf.mxu0
    %v1501 = vadd.f32 %v1405, %v1500
    %v1502 = vpop.f32.mrf.mxu0
    %1503 = vmatprep.mubr.bf16.mxu0 0
    %1504 = vmatmul.mubr.bf16.gmra.mxu0 %v1378
    %v1505 = vpop.f32.mrf.mxu0
    %v1506 = vadd.f32 %v1405, %v1505
    %v1507 = vpop.f32.mrf.mxu0
    %v1508 = vpop.f32.mrf.mxu0
    %v1509 = vadd.f32 %v1405, %v1508
    %v1510 = vpop.f32.mrf.mxu0
    %1511 = vmatprep.mubr.bf16.mxu0 0
    %1512 = vmatmul.mubr.bf16.gmra.mxu0 %v1379
    %v1513 = vpop.f32.mrf.mxu0
    %v1514 = vadd.f32 %v1405, %v1513
    %v1515 = vpop.f32.mrf.mxu0
    %v1516 = vpop.f32.mrf.mxu0
    %v1517 = vadd.f32 %v1405, %v1516
    %v1518 = vpop.f32.mrf.mxu0
    %1519 = vmatprep.mubr.bf16.mxu0 0
    %1520 = vmatmul.mubr.bf16.gmra.mxu0 %v1380
    %v1521 = vpop.f32.mrf.mxu0
    %v1522 = vadd.f32 %v1405, %v1521
    %v1523 = vpop.f32.mrf.mxu0
    %v1524 = vpop.f32.mrf.mxu0
    %v1525 = vadd.f32 %v1405, %v1524
    %v1526 = vpop.f32.mrf.mxu0
    %1527 = vmatprep.mubr.bf16.mxu0 0
    %1528 = vmatmul.mubr.bf16.gmra.mxu0 %v1381
    %v1529 = vpop.f32.mrf.mxu0
    %v1530 = vadd.f32 %v1405, %v1529
    %v1531 = vpop.f32.mrf.mxu0
    %v1532 = vpop.f32.mrf.mxu0
    %v1533 = vadd.f32 %v1405, %v1532
    %v1534 = vpop.f32.mrf.mxu0
    %1535 = vmatprep.mubr.bf16.mxu0 0
    %1536 = vmatmul.mubr.bf16.gmra.mxu0 %v1382
    %v1537 = vpop.f32.mrf.mxu0
    %v1538 = vadd.f32 %v1405, %v1537
    %v1539 = vpop.f32.mrf.mxu0
    %v1540 = vpop.f32.mrf.mxu0
    %v1541 = vadd.f32 %v1405, %v1540
    %v1542 = vpop.f32.mrf.mxu0
    %1543 = vmatprep.mubr.bf16.mxu0 0
    %1544 = vmatmul.mubr.bf16.gmra.mxu0 %v1383
    %v1545 = vpop.f32.mrf.mxu0
    %v1546 = vadd.f32 %v1405, %v1545
    %v1547 = vpop.f32.mrf.mxu0
    %v1548 = vpop.f32.mrf.mxu0
    %v1549 = vadd.f32 %v1405, %v1548
    %v1550 = vpop.f32.mrf.mxu0
    %1551 = vdwg.mxu0
    %v1552 = vadd.f32 %v1490, %v1493
    %v1553 = vadd.f32 %v1552, %v1498
    %v1554 = vadd.f32 %v1553, %v1501
    %v1555 = vadd.f32 %v1554, %v1506
    %v1556 = vadd.f32 %v1555, %v1509
    %v1557 = vadd.f32 %v1556, %v1514
    %v1558 = vadd.f32 %v1557, %v1517
    %v1559 = vadd.f32 %v1558, %v1522
    %v1560 = vadd.f32 %v1559, %v1525
    %v1561 = vadd.f32 %v1560, %v1530
    %v1562 = vadd.f32 %v1561, %v1533
    %v1563 = vadd.f32 %v1562, %v1538
    %v1564 = vadd.f32 %v1563, %v1541
    %v1565 = vadd.f32 %v1564, %v1546
    %v1566 = vadd.f32 %v1565, %v1549
    %v1567 = vrot.slane %v1566, 4
    %v1568 = vadd.f32 %v1566, %v1567
    %v1569 = vrot.slane %v1568, 2
    %v1570 = vadd.f32 %v1568, %v1569
    %v1571 = vrot.slane %v1570, 1
    %v1572 = vadd.f32 %v1570, %v1571
    %1573 = vst [vmem:[#allocation4] sm:$0x1] %v1572
    %v1574 = vmul.f32 %v236, 2.0
    %v1575 = vmul.f32 %v243, 2.0
    %v1576 = vmul.f32 %v250, 2.0
    %v1577 = vmul.f32 %v257, 2.0
    %v1578 = vmul.f32 %v264, 2.0
    %v1579 = vmul.f32 %v271, 2.0
    %v1580 = vmul.f32 %v278, 2.0
    %v1581 = vmul.f32 %v285, 2.0
    %v1582 = vmul.f32 %v292, 2.0
    %v1583 = vmul.f32 %v299, 2.0
    %v1584 = vmul.f32 %v306, 2.0
    %v1585 = vmul.f32 %v313, 2.0
    %v1586 = vmul.f32 %v320, 2.0
    %v1587 = vmul.f32 %v327, 2.0
    %v1588 = vmul.f32 %v334, 2.0
    %v1589 = vmul.f32 %v341, 2.0
    %v1590 = vadd.f32 %v1574, 1e-06
    %v1591 = vadd.f32 %v1575, 1e-06
    %v1592 = vadd.f32 %v1576, 1e-06
    %v1593 = vadd.f32 %v1577, 1e-06
    %v1594 = vadd.f32 %v1578, 1e-06
    %v1595 = vadd.f32 %v1579, 1e-06
    %v1596 = vadd.f32 %v1580, 1e-06
    %v1597 = vadd.f32 %v1581, 1e-06
    %v1598 = vadd.f32 %v1582, 1e-06
    %v1599 = vadd.f32 %v1583, 1e-06
    %v1600 = vadd.f32 %v1584, 1e-06
    %v1601 = vadd.f32 %v1585, 1e-06
    %v1602 = vadd.f32 %v1586, 1e-06
    %v1603 = vadd.f32 %v1587, 1e-06
    %v1604 = vadd.f32 %v1588, 1e-06
    %v1605 = vadd.f32 %v1589, 1e-06
    %v1606 = vrcp.pop %v1590
    %v1607 = vrcp.pop %v1591
    %v1608 = vrcp.pop %v1592
    %v1609 = vrcp.pop %v1593
    %v1610 = vrcp.pop %v1594
    %v1611 = vrcp.pop %v1595
    %v1612 = vrcp.pop %v1596
    %v1613 = vrcp.pop %v1597
    %v1614 = vrcp.pop %v1598
    %v1615 = vrcp.pop %v1599
    %v1616 = vrcp.pop %v1600
    %v1617 = vrcp.pop %v1601
    %v1618 = vrcp.pop %v1602
    %v1619 = vrcp.pop %v1603
    %v1620 = vrcp.pop %v1604
    %v1621 = vrcp.pop %v1605
    %v1622 = vld [vmem:[%s8] sm:$0x1]
    %v1623 = vmul.f32 %v150, 2.0
    %v1624 = vmul.f32 %v151, 2.0
    %v1625 = vmul.f32 %v152, 2.0
    %v1626 = vmul.f32 %v153, 2.0
    %v1627 = vmul.f32 %v154, 2.0
    %v1628 = vmul.f32 %v155, 2.0
    %v1629 = vmul.f32 %v156, 2.0
    %v1630 = vmul.f32 %v157, 2.0
    %v1631 = vmul.f32 %v158, 2.0
    %v1632 = vmul.f32 %v159, 2.0
    %v1633 = vmul.f32 %v160, 2.0
    %v1634 = vmul.f32 %v161, 2.0
    %v1635 = vmul.f32 %v162, 2.0
    %v1636 = vmul.f32 %v163, 2.0
    %v1637 = vmul.f32 %v164, 2.0
    %v1638 = vmul.f32 %v165, 2.0
    %v1639 = vmul.f32 %v1623, %v1606
    %v1640 = vmul.f32 %v1624, %v1607
    %v1641 = vmul.f32 %v1625, %v1608
    %v1642 = vmul.f32 %v1626, %v1609
    %v1643 = vmul.f32 %v1627, %v1610
    %v1644 = vmul.f32 %v1628, %v1611
    %v1645 = vmul.f32 %v1629, %v1612
    %v1646 = vmul.f32 %v1630, %v1613
    %v1647 = vmul.f32 %v1631, %v1614
    %v1648 = vmul.f32 %v1632, %v1615
    %v1649 = vmul.f32 %v1633, %v1616
    %v1650 = vmul.f32 %v1634, %v1617
    %v1651 = vmul.f32 %v1635, %v1618
    %v1652 = vmul.f32 %v1636, %v1619
    %v1653 = vmul.f32 %v1637, %v1620
    %v1654 = vmul.f32 %v1638, %v1621
    %v1656 = vlaneseq
    %v1657 = vshrl.u32 %v1656, 7
    %v1658 = vsub.s32 0, %v1657
    %v1659 = vrot.slane %v1622, %v1658
    %v1661 = vmul.f32 %v1659, %v1639
    %v1662 = vmul.f32 %v1659, %v1640
    %v1663 = vmul.f32 %v1659, %v1641
    %v1664 = vmul.f32 %v1659, %v1642
    %v1665 = vmul.f32 %v1659, %v1643
    %v1666 = vmul.f32 %v1659, %v1644
    %v1667 = vmul.f32 %v1659, %v1645
    %v1668 = vmul.f32 %v1659, %v1646
    %v1669 = vmul.f32 %v1659, %v1647
    %v1670 = vmul.f32 %v1659, %v1648
    %v1671 = vmul.f32 %v1659, %v1649
    %v1672 = vmul.f32 %v1659, %v1650
    %v1673 = vmul.f32 %v1659, %v1651
    %v1674 = vmul.f32 %v1659, %v1652
    %v1675 = vmul.f32 %v1659, %v1653
    %v1676 = vmul.f32 %v1659, %v1654
    %v1677 = vld [vmem:[%s9] sm:$0x1]
    %v1679 = vlaneseq
    %v1680 = vshrl.u32 %v1679, 7
    %v1681 = vsub.s32 0, %v1680
    %v1682 = vrot.slane %v1677, %v1681
    %v1684 = vadd.f32 %v1661, %v1682
    %v1685 = vadd.f32 %v1662, %v1682
    %v1686 = vadd.f32 %v1663, %v1682
    %v1687 = vadd.f32 %v1664, %v1682
    %v1688 = vadd.f32 %v1665, %v1682
    %v1689 = vadd.f32 %v1666, %v1682
    %v1690 = vadd.f32 %v1667, %v1682
    %v1691 = vadd.f32 %v1668, %v1682
    %v1692 = vadd.f32 %v1669, %v1682
    %v1693 = vadd.f32 %v1670, %v1682
    %v1694 = vadd.f32 %v1671, %v1682
    %v1695 = vadd.f32 %v1672, %v1682
    %v1696 = vadd.f32 %v1673, %v1682
    %v1697 = vadd.f32 %v1674, %v1682
    %v1698 = vadd.f32 %v1675, %v1682
    %v1699 = vadd.f32 %v1676, %v1682
    %v1700 = vpack.c.bf16 %v1685, %v1684
    %v1701 = vpack.c.bf16 %v1687, %v1686
    %v1702 = vpack.c.bf16 %v1689, %v1688
    %v1703 = vpack.c.bf16 %v1691, %v1690
    %v1704 = vpack.c.bf16 %v1693, %v1692
    %v1705 = vpack.c.bf16 %v1695, %v1694
    %v1706 = vpack.c.bf16 %v1697, %v1696
    %v1707 = vpack.c.bf16 %v1699, %v1698
    %v1708 = vld [vmem:[%s10] sm:$0xff]
    %v1709 = vld [vmem:[%s10 + $0x8] sm:$0xff]
    %v1710 = vld [vmem:[%s10 + $0x10] sm:$0xff]
    %v1711 = vld [vmem:[%s10 + $0x18] sm:$0xff]
    %v1712 = vld [vmem:[%s10 + $0x20] sm:$0xff]
    %v1713 = vld [vmem:[%s10 + $0x28] sm:$0xff]
    %v1714 = vld [vmem:[%s10 + $0x30] sm:$0xff]
    %v1715 = vld [vmem:[%s10 + $0x38] sm:$0xff]
    %v1716 = vld [vmem:[%s10 + $0x40] sm:$0xff]
    %v1717 = vld [vmem:[%s10 + $0x48] sm:$0xff]
    %v1718 = vld [vmem:[%s10 + $0x50] sm:$0xff]
    %v1719 = vld [vmem:[%s10 + $0x58] sm:$0xff]
    %v1720 = vld [vmem:[%s10 + $0x60] sm:$0xff]
    %v1721 = vld [vmem:[%s10 + $0x68] sm:$0xff]
    %v1722 = vld [vmem:[%s10 + $0x70] sm:$0xff]
    %v1723 = vld [vmem:[%s10 + $0x78] sm:$0xff]
    %v1724 = vld [vmem:[%s10 + $0x80] sm:$0xff]
    %v1725 = vld [vmem:[%s10 + $0x88] sm:$0xff]
    %v1726 = vld [vmem:[%s10 + $0x90] sm:$0xff]
    %v1727 = vld [vmem:[%s10 + $0x98] sm:$0xff]
    %v1728 = vld [vmem:[%s10 + $0xa0] sm:$0xff]
    %v1729 = vld [vmem:[%s10 + $0xa8] sm:$0xff]
    %v1730 = vld [vmem:[%s10 + $0xb0] sm:$0xff]
    %v1731 = vld [vmem:[%s10 + $0xb8] sm:$0xff]
    %v1732 = vld [vmem:[%s10 + $0xc0] sm:$0xff]
    %v1733 = vld [vmem:[%s10 + $0xc8] sm:$0xff]
    %v1734 = vld [vmem:[%s10 + $0xd0] sm:$0xff]
    %v1735 = vld [vmem:[%s10 + $0xd8] sm:$0xff]
    %v1736 = vld [vmem:[%s10 + $0xe0] sm:$0xff]
    %v1737 = vld [vmem:[%s10 + $0xe8] sm:$0xff]
    %v1738 = vld [vmem:[%s10 + $0xf0] sm:$0xff]
    %v1739 = vld [vmem:[%s10 + $0xf8] sm:$0xff]
    %v1740 = vld [vmem:[%s11] sm:$0xf]
    %v1742 = vlaneseq
    %v1743 = vshrl.u32 %v1742, 7
    %v1744 = vsub.s32 0, %v1743
    %v1745 = vrot.slane %v1740, %v1744
    %v1746 = vlaneseq
    %v1747 = vshrl.u32 %v1746, 7
    %v1748 = vsub.s32 1, %v1747
    %v1749 = vrot.slane %v1740, %v1748
    %v1750 = vlaneseq
    %v1751 = vshrl.u32 %v1750, 7
    %v1752 = vsub.s32 2, %v1751
    %v1753 = vrot.slane %v1740, %v1752
    %v1754 = vlaneseq
    %v1755 = vshrl.u32 %v1754, 7
    %v1756 = vsub.s32 3, %v1755
    %v1757 = vrot.slane %v1740, %v1756
    %v1794 = vunpack.c.l.b16 %v1708
    %v1795 = vunpack.c.h.b16 %v1708
    %v1796 = vunpack.c.l.b16 %v1709
    %v1797 = vunpack.c.h.b16 %v1709
    %v1798 = vunpack.c.l.b16 %v1710
    %v1799 = vunpack.c.h.b16 %v1710
    %v1800 = vunpack.c.l.b16 %v1711
    %v1801 = vunpack.c.h.b16 %v1711
    %v1802 = vunpack.c.l.b16 %v1712
    %v1803 = vunpack.c.h.b16 %v1712
    %v1804 = vunpack.c.l.b16 %v1713
    %v1805 = vunpack.c.h.b16 %v1713
    %v1806 = vunpack.c.l.b16 %v1714
    %v1807 = vunpack.c.h.b16 %v1714
    %v1808 = vunpack.c.l.b16 %v1715
    %v1809 = vunpack.c.h.b16 %v1715
    %v1810 = vunpack.c.l.b16 %v1716
    %v1811 = vunpack.c.h.b16 %v1716
    %v1812 = vunpack.c.l.b16 %v1717
    %v1813 = vunpack.c.h.b16 %v1717
    %v1814 = vunpack.c.l.b16 %v1718
    %v1815 = vunpack.c.h.b16 %v1718
    %v1816 = vunpack.c.l.b16 %v1719
    %v1817 = vunpack.c.h.b16 %v1719
    %v1818 = vunpack.c.l.b16 %v1720
    %v1819 = vunpack.c.h.b16 %v1720
    %v1820 = vunpack.c.l.b16 %v1721
    %v1821 = vunpack.c.h.b16 %v1721
    %v1822 = vunpack.c.l.b16 %v1722
    %v1823 = vunpack.c.h.b16 %v1722
    %v1824 = vunpack.c.l.b16 %v1723
    %v1825 = vunpack.c.h.b16 %v1723
    %v1826 = vunpack.c.l.b16 %v1724
    %v1827 = vunpack.c.h.b16 %v1724
    %v1828 = vunpack.c.l.b16 %v1725
    %v1829 = vunpack.c.h.b16 %v1725
    %v1830 = vunpack.c.l.b16 %v1726
    %v1831 = vunpack.c.h.b16 %v1726
    %v1832 = vunpack.c.l.b16 %v1727
    %v1833 = vunpack.c.h.b16 %v1727
    %v1834 = vunpack.c.l.b16 %v1728
    %v1835 = vunpack.c.h.b16 %v1728
    %v1836 = vunpack.c.l.b16 %v1729
    %v1837 = vunpack.c.h.b16 %v1729
    %v1838 = vunpack.c.l.b16 %v1730
    %v1839 = vunpack.c.h.b16 %v1730
    %v1840 = vunpack.c.l.b16 %v1731
    %v1841 = vunpack.c.h.b16 %v1731
    %v1842 = vunpack.c.l.b16 %v1732
    %v1843 = vunpack.c.h.b16 %v1732
    %v1844 = vunpack.c.l.b16 %v1733
    %v1845 = vunpack.c.h.b16 %v1733
    %v1846 = vunpack.c.l.b16 %v1734
    %v1847 = vunpack.c.h.b16 %v1734
    %v1848 = vunpack.c.l.b16 %v1735
    %v1849 = vunpack.c.h.b16 %v1735
    %v1850 = vunpack.c.l.b16 %v1736
    %v1851 = vunpack.c.h.b16 %v1736
    %v1852 = vunpack.c.l.b16 %v1737
    %v1853 = vunpack.c.h.b16 %v1737
    %v1854 = vunpack.c.l.b16 %v1738
    %v1855 = vunpack.c.h.b16 %v1738
    %v1856 = vunpack.c.l.b16 %v1739
    %v1857 = vunpack.c.h.b16 %v1739
    %v1858 = vpack.c.b16 %v1798, %v1794
    %v1859 = vpack.c.b16 %v1799, %v1795
    %v1860 = vpack.c.b16 %v1800, %v1796
    %v1861 = vpack.c.b16 %v1801, %v1797
    %v1862 = vpack.c.b16 %v1806, %v1802
    %v1863 = vpack.c.b16 %v1807, %v1803
    %v1864 = vpack.c.b16 %v1808, %v1804
    %v1865 = vpack.c.b16 %v1809, %v1805
    %v1866 = vpack.c.b16 %v1814, %v1810
    %v1867 = vpack.c.b16 %v1815, %v1811
    %v1868 = vpack.c.b16 %v1816, %v1812
    %v1869 = vpack.c.b16 %v1817, %v1813
    %v1870 = vpack.c.b16 %v1822, %v1818
    %v1871 = vpack.c.b16 %v1823, %v1819
    %v1872 = vpack.c.b16 %v1824, %v1820
    %v1873 = vpack.c.b16 %v1825, %v1821
    %v1874 = vpack.c.b16 %v1830, %v1826
    %v1875 = vpack.c.b16 %v1831, %v1827
    %v1876 = vpack.c.b16 %v1832, %v1828
    %v1877 = vpack.c.b16 %v1833, %v1829
    %v1878 = vpack.c.b16 %v1838, %v1834
    %v1879 = vpack.c.b16 %v1839, %v1835
    %v1880 = vpack.c.b16 %v1840, %v1836
    %v1881 = vpack.c.b16 %v1841, %v1837
    %v1882 = vpack.c.b16 %v1846, %v1842
    %v1883 = vpack.c.b16 %v1847, %v1843
    %v1884 = vpack.c.b16 %v1848, %v1844
    %v1885 = vpack.c.b16 %v1849, %v1845
    %v1886 = vpack.c.b16 %v1854, %v1850
    %v1887 = vpack.c.b16 %v1855, %v1851
    %v1888 = vpack.c.b16 %v1856, %v1852
    %v1889 = vpack.c.b16 %v1857, %v1853
    %1922 = vmatprep.subr.bf16.mxu0 %v1887
    %1923 = vmatpush1.bf16.msra.mxu0 %v1886
    %1924 = vmatprep.subr.bf16.mxu0 %v1883
    %1925 = vmatpush1.bf16.msra.mxu0 %v1882
    %1926 = vmatprep.subr.bf16.mxu0 %v1879
    %1927 = vmatpush1.bf16.msra.mxu0 %v1878
    %1928 = vmatprep.subr.bf16.mxu0 %v1875
    %1929 = vmatpush1.bf16.msra.mxu0 %v1874
    %1930 = vmatprep.subr.bf16.mxu0 %v1871
    %1931 = vmatpush1.bf16.msra.mxu0 %v1870
    %1932 = vmatprep.subr.bf16.mxu0 %v1867
    %1933 = vmatpush1.bf16.msra.mxu0 %v1866
    %1934 = vmatprep.subr.bf16.mxu0 %v1863
    %1935 = vmatpush1.bf16.msra.mxu0 %v1862
    %1936 = vmatprep.subr.bf16.mxu0 %v1859
    %1937 = vmatpush1.bf16.msra.mxu0 %v1858
    %1938 = vmatprep.subr.bf16.mxu0 0
    %1939 = vmatpush2.bf16.msra.mxu0 0
    %1940 = vmatprep.subr.bf16.mxu0 0
    %1941 = vmatpush2.bf16.msra.mxu0 0
    %1942 = vmatprep.subr.bf16.mxu0 0
    %1943 = vmatpush2.bf16.msra.mxu0 0
    %1944 = vmatprep.subr.bf16.mxu0 0
    %1945 = vmatpush2.bf16.msra.mxu0 0
    %1946 = vmatprep.subr.bf16.mxu0 0
    %1947 = vmatpush2.bf16.msra.mxu0 0
    %1948 = vmatprep.subr.bf16.mxu0 0
    %1949 = vmatpush2.bf16.msra.mxu0 0
    %1950 = vmatprep.subr.bf16.mxu0 0
    %1951 = vmatpush2.bf16.msra.mxu0 0
    %1952 = vmatprep.subr.bf16.mxu0 0
    %1953 = vmatpush2.bf16.msra.mxu0 0
    %1954 = vmatprep.mubr.bf16.mxu0 0
    %1955 = vmatmul.mubr.bf16.gmra.mxu0 %v1700
    %v1956 = vpop.f32.mrf.mxu0
    %v1957 = vadd.f32 %v1745, %v1956
    %v1958 = vpop.f32.mrf.mxu0
    %v1959 = vadd.f32 %v1749, %v1958
    %v1960 = vpop.f32.mrf.mxu0
    %v1961 = vadd.f32 %v1745, %v1960
    %v1962 = vpop.f32.mrf.mxu0
    %v1963 = vadd.f32 %v1749, %v1962
    %1964 = vmatprep.mubr.bf16.mxu0 0
    %1965 = vmatmul.mubr.bf16.gmra.mxu0 %v1701
    %v1966 = vpop.f32.mrf.mxu0
    %v1967 = vadd.f32 %v1745, %v1966
    %v1968 = vpop.f32.mrf.mxu0
    %v1969 = vadd.f32 %v1749, %v1968
    %v1970 = vpop.f32.mrf.mxu0
    %v1971 = vadd.f32 %v1745, %v1970
    %v1972 = vpop.f32.mrf.mxu0
    %v1973 = vadd.f32 %v1749, %v1972
    %1974 = vmatprep.mubr.bf16.mxu0 0
    %1975 = vmatmul.mubr.bf16.gmra.mxu0 %v1702
    %v1976 = vpop.f32.mrf.mxu0
    %v1977 = vadd.f32 %v1745, %v1976
    %v1978 = vpop.f32.mrf.mxu0
    %v1979 = vadd.f32 %v1749, %v1978
    %v1980 = vpop.f32.mrf.mxu0
    %v1981 = vadd.f32 %v1745, %v1980
    %v1982 = vpop.f32.mrf.mxu0
    %v1983 = vadd.f32 %v1749, %v1982
    %1984 = vmatprep.mubr.bf16.mxu0 0
    %1985 = vmatmul.mubr.bf16.gmra.mxu0 %v1703
    %v1986 = vpop.f32.mrf.mxu0
    %v1987 = vadd.f32 %v1745, %v1986
    %v1988 = vpop.f32.mrf.mxu0
    %v1989 = vadd.f32 %v1749, %v1988
    %v1990 = vpop.f32.mrf.mxu0
    %v1991 = vadd.f32 %v1745, %v1990
    %v1992 = vpop.f32.mrf.mxu0
    %v1993 = vadd.f32 %v1749, %v1992
    %1994 = vmatprep.mubr.bf16.mxu0 0
    %1995 = vmatmul.mubr.bf16.gmra.mxu0 %v1704
    %v1996 = vpop.f32.mrf.mxu0
    %v1997 = vadd.f32 %v1745, %v1996
    %v1998 = vpop.f32.mrf.mxu0
    %v1999 = vadd.f32 %v1749, %v1998
    %v2000 = vpop.f32.mrf.mxu0
    %v2001 = vadd.f32 %v1745, %v2000
    %v2002 = vpop.f32.mrf.mxu0
    %v2003 = vadd.f32 %v1749, %v2002
    %2004 = vmatprep.mubr.bf16.mxu0 0
    %2005 = vmatmul.mubr.bf16.gmra.mxu0 %v1705
    %v2006 = vpop.f32.mrf.mxu0
    %v2007 = vadd.f32 %v1745, %v2006
    %v2008 = vpop.f32.mrf.mxu0
    %v2009 = vadd.f32 %v1749, %v2008
    %v2010 = vpop.f32.mrf.mxu0
    %v2011 = vadd.f32 %v1745, %v2010
    %v2012 = vpop.f32.mrf.mxu0
    %v2013 = vadd.f32 %v1749, %v2012
    %2014 = vmatprep.mubr.bf16.mxu0 0
    %2015 = vmatmul.mubr.bf16.gmra.mxu0 %v1706
    %v2016 = vpop.f32.mrf.mxu0
    %v2017 = vadd.f32 %v1745, %v2016
    %v2018 = vpop.f32.mrf.mxu0
    %v2019 = vadd.f32 %v1749, %v2018
    %v2020 = vpop.f32.mrf.mxu0
    %v2021 = vadd.f32 %v1745, %v2020
    %v2022 = vpop.f32.mrf.mxu0
    %v2023 = vadd.f32 %v1749, %v2022
    %2024 = vmatprep.mubr.bf16.mxu0 0
    %2025 = vmatmul.mubr.bf16.gmra.mxu0 %v1707
    %v2026 = vpop.f32.mrf.mxu0
    %v2027 = vadd.f32 %v1745, %v2026
    %v2028 = vpop.f32.mrf.mxu0
    %v2029 = vadd.f32 %v1749, %v2028
    %v2030 = vpop.f32.mrf.mxu0
    %v2031 = vadd.f32 %v1745, %v2030
    %v2032 = vpop.f32.mrf.mxu0
    %v2033 = vadd.f32 %v1749, %v2032
    %2034 = vdwg.mxu0
    %2035 = vmatprep.subr.bf16.mxu0 %v1889
    %2036 = vmatpush1.bf16.msra.mxu0 %v1888
    %2037 = vmatprep.subr.bf16.mxu0 %v1885
    %2038 = vmatpush1.bf16.msra.mxu0 %v1884
    %2039 = vmatprep.subr.bf16.mxu0 %v1881
    %2040 = vmatpush1.bf16.msra.mxu0 %v1880
    %2041 = vmatprep.subr.bf16.mxu0 %v1877
    %2042 = vmatpush1.bf16.msra.mxu0 %v1876
    %2043 = vmatprep.subr.bf16.mxu0 %v1873
    %2044 = vmatpush1.bf16.msra.mxu0 %v1872
    %2045 = vmatprep.subr.bf16.mxu0 %v1869
    %2046 = vmatpush1.bf16.msra.mxu0 %v1868
    %2047 = vmatprep.subr.bf16.mxu0 %v1865
    %2048 = vmatpush1.bf16.msra.mxu0 %v1864
    %2049 = vmatprep.subr.bf16.mxu0 %v1861
    %2050 = vmatpush1.bf16.msra.mxu0 %v1860
    %2051 = vmatprep.subr.bf16.mxu0 0
    %2052 = vmatpush2.bf16.msra.mxu0 0
    %2053 = vmatprep.subr.bf16.mxu0 0
    %2054 = vmatpush2.bf16.msra.mxu0 0
    %2055 = vmatprep.subr.bf16.mxu0 0
    %2056 = vmatpush2.bf16.msra.mxu0 0
    %2057 = vmatprep.subr.bf16.mxu0 0
    %2058 = vmatpush2.bf16.msra.mxu0 0
    %2059 = vmatprep.subr.bf16.mxu0 0
    %2060 = vmatpush2.bf16.msra.mxu0 0
    %2061 = vmatprep.subr.bf16.mxu0 0
    %2062 = vmatpush2.bf16.msra.mxu0 0
    %2063 = vmatprep.subr.bf16.mxu0 0
    %2064 = vmatpush2.bf16.msra.mxu0 0
    %2065 = vmatprep.subr.bf16.mxu0 0
    %2066 = vmatpush2.bf16.msra.mxu0 0
    %2067 = vmatprep.mubr.bf16.mxu0 0
    %2068 = vmatmul.mubr.bf16.gmra.mxu0 %v1700
    %v2069 = vpop.f32.mrf.mxu0
    %v2070 = vadd.f32 %v1753, %v2069
    %v2071 = vpop.f32.mrf.mxu0
    %v2072 = vadd.f32 %v1757, %v2071
    %v2073 = vpop.f32.mrf.mxu0
    %v2074 = vadd.f32 %v1753, %v2073
    %v2075 = vpop.f32.mrf.mxu0
    %v2076 = vadd.f32 %v1757, %v2075
    %2077 = vmatprep.mubr.bf16.mxu0 0
    %2078 = vmatmul.mubr.bf16.gmra.mxu0 %v1701
    %v2079 = vpop.f32.mrf.mxu0
    %v2080 = vadd.f32 %v1753, %v2079
    %v2081 = vpop.f32.mrf.mxu0
    %v2082 = vadd.f32 %v1757, %v2081
    %v2083 = vpop.f32.mrf.mxu0
    %v2084 = vadd.f32 %v1753, %v2083
    %v2085 = vpop.f32.mrf.mxu0
    %v2086 = vadd.f32 %v1757, %v2085
    %2087 = vmatprep.mubr.bf16.mxu0 0
    %2088 = vmatmul.mubr.bf16.gmra.mxu0 %v1702
    %v2089 = vpop.f32.mrf.mxu0
    %v2090 = vadd.f32 %v1753, %v2089
    %v2091 = vpop.f32.mrf.mxu0
    %v2092 = vadd.f32 %v1757, %v2091
    %v2093 = vpop.f32.mrf.mxu0
    %v2094 = vadd.f32 %v1753, %v2093
    %v2095 = vpop.f32.mrf.mxu0
    %v2096 = vadd.f32 %v1757, %v2095
    %2097 = vmatprep.mubr.bf16.mxu0 0
    %2098 = vmatmul.mubr.bf16.gmra.mxu0 %v1703
    %v2099 = vpop.f32.mrf.mxu0
    %v2100 = vadd.f32 %v1753, %v2099
    %v2101 = vpop.f32.mrf.mxu0
    %v2102 = vadd.f32 %v1757, %v2101
    %v2103 = vpop.f32.mrf.mxu0
    %v2104 = vadd.f32 %v1753, %v2103
    %v2105 = vpop.f32.mrf.mxu0
    %v2106 = vadd.f32 %v1757, %v2105
    %2107 = vmatprep.mubr.bf16.mxu0 0
    %2108 = vmatmul.mubr.bf16.gmra.mxu0 %v1704
    %v2109 = vpop.f32.mrf.mxu0
    %v2110 = vadd.f32 %v1753, %v2109
    %v2111 = vpop.f32.mrf.mxu0
    %v2112 = vadd.f32 %v1757, %v2111
    %v2113 = vpop.f32.mrf.mxu0
    %v2114 = vadd.f32 %v1753, %v2113
    %v2115 = vpop.f32.mrf.mxu0
    %v2116 = vadd.f32 %v1757, %v2115
    %2117 = vmatprep.mubr.bf16.mxu0 0
    %2118 = vmatmul.mubr.bf16.gmra.mxu0 %v1705
    %v2119 = vpop.f32.mrf.mxu0
    %v2120 = vadd.f32 %v1753, %v2119
    %v2121 = vpop.f32.mrf.mxu0
    %v2122 = vadd.f32 %v1757, %v2121
    %v2123 = vpop.f32.mrf.mxu0
    %v2124 = vadd.f32 %v1753, %v2123
    %v2125 = vpop.f32.mrf.mxu0
    %v2126 = vadd.f32 %v1757, %v2125
    %2127 = vmatprep.mubr.bf16.mxu0 0
    %2128 = vmatmul.mubr.bf16.gmra.mxu0 %v1706
    %v2129 = vpop.f32.mrf.mxu0
    %v2130 = vadd.f32 %v1753, %v2129
    %v2131 = vpop.f32.mrf.mxu0
    %v2132 = vadd.f32 %v1757, %v2131
    %v2133 = vpop.f32.mrf.mxu0
    %v2134 = vadd.f32 %v1753, %v2133
    %v2135 = vpop.f32.mrf.mxu0
    %v2136 = vadd.f32 %v1757, %v2135
    %2137 = vmatprep.mubr.bf16.mxu0 0
    %2138 = vmatmul.mubr.bf16.gmra.mxu0 %v1707
    %v2139 = vpop.f32.mrf.mxu0
    %v2140 = vadd.f32 %v1753, %v2139
    %v2141 = vpop.f32.mrf.mxu0
    %v2142 = vadd.f32 %v1757, %v2141
    %v2143 = vpop.f32.mrf.mxu0
    %v2144 = vadd.f32 %v1753, %v2143
    %v2145 = vpop.f32.mrf.mxu0
    %v2146 = vadd.f32 %v1757, %v2145
    %2147 = vdwg.mxu0
    %v2148 = vmax.f32 %v1957, 0.0
    %v2149 = vmax.f32 %v1959, 0.0
    %v2150 = vmax.f32 %v2070, 0.0
    %v2151 = vmax.f32 %v2072, 0.0
    %v2152 = vmax.f32 %v1961, 0.0
    %v2153 = vmax.f32 %v1963, 0.0
    %v2154 = vmax.f32 %v2074, 0.0
    %v2155 = vmax.f32 %v2076, 0.0
    %v2156 = vmax.f32 %v1967, 0.0
    %v2157 = vmax.f32 %v1969, 0.0
    %v2158 = vmax.f32 %v2080, 0.0
    %v2159 = vmax.f32 %v2082, 0.0
    %v2160 = vmax.f32 %v1971, 0.0
    %v2161 = vmax.f32 %v1973, 0.0
    %v2162 = vmax.f32 %v2084, 0.0
    %v2163 = vmax.f32 %v2086, 0.0
    %v2164 = vmax.f32 %v1977, 0.0
    %v2165 = vmax.f32 %v1979, 0.0
    %v2166 = vmax.f32 %v2090, 0.0
    %v2167 = vmax.f32 %v2092, 0.0
    %v2168 = vmax.f32 %v1981, 0.0
    %v2169 = vmax.f32 %v1983, 0.0
    %v2170 = vmax.f32 %v2094, 0.0
    %v2171 = vmax.f32 %v2096, 0.0
    %v2172 = vmax.f32 %v1987, 0.0
    %v2173 = vmax.f32 %v1989, 0.0
    %v2174 = vmax.f32 %v2100, 0.0
    %v2175 = vmax.f32 %v2102, 0.0
    %v2176 = vmax.f32 %v1991, 0.0
    %v2177 = vmax.f32 %v1993, 0.0
    %v2178 = vmax.f32 %v2104, 0.0
    %v2179 = vmax.f32 %v2106, 0.0
    %v2180 = vmax.f32 %v1997, 0.0
    %v2181 = vmax.f32 %v1999, 0.0
    %v2182 = vmax.f32 %v2110, 0.0
    %v2183 = vmax.f32 %v2112, 0.0
    %v2184 = vmax.f32 %v2001, 0.0
    %v2185 = vmax.f32 %v2003, 0.0
    %v2186 = vmax.f32 %v2114, 0.0
    %v2187 = vmax.f32 %v2116, 0.0
    %v2188 = vmax.f32 %v2007, 0.0
    %v2189 = vmax.f32 %v2009, 0.0
    %v2190 = vmax.f32 %v2120, 0.0
    %v2191 = vmax.f32 %v2122, 0.0
    %v2192 = vmax.f32 %v2011, 0.0
    %v2193 = vmax.f32 %v2013, 0.0
    %v2194 = vmax.f32 %v2124, 0.0
    %v2195 = vmax.f32 %v2126, 0.0
    %v2196 = vmax.f32 %v2017, 0.0
    %v2197 = vmax.f32 %v2019, 0.0
    %v2198 = vmax.f32 %v2130, 0.0
    %v2199 = vmax.f32 %v2132, 0.0
    %v2200 = vmax.f32 %v2021, 0.0
    %v2201 = vmax.f32 %v2023, 0.0
    %v2202 = vmax.f32 %v2134, 0.0
    %v2203 = vmax.f32 %v2136, 0.0
    %v2204 = vmax.f32 %v2027, 0.0
    %v2205 = vmax.f32 %v2029, 0.0
    %v2206 = vmax.f32 %v2140, 0.0
    %v2207 = vmax.f32 %v2142, 0.0
    %v2208 = vmax.f32 %v2031, 0.0
    %v2209 = vmax.f32 %v2033, 0.0
    %v2210 = vmax.f32 %v2144, 0.0
    %v2211 = vmax.f32 %v2146, 0.0
    %v2212 = vpack.c.bf16 %v2152, %v2148
    %v2213 = vpack.c.bf16 %v2153, %v2149
    %v2214 = vpack.c.bf16 %v2154, %v2150
    %v2215 = vpack.c.bf16 %v2155, %v2151
    %v2216 = vpack.c.bf16 %v2160, %v2156
    %v2217 = vpack.c.bf16 %v2161, %v2157
    %v2218 = vpack.c.bf16 %v2162, %v2158
    %v2219 = vpack.c.bf16 %v2163, %v2159
    %v2220 = vpack.c.bf16 %v2168, %v2164
    %v2221 = vpack.c.bf16 %v2169, %v2165
    %v2222 = vpack.c.bf16 %v2170, %v2166
    %v2223 = vpack.c.bf16 %v2171, %v2167
    %v2224 = vpack.c.bf16 %v2176, %v2172
    %v2225 = vpack.c.bf16 %v2177, %v2173
    %v2226 = vpack.c.bf16 %v2178, %v2174
    %v2227 = vpack.c.bf16 %v2179, %v2175
    %v2228 = vpack.c.bf16 %v2184, %v2180
    %v2229 = vpack.c.bf16 %v2185, %v2181
    %v2230 = vpack.c.bf16 %v2186, %v2182
    %v2231 = vpack.c.bf16 %v2187, %v2183
    %v2232 = vpack.c.bf16 %v2192, %v2188
    %v2233 = vpack.c.bf16 %v2193, %v2189
    %v2234 = vpack.c.bf16 %v2194, %v2190
    %v2235 = vpack.c.bf16 %v2195, %v2191
    %v2236 = vpack.c.bf16 %v2200, %v2196
    %v2237 = vpack.c.bf16 %v2201, %v2197
    %v2238 = vpack.c.bf16 %v2202, %v2198
    %v2239 = vpack.c.bf16 %v2203, %v2199
    %v2240 = vpack.c.bf16 %v2208, %v2204
    %v2241 = vpack.c.bf16 %v2209, %v2205
    %v2242 = vpack.c.bf16 %v2210, %v2206
    %v2243 = vpack.c.bf16 %v2211, %v2207
    %v2244 = vld [vmem:[%s12] sm:$0xf]
    %v2245 = vld [vmem:[%s12 + $0x4] sm:$0xf]
    %v2246 = vld [vmem:[%s12 + $0x8] sm:$0xf]
    %v2247 = vld [vmem:[%s12 + $0xc] sm:$0xf]
    %v2248 = vld [vmem:[%s12 + $0x10] sm:$0xf]
    %v2249 = vld [vmem:[%s12 + $0x14] sm:$0xf]
    %v2250 = vld [vmem:[%s12 + $0x18] sm:$0xf]
    %v2251 = vld [vmem:[%s12 + $0x1c] sm:$0xf]
    %v2252 = vld [vmem:[%s12 + $0x20] sm:$0xf]
    %v2253 = vld [vmem:[%s12 + $0x24] sm:$0xf]
    %v2254 = vld [vmem:[%s12 + $0x28] sm:$0xf]
    %v2255 = vld [vmem:[%s12 + $0x2c] sm:$0xf]
    %v2256 = vld [vmem:[%s12 + $0x30] sm:$0xf]
    %v2257 = vld [vmem:[%s12 + $0x34] sm:$0xf]
    %v2258 = vld [vmem:[%s12 + $0x38] sm:$0xf]
    %v2259 = vld [vmem:[%s12 + $0x3c] sm:$0xf]
    %v2260 = vld [vmem:[%s12 + $0x40] sm:$0xf]
    %v2261 = vld [vmem:[%s12 + $0x44] sm:$0xf]
    %v2262 = vld [vmem:[%s12 + $0x48] sm:$0xf]
    %v2263 = vld [vmem:[%s12 + $0x4c] sm:$0xf]
    %v2264 = vld [vmem:[%s12 + $0x50] sm:$0xf]
    %v2265 = vld [vmem:[%s12 + $0x54] sm:$0xf]
    %v2266 = vld [vmem:[%s12 + $0x58] sm:$0xf]
    %v2267 = vld [vmem:[%s12 + $0x5c] sm:$0xf]
    %v2268 = vld [vmem:[%s12 + $0x60] sm:$0xf]
    %v2269 = vld [vmem:[%s12 + $0x64] sm:$0xf]
    %v2270 = vld [vmem:[%s12 + $0x68] sm:$0xf]
    %v2271 = vld [vmem:[%s12 + $0x6c] sm:$0xf]
    %v2272 = vld [vmem:[%s12 + $0x70] sm:$0xf]
    %v2273 = vld [vmem:[%s12 + $0x74] sm:$0xf]
    %v2274 = vld [vmem:[%s12 + $0x78] sm:$0xf]
    %v2275 = vld [vmem:[%s12 + $0x7c] sm:$0xf]
    %v2276 = vld [vmem:[%s12 + $0x80] sm:$0xf]
    %v2277 = vld [vmem:[%s12 + $0x84] sm:$0xf]
    %v2278 = vld [vmem:[%s12 + $0x88] sm:$0xf]
    %v2279 = vld [vmem:[%s12 + $0x8c] sm:$0xf]
    %v2280 = vld [vmem:[%s12 + $0x90] sm:$0xf]
    %v2281 = vld [vmem:[%s12 + $0x94] sm:$0xf]
    %v2282 = vld [vmem:[%s12 + $0x98] sm:$0xf]
    %v2283 = vld [vmem:[%s12 + $0x9c] sm:$0xf]
    %v2284 = vld [vmem:[%s12 + $0xa0] sm:$0xf]
    %v2285 = vld [vmem:[%s12 + $0xa4] sm:$0xf]
    %v2286 = vld [vmem:[%s12 + $0xa8] sm:$0xf]
    %v2287 = vld [vmem:[%s12 + $0xac] sm:$0xf]
    %v2288 = vld [vmem:[%s12 + $0xb0] sm:$0xf]
    %v2289 = vld [vmem:[%s12 + $0xb4] sm:$0xf]
    %v2290 = vld [vmem:[%s12 + $0xb8] sm:$0xf]
    %v2291 = vld [vmem:[%s12 + $0xbc] sm:$0xf]
    %v2292 = vld [vmem:[%s12 + $0xc0] sm:$0xf]
    %v2293 = vld [vmem:[%s12 + $0xc4] sm:$0xf]
    %v2294 = vld [vmem:[%s12 + $0xc8] sm:$0xf]
    %v2295 = vld [vmem:[%s12 + $0xcc] sm:$0xf]
    %v2296 = vld [vmem:[%s12 + $0xd0] sm:$0xf]
    %v2297 = vld [vmem:[%s12 + $0xd4] sm:$0xf]
    %v2298 = vld [vmem:[%s12 + $0xd8] sm:$0xf]
    %v2299 = vld [vmem:[%s12 + $0xdc] sm:$0xf]
    %v2300 = vld [vmem:[%s12 + $0xe0] sm:$0xf]
    %v2301 = vld [vmem:[%s12 + $0xe4] sm:$0xf]
    %v2302 = vld [vmem:[%s12 + $0xe8] sm:$0xf]
    %v2303 = vld [vmem:[%s12 + $0xec] sm:$0xf]
    %v2304 = vld [vmem:[%s12 + $0xf0] sm:$0xf]
    %v2305 = vld [vmem:[%s12 + $0xf4] sm:$0xf]
    %v2306 = vld [vmem:[%s12 + $0xf8] sm:$0xf]
    %v2307 = vld [vmem:[%s12 + $0xfc] sm:$0xf]
    %v2308 = vld [vmem:[%s13] sm:$0x1]
    %v2310 = vlaneseq
    %v2311 = vshrl.u32 %v2310, 7
    %v2312 = vsub.s32 0, %v2311
    %v2313 = vrot.slane %v2308, %v2312
    %v2379 = vunpack.c.l.b16 %v2244
    %v2380 = vunpack.c.l.b16 %v2245
    %v2381 = vunpack.c.l.b16 %v2246
    %v2382 = vunpack.c.l.b16 %v2247
    %v2383 = vunpack.c.l.b16 %v2248
    %v2384 = vunpack.c.l.b16 %v2249
    %v2385 = vunpack.c.l.b16 %v2250
    %v2386 = vunpack.c.l.b16 %v2251
    %v2387 = vunpack.c.l.b16 %v2252
    %v2388 = vunpack.c.l.b16 %v2253
    %v2389 = vunpack.c.l.b16 %v2254
    %v2390 = vunpack.c.l.b16 %v2255
    %v2391 = vunpack.c.l.b16 %v2256
    %v2392 = vunpack.c.l.b16 %v2257
    %v2393 = vunpack.c.l.b16 %v2258
    %v2394 = vunpack.c.l.b16 %v2259
    %v2395 = vunpack.c.l.b16 %v2260
    %v2396 = vunpack.c.l.b16 %v2261
    %v2397 = vunpack.c.l.b16 %v2262
    %v2398 = vunpack.c.l.b16 %v2263
    %v2399 = vunpack.c.l.b16 %v2264
    %v2400 = vunpack.c.l.b16 %v2265
    %v2401 = vunpack.c.l.b16 %v2266
    %v2402 = vunpack.c.l.b16 %v2267
    %v2403 = vunpack.c.l.b16 %v2268
    %v2404 = vunpack.c.l.b16 %v2269
    %v2405 = vunpack.c.l.b16 %v2270
    %v2406 = vunpack.c.l.b16 %v2271
    %v2407 = vunpack.c.l.b16 %v2272
    %v2408 = vunpack.c.l.b16 %v2273
    %v2409 = vunpack.c.l.b16 %v2274
    %v2410 = vunpack.c.l.b16 %v2275
    %v2411 = vunpack.c.l.b16 %v2276
    %v2412 = vunpack.c.l.b16 %v2277
    %v2413 = vunpack.c.l.b16 %v2278
    %v2414 = vunpack.c.l.b16 %v2279
    %v2415 = vunpack.c.l.b16 %v2280
    %v2416 = vunpack.c.l.b16 %v2281
    %v2417 = vunpack.c.l.b16 %v2282
    %v2418 = vunpack.c.l.b16 %v2283
    %v2419 = vunpack.c.l.b16 %v2284
    %v2420 = vunpack.c.l.b16 %v2285
    %v2421 = vunpack.c.l.b16 %v2286
    %v2422 = vunpack.c.l.b16 %v2287
    %v2423 = vunpack.c.l.b16 %v2288
    %v2424 = vunpack.c.l.b16 %v2289
    %v2425 = vunpack.c.l.b16 %v2290
    %v2426 = vunpack.c.l.b16 %v2291
    %v2427 = vunpack.c.l.b16 %v2292
    %v2428 = vunpack.c.l.b16 %v2293
    %v2429 = vunpack.c.l.b16 %v2294
    %v2430 = vunpack.c.l.b16 %v2295
    %v2431 = vunpack.c.l.b16 %v2296
    %v2432 = vunpack.c.l.b16 %v2297
    %v2433 = vunpack.c.l.b16 %v2298
    %v2434 = vunpack.c.l.b16 %v2299
    %v2435 = vunpack.c.l.b16 %v2300
    %v2436 = vunpack.c.l.b16 %v2301
    %v2437 = vunpack.c.l.b16 %v2302
    %v2438 = vunpack.c.l.b16 %v2303
    %v2439 = vunpack.c.l.b16 %v2304
    %v2440 = vunpack.c.l.b16 %v2305
    %v2441 = vunpack.c.l.b16 %v2306
    %v2442 = vunpack.c.l.b16 %v2307
    %v2443 = vpack.c.b16 %v2380, %v2379
    %v2444 = vpack.c.b16 %v2382, %v2381
    %v2445 = vpack.c.b16 %v2384, %v2383
    %v2446 = vpack.c.b16 %v2386, %v2385
    %v2447 = vpack.c.b16 %v2388, %v2387
    %v2448 = vpack.c.b16 %v2390, %v2389
    %v2449 = vpack.c.b16 %v2392, %v2391
    %v2450 = vpack.c.b16 %v2394, %v2393
    %v2451 = vpack.c.b16 %v2396, %v2395
    %v2452 = vpack.c.b16 %v2398, %v2397
    %v2453 = vpack.c.b16 %v2400, %v2399
    %v2454 = vpack.c.b16 %v2402, %v2401
    %v2455 = vpack.c.b16 %v2404, %v2403
    %v2456 = vpack.c.b16 %v2406, %v2405
    %v2457 = vpack.c.b16 %v2408, %v2407
    %v2458 = vpack.c.b16 %v2410, %v2409
    %v2459 = vpack.c.b16 %v2412, %v2411
    %v2460 = vpack.c.b16 %v2414, %v2413
    %v2461 = vpack.c.b16 %v2416, %v2415
    %v2462 = vpack.c.b16 %v2418, %v2417
    %v2463 = vpack.c.b16 %v2420, %v2419
    %v2464 = vpack.c.b16 %v2422, %v2421
    %v2465 = vpack.c.b16 %v2424, %v2423
    %v2466 = vpack.c.b16 %v2426, %v2425
    %v2467 = vpack.c.b16 %v2428, %v2427
    %v2468 = vpack.c.b16 %v2430, %v2429
    %v2469 = vpack.c.b16 %v2432, %v2431
    %v2470 = vpack.c.b16 %v2434, %v2433
    %v2471 = vpack.c.b16 %v2436, %v2435
    %v2472 = vpack.c.b16 %v2438, %v2437
    %v2473 = vpack.c.b16 %v2440, %v2439
    %v2474 = vpack.c.b16 %v2442, %v2441
    %2507 = vmatprep.subr.bf16.mxu0 0
    %2508 = vmatpush1.bf16.msra.mxu0 %v2450
    %2509 = vmatprep.subr.bf16.mxu0 0
    %2510 = vmatpush1.bf16.msra.mxu0 %v2449
    %2511 = vmatprep.subr.bf16.mxu0 0
    %2512 = vmatpush1.bf16.msra.mxu0 %v2448
    %2513 = vmatprep.subr.bf16.mxu0 0
    %2514 = vmatpush1.bf16.msra.mxu0 %v2447
    %2515 = vmatprep.subr.bf16.mxu0 0
    %2516 = vmatpush1.bf16.msra.mxu0 %v2446
    %2517 = vmatprep.subr.bf16.mxu0 0
    %2518 = vmatpush1.bf16.msra.mxu0 %v2445
    %2519 = vmatprep.subr.bf16.mxu0 0
    %2520 = vmatpush1.bf16.msra.mxu0 %v2444
    %2521 = vmatprep.subr.bf16.mxu0 0
    %2522 = vmatpush1.bf16.msra.mxu0 %v2443
    %2523 = vmatprep.subr.bf16.mxu0 0
    %2524 = vmatpush2.bf16.msra.mxu0 %v2458
    %2525 = vmatprep.subr.bf16.mxu0 0
    %2526 = vmatpush2.bf16.msra.mxu0 %v2457
    %2527 = vmatprep.subr.bf16.mxu0 0
    %2528 = vmatpush2.bf16.msra.mxu0 %v2456
    %2529 = vmatprep.subr.bf16.mxu0 0
    %2530 = vmatpush2.bf16.msra.mxu0 %v2455
    %2531 = vmatprep.subr.bf16.mxu0 0
    %2532 = vmatpush2.bf16.msra.mxu0 %v2454
    %2533 = vmatprep.subr.bf16.mxu0 0
    %2534 = vmatpush2.bf16.msra.mxu0 %v2453
    %2535 = vmatprep.subr.bf16.mxu0 0
    %2536 = vmatpush2.bf16.msra.mxu0 %v2452
    %2537 = vmatprep.subr.bf16.mxu0 0
    %2538 = vmatpush2.bf16.msra.mxu0 %v2451
    %2539 = vmatprep.mubr.bf16.mxu0 %v2213
    %2540 = vmatmul.mubr.bf16.gmra.mxu0 %v2212
    %v2541 = vpop.f32.mrf.mxu0
    %v2542 = vadd.f32 %v2313, %v2541
    %v2543 = vpop.f32.mrf.mxu0
    %v2544 = vpop.f32.mrf.mxu0
    %v2545 = vadd.f32 %v2313, %v2544
    %v2546 = vpop.f32.mrf.mxu0
    %2547 = vmatprep.mubr.bf16.mxu0 %v2217
    %2548 = vmatmul.mubr.bf16.gmra.mxu0 %v2216
    %v2549 = vpop.f32.mrf.mxu0
    %v2550 = vadd.f32 %v2313, %v2549
    %v2551 = vpop.f32.mrf.mxu0
    %v2552 = vpop.f32.mrf.mxu0
    %v2553 = vadd.f32 %v2313, %v2552
    %v2554 = vpop.f32.mrf.mxu0
    %2555 = vmatprep.mubr.bf16.mxu0 %v2221
    %2556 = vmatmul.mubr.bf16.gmra.mxu0 %v2220
    %v2557 = vpop.f32.mrf.mxu0
    %v2558 = vadd.f32 %v2313, %v2557
    %v2559 = vpop.f32.mrf.mxu0
    %v2560 = vpop.f32.mrf.mxu0
    %v2561 = vadd.f32 %v2313, %v2560
    %v2562 = vpop.f32.mrf.mxu0
    %2563 = vmatprep.mubr.bf16.mxu0 %v2225
    %2564 = vmatmul.mubr.bf16.gmra.mxu0 %v2224
    %v2565 = vpop.f32.mrf.mxu0
    %v2566 = vadd.f32 %v2313, %v2565
    %v2567 = vpop.f32.mrf.mxu0
    %v2568 = vpop.f32.mrf.mxu0
    %v2569 = vadd.f32 %v2313, %v2568
    %v2570 = vpop.f32.mrf.mxu0
    %2571 = vmatprep.mubr.bf16.mxu0 %v2229
    %2572 = vmatmul.mubr.bf16.gmra.mxu0 %v2228
    %v2573 = vpop.f32.mrf.mxu0
    %v2574 = vadd.f32 %v2313, %v2573
    %v2575 = vpop.f32.mrf.mxu0
    %v2576 = vpop.f32.mrf.mxu0
    %v2577 = vadd.f32 %v2313, %v2576
    %v2578 = vpop.f32.mrf.mxu0
    %2579 = vmatprep.mubr.bf16.mxu0 %v2233
    %2580 = vmatmul.mubr.bf16.gmra.mxu0 %v2232
    %v2581 = vpop.f32.mrf.mxu0
    %v2582 = vadd.f32 %v2313, %v2581
    %v2583 = vpop.f32.mrf.mxu0
    %v2584 = vpop.f32.mrf.mxu0
    %v2585 = vadd.f32 %v2313, %v2584
    %v2586 = vpop.f32.mrf.mxu0
    %2587 = vmatprep.mubr.bf16.mxu0 %v2237
    %2588 = vmatmul.mubr.bf16.gmra.mxu0 %v2236
    %v2589 = vpop.f32.mrf.mxu0
    %v2590 = vadd.f32 %v2313, %v2589
    %v2591 = vpop.f32.mrf.mxu0
    %v2592 = vpop.f32.mrf.mxu0
    %v2593 = vadd.f32 %v2313, %v2592
    %v2594 = vpop.f32.mrf.mxu0
    %2595 = vmatprep.mubr.bf16.mxu0 %v2241
    %2596 = vmatmul.mubr.bf16.gmra.mxu0 %v2240
    %v2597 = vpop.f32.mrf.mxu0
    %v2598 = vadd.f32 %v2313, %v2597
    %v2599 = vpop.f32.mrf.mxu0
    %v2600 = vpop.f32.mrf.mxu0
    %v2601 = vadd.f32 %v2313, %v2600
    %v2602 = vpop.f32.mrf.mxu0
    %2603 = vdwg.mxu0
    %2604 = vmatprep.subr.bf16.mxu0 0
    %2605 = vmatpush1.bf16.msra.mxu0 %v2466
    %2606 = vmatprep.subr.bf16.mxu0 0
    %2607 = vmatpush1.bf16.msra.mxu0 %v2465
    %2608 = vmatprep.subr.bf16.mxu0 0
    %2609 = vmatpush1.bf16.msra.mxu0 %v2464
    %2610 = vmatprep.subr.bf16.mxu0 0
    %2611 = vmatpush1.bf16.msra.mxu0 %v2463
    %2612 = vmatprep.subr.bf16.mxu0 0
    %2613 = vmatpush1.bf16.msra.mxu0 %v2462
    %2614 = vmatprep.subr.bf16.mxu0 0
    %2615 = vmatpush1.bf16.msra.mxu0 %v2461
    %2616 = vmatprep.subr.bf16.mxu0 0
    %2617 = vmatpush1.bf16.msra.mxu0 %v2460
    %2618 = vmatprep.subr.bf16.mxu0 0
    %2619 = vmatpush1.bf16.msra.mxu0 %v2459
    %2620 = vmatprep.subr.bf16.mxu0 0
    %2621 = vmatpush2.bf16.msra.mxu0 %v2474
    %2622 = vmatprep.subr.bf16.mxu0 0
    %2623 = vmatpush2.bf16.msra.mxu0 %v2473
    %2624 = vmatprep.subr.bf16.mxu0 0
    %2625 = vmatpush2.bf16.msra.mxu0 %v2472
    %2626 = vmatprep.subr.bf16.mxu0 0
    %2627 = vmatpush2.bf16.msra.mxu0 %v2471
    %2628 = vmatprep.subr.bf16.mxu0 0
    %2629 = vmatpush2.bf16.msra.mxu0 %v2470
    %2630 = vmatprep.subr.bf16.mxu0 0
    %2631 = vmatpush2.bf16.msra.mxu0 %v2469
    %2632 = vmatprep.subr.bf16.mxu0 0
    %2633 = vmatpush2.bf16.msra.mxu0 %v2468
    %2634 = vmatprep.subr.bf16.mxu0 0
    %2635 = vmatpush2.bf16.msra.mxu0 %v2467
    %2636 = vmatprep.mubr.bf16.mxu0 %v2215
    %2637 = vmatmul.mubr.bf16.gmra.mxu0 %v2214
    %v2638 = vpop.f32.mrf.mxu0
    %v2639 = vadd.f32 %v2542, %v2638
    %v2640 = vpop.f32.mrf.mxu0
    %v2641 = vpop.f32.mrf.mxu0
    %v2642 = vadd.f32 %v2545, %v2641
    %v2643 = vpop.f32.mrf.mxu0
    %2644 = vmatprep.mubr.bf16.mxu0 %v2219
    %2645 = vmatmul.mubr.bf16.gmra.mxu0 %v2218
    %v2646 = vpop.f32.mrf.mxu0
    %v2647 = vadd.f32 %v2550, %v2646
    %v2648 = vpop.f32.mrf.mxu0
    %v2649 = vpop.f32.mrf.mxu0
    %v2650 = vadd.f32 %v2553, %v2649
    %v2651 = vpop.f32.mrf.mxu0
    %2652 = vmatprep.mubr.bf16.mxu0 %v2223
    %2653 = vmatmul.mubr.bf16.gmra.mxu0 %v2222
    %v2654 = vpop.f32.mrf.mxu0
    %v2655 = vadd.f32 %v2558, %v2654
    %v2656 = vpop.f32.mrf.mxu0
    %v2657 = vpop.f32.mrf.mxu0
    %v2658 = vadd.f32 %v2561, %v2657
    %v2659 = vpop.f32.mrf.mxu0
    %2660 = vmatprep.mubr.bf16.mxu0 %v2227
    %2661 = vmatmul.mubr.bf16.gmra.mxu0 %v2226
    %v2662 = vpop.f32.mrf.mxu0
    %v2663 = vadd.f32 %v2566, %v2662
    %v2664 = vpop.f32.mrf.mxu0
    %v2665 = vpop.f32.mrf.mxu0
    %v2666 = vadd.f32 %v2569, %v2665
    %v2667 = vpop.f32.mrf.mxu0
    %2668 = vmatprep.mubr.bf16.mxu0 %v2231
    %2669 = vmatmul.mubr.bf16.gmra.mxu0 %v2230
    %v2670 = vpop.f32.mrf.mxu0
    %v2671 = vadd.f32 %v2574, %v2670
    %v2672 = vpop.f32.mrf.mxu0
    %v2673 = vpop.f32.mrf.mxu0
    %v2674 = vadd.f32 %v2577, %v2673
    %v2675 = vpop.f32.mrf.mxu0
    %2676 = vmatprep.mubr.bf16.mxu0 %v2235
    %2677 = vmatmul.mubr.bf16.gmra.mxu0 %v2234
    %v2678 = vpop.f32.mrf.mxu0
    %v2679 = vadd.f32 %v2582, %v2678
    %v2680 = vpop.f32.mrf.mxu0
    %v2681 = vpop.f32.mrf.mxu0
    %v2682 = vadd.f32 %v2585, %v2681
    %v2683 = vpop.f32.mrf.mxu0
    %2684 = vmatprep.mubr.bf16.mxu0 %v2239
    %2685 = vmatmul.mubr.bf16.gmra.mxu0 %v2238
    %v2686 = vpop.f32.mrf.mxu0
    %v2687 = vadd.f32 %v2590, %v2686
    %v2688 = vpop.f32.mrf.mxu0
    %v2689 = vpop.f32.mrf.mxu0
    %v2690 = vadd.f32 %v2593, %v2689
    %v2691 = vpop.f32.mrf.mxu0
    %2692 = vmatprep.mubr.bf16.mxu0 %v2243
    %2693 = vmatmul.mubr.bf16.gmra.mxu0 %v2242
    %v2694 = vpop.f32.mrf.mxu0
    %v2695 = vadd.f32 %v2598, %v2694
    %v2696 = vpop.f32.mrf.mxu0
    %v2697 = vpop.f32.mrf.mxu0
    %v2698 = vadd.f32 %v2601, %v2697
    %v2699 = vpop.f32.mrf.mxu0
    %2700 = vdwg.mxu0
    %v2701 = vadd.f32 %v2639, %v2642
    %v2702 = vadd.f32 %v2701, %v2647
    %v2703 = vadd.f32 %v2702, %v2650
    %v2704 = vadd.f32 %v2703, %v2655
    %v2705 = vadd.f32 %v2704, %v2658
    %v2706 = vadd.f32 %v2705, %v2663
    %v2707 = vadd.f32 %v2706, %v2666
    %v2708 = vadd.f32 %v2707, %v2671
    %v2709 = vadd.f32 %v2708, %v2674
    %v2710 = vadd.f32 %v2709, %v2679
    %v2711 = vadd.f32 %v2710, %v2682
    %v2712 = vadd.f32 %v2711, %v2687
    %v2713 = vadd.f32 %v2712, %v2690
    %v2714 = vadd.f32 %v2713, %v2695
    %v2715 = vadd.f32 %v2714, %v2698
    %v2716 = vrot.slane %v2715, 4
    %v2717 = vadd.f32 %v2715, %v2716
    %v2718 = vrot.slane %v2717, 2
    %v2719 = vadd.f32 %v2717, %v2718
    %v2720 = vrot.slane %v2719, 1
    %v2721 = vadd.f32 %v2719, %v2720
    %2722 = vst [vmem:[#allocation6] sm:$0x1] %v2721
    // Predicated region
    $region58: #{_lambda_.1} parent=1 // pred_check
      _
    $region59: #{_lambda_.1} parent=1 // pred_check_branch
      %2724 = sbr.rel (0) target = $region61
    $region60: #{_lambda_.1} parent=1 // pred_region
      %s2726 = ssub.s32 2048, 2048
      %2727 = vsyncadd [#allocation3], %s2726
      %s2728 = sshll.u32 [#allocation2], 4
      %s2729 = int_to_ptr.vmem [resolvable:$true] %s2728
      %2734 = dma.vmem_to_hbm [thread:$0]  %s2729, 2048, %s14, [#allocation3], 128, 128, 8
    $region61: #{_lambda_.1} parent=1 // pred_fallthru
      _
    // Predicated region
    $region62: #{_lambda_.1} parent=1 // pred_check
      _
    $region63: #{_lambda_.1} parent=1 // pred_check_branch
      %2736 = sbr.rel (0) target = $region65
    $region64: #{_lambda_.1} parent=1 // pred_region
      %s2738 = ssub.s32 16, 16
      %2739 = vsyncadd [#allocation5], %s2738
      %s2741 = sshll.u32 [#allocation4], 4
      %s2742 = int_to_ptr.vmem [resolvable:$true] %s2741
      %2744 = dma.vmem_to_hbm [thread:$0]  %s2742, 16, %s15, [#allocation5]
    $region65: #{_lambda_.1} parent=1 // pred_fallthru
      _
    // Predicated region
    $region66: #{_lambda_.1} parent=1 // pred_check
      _
    $region67: #{_lambda_.1} parent=1 // pred_check_branch
      %2746 = sbr.rel (0) target = $region69
    $region68: #{_lambda_.1} parent=1 // pred_region
      %s2748 = ssub.s32 16, 16
      %2749 = vsyncadd [#allocation5], %s2748
      %s2751 = sshll.u32 [#allocation6], 4
      %s2752 = int_to_ptr.vmem [resolvable:$true] %s2751
      %2754 = dma.vmem_to_hbm [thread:$0]  %s2752, 16, %s16, [#allocation5]
    $region69: #{_lambda_.1} parent=1 // pred_fallthru
      _
    // Predicated region
    $region70: #{_lambda_.1} parent=1 // pred_check
      _
    $region71: #{_lambda_.1} parent=1 // pred_check_branch
      %2756 = sbr.rel (0) target = $region73
    $region72: #{_lambda_.1} parent=1 // pred_region
      %2757 = dma.done [#allocation3], 2048
    $region73: #{_lambda_.1} parent=1 // pred_fallthru
      _
    // Predicated region
    $region74: #{_lambda_.1} parent=1 // pred_check
      _
    $region75: #{_lambda_.1} parent=1 // pred_check_branch
      %2759 = sbr.rel (0) target = $region77
    $region76: #{_lambda_.1} parent=1 // pred_region
      %2760 = dma.done [#allocation5], 16
    $region77: #{_lambda_.1} parent=1 // pred_fallthru
      _
    // Predicated region
    $region78: #{_lambda_.1} parent=1 // pred_check
      _
    $region79: #{_lambda_.1} parent=1 // pred_check_branch
      %2762 = sbr.rel (0) target = $region81
    $region80: #{_lambda_.1} parent=1 // pred_region
      %2763 = dma.done [#allocation5], 16
    $region81: #{_lambda_.1} parent=1 // pred_fallthru
      _
    %2764 = vsyncpa [#allocation3], 1
    %2765 = vsyncpa [#allocation5], 1

</llo_original>
